<compile_context>
chip_gen: v7x
topology: tpu7x:2x2x1
jax: 0.10.0
libtpu: 0.0.40
codegen_flags: <defaults>
</compile_context>

<pallas_src>
import functools
import math

import jax
import jax.numpy as jnp
from jax.experimental import pallas as pl
from jax.experimental.pallas import tpu as pltpu


LANE = 128      # TPU lane width: keep channel dims multiples of this
SUBLANE = 8     # sublane granularity for row tiles


def _round_up(x, m):
    return (x + m - 1) // m * m


def _cdiv(a, b):
    return -(-a // b)


def _pick_tile_m(M, target):
    """Row tile that (a) minimizes padding (tm = round_up(cdiv(M, g), 8) with
    g = cdiv(M, target)) and (b) keeps the grid at >= 2 balanced steps when
    there is enough work, so v7x's two TensorCores both get real rows."""
    M8 = _round_up(max(M, 1), SUBLANE)
    g = max(1, _cdiv(M8, target))
    if g < 2 and M8 > 2 * SUBLANE:
        g = 2
    tm = _round_up(_cdiv(M8, g), SUBLANE)
    return max(tm, SUBLANE)


def _pick_hid_chunk(hid_p, target=512):
    """Largest multiple of 128 that divides hid_p and is <= target: bounds the
    live f32 GELU intermediate independent of the full hidden width."""
    c = max(LANE, min((target // LANE) * LANE, hid_p))
    while hid_p % c != 0:
        c -= LANE
    return c


def mlp_kernel(x_ref, w1_ref, b1_ref, w2_ref, b2_ref, o_ref,
               *, hid_p, hid_chunk, exact_gelu):
    # Cast to bf16 in-kernel (cheap VALU op) instead of a separate XLA pass.
    x = x_ref[...].astype(jnp.bfloat16)                      # (tm, in_p)
    tm = x.shape[0]
    out_p = o_ref.shape[-1]
    acc = jnp.zeros((tm, out_p), jnp.float32)
    # Hidden-dim chunking: fc1-chunk -> GELU -> accumulate fc2, so the live f32
    # intermediate is only (tm, hid_chunk) and fc2 overlaps fc1+GELU per chunk.
    for off in range(0, hid_p, hid_chunk):
        h = jnp.dot(x, w1_ref[:, off:off + hid_chunk],
                    preferred_element_type=jnp.float32)
        h = h + b1_ref[:, off:off + hid_chunk]               # f32 bias broadcast
        # tanh-approx GELU routes the transcendental to the EUP slot (free slot
        # next to MXU/VALU on v6e/v7x); exact erf kept behind a flag for strict
        # torch nn.GELU parity (differences are ~1e-3 level).
        h = jax.nn.gelu(h, approximate=not exact_gelu)
        acc = acc + jnp.dot(h.astype(jnp.bfloat16),
                            w2_ref[off:off + hid_chunk, :],
                            preferred_element_type=jnp.float32)
    # TODO(synk): Dropout with p>0 would need pltpu.prng_*; p=0.0 (module default) is identity.
    o_ref[...] = (acc + b2_ref[...]).astype(o_ref.dtype)


def prepare_mlp_params(w1, b1, w2, b2):
    """One-time parameter prep (hoisted out of the per-call path):
    PyTorch layout w1:(hid,in), w2:(out,hid) -> transposed, lane-padded, bf16."""
    hid, in_f = w1.shape
    out_f, hid2 = w2.shape
    assert hid == hid2
    in_p = _round_up(in_f, LANE)
    hid_p = _round_up(hid, LANE)
    out_p = _round_up(out_f, LANE)

    w1t = jnp.zeros((in_p, hid_p), jnp.bfloat16).at[:in_f, :hid].set(
        jnp.transpose(w1).astype(jnp.bfloat16))
    w2t = jnp.zeros((hid_p, out_p), jnp.bfloat16).at[:hid, :out_f].set(
        jnp.transpose(w2).astype(jnp.bfloat16))
    b1p = jnp.zeros((1, hid_p), jnp.float32).at[:, :hid].set(
        b1.astype(jnp.float32).reshape(1, hid))
    b2p = jnp.zeros((1, out_p), jnp.float32).at[:, :out_f].set(
        b2.astype(jnp.float32).reshape(1, out_f))
    return dict(w1t=w1t, b1=b1p, w2t=w2t, b2=b2p,
                in_f=in_f, hid=hid, out_f=out_f)


def _probe_copy_kernel(x_ref, o_ref):
    o_ref[...] = x_ref[...]


@functools.lru_cache(maxsize=1)
def _single_buffer_supported():
    """One-time feature probe: does this jax build accept pipeline_mode=
    pl.Buffered(1) on a resident BlockSpec?  Tiny (8,128) copy kernel; cached so
    the real kernel builds never hide genuine lowering errors behind a fallback."""
    if not hasattr(pl, "Buffered"):
        return False
    try:
        spec = pl.BlockSpec((SUBLANE, LANE), lambda i: (0, 0),
                            pipeline_mode=pl.Buffered(1))
        call = pl.pallas_call(
            _probe_copy_kernel,
            out_shape=jax.ShapeDtypeStruct((SUBLANE, LANE), jnp.float32),
            grid_spec=pltpu.PrefetchScalarGridSpec(
                num_scalar_prefetch=0, grid=(1,),
                in_specs=[spec],
                out_specs=pl.BlockSpec((SUBLANE, LANE), lambda i: (0, 0))),
        )
        jax.block_until_ready(call(jnp.zeros((SUBLANE, LANE), jnp.float32)))
        return True
    except Exception:   # feature probe only; decision is cached once
        return False


@functools.lru_cache(maxsize=1)
def _vmem_capacity_bytes():
    """Chip-aware VMEM capacity (64 MiB on v7x, 128 MiB on v5e/v6e)."""
    try:
        return int(pltpu.get_tpu_info().vmem_capacity_bytes)
    except Exception:
        return 64 * 1024 * 1024   # conservative default = v7x per-core VMEM


@functools.lru_cache(maxsize=None)
def _build_mlp_call(tm, grid_m, in_p, hid_p, out_p, hid_chunk,
                    x_dtype_name, out_dtype_name, exact_gelu, single_buffer):
    x_dtype = jnp.dtype(x_dtype_name)
    out_dtype = jnp.dtype(out_dtype_name)

    # Constant-index resident operands: no point double-buffering them.
    wkw = dict(pipeline_mode=pl.Buffered(1)) if single_buffer else {}

    in_specs = [
        pl.BlockSpec((tm, in_p), lambda i: (i, 0)),             # x rows (streamed)
        pl.BlockSpec((in_p, hid_p), lambda i: (0, 0), **wkw),   # W1^T resident
        pl.BlockSpec((1, hid_p), lambda i: (0, 0), **wkw),      # b1 resident
        pl.BlockSpec((hid_p, out_p), lambda i: (0, 0), **wkw),  # W2^T resident
        pl.BlockSpec((1, out_p), lambda i: (0, 0), **wkw),      # b2 resident
    ]
    out_specs = pl.BlockSpec((tm, out_p), lambda i: (i, 0))

    # VMEM working-set estimate -> chip-aware scoped limit with headroom.
    wcopies = 1 if single_buffer else 2
    est = (2 * tm * in_p * x_dtype.itemsize                     # 2x-buffered x tiles
           + 2 * tm * out_p * out_dtype.itemsize                # 2x-buffered out tiles
           + (in_p * hid_p + hid_p * out_p) * 2 * wcopies       # bf16 weights
           + (hid_p + out_p) * 4 * wcopies                      # f32 biases
           + tm * in_p * 2                                      # bf16 cast of x
           + tm * hid_chunk * 6                                 # f32 h chunk + bf16 cast
           + tm * out_p * 4)                                    # f32 accumulator
    cap = int(0.75 * _vmem_capacity_bytes())                    # ~25% headroom for compiler
    vmem_limit = min(max(2 * est, 8 * 1024 * 1024), cap)

    kernel = functools.partial(mlp_kernel, hid_p=hid_p, hid_chunk=hid_chunk,
                               exact_gelu=exact_gelu)

    # TODO(synk): if a given v7x build does not shard the single "parallel" axis
    # across its two TensorCores, switch this axis to pltpu.CORE_PARALLEL.
    return pl.pallas_call(
        kernel,
        out_shape=jax.ShapeDtypeStruct((grid_m * tm, out_p), out_dtype),
        grid_spec=pltpu.PrefetchScalarGridSpec(
            num_scalar_prefetch=0,
            grid=(grid_m,),
            in_specs=in_specs,
            out_specs=out_specs,
        ),
        compiler_params=pltpu.CompilerParams(
            dimension_semantics=("parallel",),
            vmem_limit_bytes=vmem_limit,
        ),
    )


def mlp_pallas(x, params, *, tile_m=512, out_dtype=None, exact_gelu=False):
    """x: (..., in_features) f32/bf16; params from prepare_mlp_params.

    out_dtype defaults to x.dtype; pass jnp.bfloat16 when the surrounding
    network runs in bf16 to halve output DMA.  exact_gelu=True matches torch
    nn.GELU's exact-erf default bit-for-bit at the cost of VALU work.
    Note: the bf16 cast of the GELU intermediate before fc2 is the main
    precision loss vs an f32 torch reference (~1e-2 relative)."""
    in_f, out_f = params["in_f"], params["out_f"]
    w1t, b1, w2t, b2 = params["w1t"], params["b1"], params["w2t"], params["b2"]
    in_p, hid_p = w1t.shape
    out_p = w2t.shape[1]
    assert x.shape[-1] == in_f

    lead = x.shape[:-1]
    M = int(math.prod(lead)) if lead else 1

    tm = _pick_tile_m(M, tile_m)
    M_pad = _round_up(M, tm)
    grid_m = M_pad // tm
    hid_chunk = _pick_hid_chunk(hid_p)

    # No wrapper-side cast pass: the kernel casts to bf16 just before the first
    # dot, saving an extra HBM read/write over x.  Pad only when actually needed.
    x2d = x.reshape(M, in_f)
    if M_pad != M or in_p != in_f:
        x2d = jnp.pad(x2d, ((0, M_pad - M), (0, in_p - in_f)))

    out_dt = jnp.dtype(out_dtype) if out_dtype is not None else jnp.dtype(x.dtype)
    call = _build_mlp_call(tm, grid_m, in_p, hid_p, out_p, hid_chunk,
                           jnp.dtype(x2d.dtype).name, out_dt.name,
                           bool(exact_gelu), _single_buffer_supported())
    out2d = call(x2d, w1t, b1, w2t, b2)

    if M_pad != M or out_p != out_f:
        out2d = out2d[:M, :out_f]
    return out2d.reshape(*lead, out_f)


def _linear_init(key, fan_out, fan_in):
    # Deterministic stand-in for nn.Linear default init: U(-1/sqrt(fan_in), +).
    kw, kb = jax.random.split(key)
    bound = 1.0 / math.sqrt(fan_in)
    w = jax.random.uniform(kw, (fan_out, fan_in), jnp.float32, -bound, bound)
    b = jax.random.uniform(kb, (fan_out,), jnp.float32, -bound, bound)
    return w, b


if __name__ == "__main__":
    # Shapes consistent with DSTformer defaults: dim_feat=256, mlp_ratio=4,
    # num_joints=17; MLP tokens are (B*F, J, C) with B=2 clips, F=8 frames.
    B, F, J = 2, 8, 17
    dim_feat = 256
    hidden_features = dim_feat * 4
    out_features = dim_feat

    key = jax.random.PRNGKey(0)
    kx, k1, k2 = jax.random.split(key, 3)
    x = jax.random.normal(kx, (B * F, J, dim_feat), jnp.float32)
    w1, b1 = _linear_init(k1, hidden_features, dim_feat)
    w2, b2 = _linear_init(k2, out_features, hidden_features)

    params = prepare_mlp_params(w1, b1, w2, b2)   # one-time prep (amortized)
    y = mlp_pallas(x, params)                     # tanh-approx GELU by default
    y = jax.block_until_ready(y)

    # Pure-JAX f32 exact-GELU reference.  bf16 MXU operands plus tanh-approx
    # GELU loosen tolerance to ~5e-2 (documented in mlp_pallas docstring).
    h_ref = jax.nn.gelu(x @ w1.T + b1, approximate=False)
    y_ref = h_ref @ w2.T + b2
    assert y.shape == (B * F, J, out_features)
    assert jnp.allclose(y, y_ref, atol=5e-2, rtol=5e-2), "mismatch vs reference"

    print("KERNEL_OK")
</pallas_src>

<mosaic_0001>
module attributes {stable_mosaic.version = 11 : i64} {
  func.func @_probe_copy_kernel(%arg0: i32, %arg1: memref<8x128xf32, #tpu.memory_space<vmem>>, %arg2: memref<8x128xf32, #tpu.memory_space<vmem>>) attributes {dimension_semantics = [#tpu.dimension_semantics<arbitrary>], iteration_bounds = array<i64: 1>, scalar_prefetch = 0 : i64, scratch_operands = 0 : i64, tpu.core_type = #tpu.core_type<tc>, window_params = [{pipeline_mode = #tpu.pipeline_mode<synchronous>, transform_indices = @transform_0, window_bounds = array<i64: 8, 128>}, {pipeline_mode = #tpu.pipeline_mode<synchronous>, transform_indices = @transform_1, window_bounds = array<i64: 8, 128>}]} {
    %c0 = arith.constant 0 : index
    %c0_0 = arith.constant 0 : index
    %0 = vector.load %arg1[%c0, %c0_0] : memref<8x128xf32, #tpu.memory_space<vmem>>, vector<8x128xf32>
    %c0_1 = arith.constant 0 : index
    %c0_2 = arith.constant 0 : index
    %1 = vector.load %arg2[%c0_1, %c0_2] : memref<8x128xf32, #tpu.memory_space<vmem>>, vector<8x128xf32>
    tpu.vector_store %arg2[%c0_1, %c0_2], %0 {strides = array<i32>} : memref<8x128xf32, #tpu.memory_space<vmem>>, vector<8x128xf32>,
    return
  }
  func.func @transform_0(%arg0: i32) -> (i32, i32) {
    %c0_i32 = arith.constant 0 : i32
    %c0_i32_0 = arith.constant 0 : i32
    %c0_i32_1 = arith.constant 0 : i32
    return %c0_i32, %c0_i32_0 : i32, i32
  }
  func.func @transform_1(%arg0: i32) -> (i32, i32) {
    %c0_i32 = arith.constant 0 : i32
    %c0_i32_0 = arith.constant 0 : i32
    %c0_i32_1 = arith.constant 0 : i32
    return %c0_i32, %c0_i32_0 : i32, i32
  }
}

module attributes {stable_mosaic.version = 11 : i64} {
  func.func @mlp_kernel(%arg0: i32, %arg1: memref<136x256xf32, #tpu.memory_space<vmem>>, %arg2: memref<256x1024xbf16, #tpu.memory_space<vmem>>, %arg3: memref<1x1024xf32, #tpu.memory_space<vmem>>, %arg4: memref<1024x256xbf16, #tpu.memory_space<vmem>>, %arg5: memref<1x256xf32, #tpu.memory_space<vmem>>, %arg6: memref<136x256xf32, #tpu.memory_space<vmem>>) attributes {dimension_semantics = [#tpu.dimension_semantics<parallel>], iteration_bounds = array<i64: 2>, scalar_prefetch = 0 : i64, scratch_operands = 0 : i64, tpu.core_type = #tpu.core_type<tc>, window_params = [{transform_indices = @transform_0, window_bounds = array<i64: 136, 256>}, {pipeline_mode = #tpu.pipeline_mode<synchronous>, transform_indices = @transform_1, window_bounds = array<i64: 256, 1024>}, {pipeline_mode = #tpu.pipeline_mode<synchronous>, transform_indices = @transform_2, window_bounds = array<i64: 1, 1024>}, {pipeline_mode = #tpu.pipeline_mode<synchronous>, transform_indices = @transform_3, window_bounds = array<i64: 1024, 256>}, {pipeline_mode = #tpu.pipeline_mode<synchronous>, transform_indices = @transform_4, window_bounds = array<i64: 1, 256>}, {transform_indices = @transform_5, window_bounds = array<i64: 136, 256>}]} {
    %c0 = arith.constant 0 : index
    %c0_0 = arith.constant 0 : index
    %0 = vector.load %arg1[%c0, %c0_0] : memref<136x256xf32, #tpu.memory_space<vmem>>, vector<136x256xf32>
    %1 = arith.truncf %0 : vector<136x256xf32> to vector<136x256xbf16>
    %cst = arith.constant 0.000000e+00 : f32
    %2 = vector.broadcast %cst : f32 to vector<136x256xf32>
    %c0_1 = arith.constant 0 : index
    %c0_2 = arith.constant 0 : index
    %3 = vector.load %arg2[%c0_1, %c0_2] : memref<256x1024xbf16, #tpu.memory_space<vmem>>, vector<256x512xbf16>
    %cst_3 = arith.constant dense<0.000000e+00> : vector<136x512xf32>
    %4 = tpu.matmul %1, %3, %cst_3 {dimension_numbers = #tpu.dot_dimension_numbers<[1], [0], [0], [1], [0, 0, 1, 1], [], []>} : vector<136x256xbf16>, vector<256x512xbf16>, vector<136x512xf32> -> vector<136x512xf32>
    %c0_4 = arith.constant 0 : index
    %c0_5 = arith.constant 0 : index
    %5 = vector.load %arg3[%c0_4, %c0_5] : memref<1x1024xf32, #tpu.memory_space<vmem>>, vector<1x512xf32>
    %6 = vector.broadcast %5 : vector<1x512xf32> to vector<136x512xf32>
    %7 = arith.addf %4, %6 : vector<136x512xf32>
    %8 = arith.mulf %7, %7 : vector<136x512xf32>
    %9 = arith.mulf %7, %8 : vector<136x512xf32>
    %cst_6 = arith.constant 4.471500e-02 : f32
    %10 = vector.broadcast %cst_6 : f32 to vector<136x512xf32>
    %11 = arith.mulf %10, %9 : vector<136x512xf32>
    %12 = arith.addf %7, %11 : vector<136x512xf32>
    %cst_7 = arith.constant 0.797884583 : f32
    %13 = vector.broadcast %cst_7 : f32 to vector<136x512xf32>
    %14 = arith.mulf %13, %12 : vector<136x512xf32>
    %15 = math.tanh %14 : vector<136x512xf32>
    %cst_8 = arith.constant 1.000000e+00 : f32
    %16 = vector.broadcast %cst_8 : f32 to vector<136x512xf32>
    %17 = arith.addf %16, %15 : vector<136x512xf32>
    %cst_9 = arith.constant 5.000000e-01 : f32
    %18 = vector.broadcast %cst_9 : f32 to vector<136x512xf32>
    %19 = arith.mulf %18, %17 : vector<136x512xf32>
    %20 = arith.mulf %7, %19 : vector<136x512xf32>
    %21 = arith.truncf %20 : vector<136x512xf32> to vector<136x512xbf16>
    %c0_10 = arith.constant 0 : index
    %c0_11 = arith.constant 0 : index
    %22 = vector.load %arg4[%c0_10, %c0_11] : memref<1024x256xbf16, #tpu.memory_space<vmem>>, vector<512x256xbf16>
    %cst_12 = arith.constant dense<0.000000e+00> : vector<136x256xf32>
    %23 = tpu.matmul %21, %22, %cst_12 {dimension_numbers = #tpu.dot_dimension_numbers<[1], [0], [0], [1], [0, 0, 1, 1], [], []>} : vector<136x512xbf16>, vector<512x256xbf16>, vector<136x256xf32> -> vector<136x256xf32>
    %24 = arith.addf %2, %23 : vector<136x256xf32>
    %c0_13 = arith.constant 0 : index
    %c512 = arith.constant 512 : index
    %25 = vector.load %arg2[%c0_13, %c512] : memref<256x1024xbf16, #tpu.memory_space<vmem>>, vector<256x512xbf16>
    %cst_14 = arith.constant dense<0.000000e+00> : vector<136x512xf32>
    %26 = tpu.matmul %1, %25, %cst_14 {dimension_numbers = #tpu.dot_dimension_numbers<[1], [0], [0], [1], [0, 0, 1, 1], [], []>} : vector<136x256xbf16>, vector<256x512xbf16>, vector<136x512xf32> -> vector<136x512xf32>
    %c0_15 = arith.constant 0 : index
    %c512_16 = arith.constant 512 : index
    %27 = vector.load %arg3[%c0_15, %c512_16] : memref<1x1024xf32, #tpu.memory_space<vmem>>, vector<1x512xf32>
    %28 = vector.broadcast %27 : vector<1x512xf32> to vector<136x512xf32>
    %29 = arith.addf %26, %28 : vector<136x512xf32>
    %30 = arith.mulf %29, %29 : vector<136x512xf32>
    %31 = arith.mulf %29, %30 : vector<136x512xf32>
    %cst_17 = arith.constant 4.471500e-02 : f32
    %32 = vector.broadcast %cst_17 : f32 to vector<136x512xf32>
    %33 = arith.mulf %32, %31 : vector<136x512xf32>
    %34 = arith.addf %29, %33 : vector<136x512xf32>
    %cst_18 = arith.constant 0.797884583 : f32
    %35 = vector.broadcast %cst_18 : f32 to vector<136x512xf32>
    %36 = arith.mulf %35, %34 : vector<136x512xf32>
    %37 = math.tanh %36 : vector<136x512xf32>
    %cst_19 = arith.constant 1.000000e+00 : f32
    %38 = vector.broadcast %cst_19 : f32 to vector<136x512xf32>
    %39 = arith.addf %38, %37 : vector<136x512xf32>
    %cst_20 = arith.constant 5.000000e-01 : f32
    %40 = vector.broadcast %cst_20 : f32 to vector<136x512xf32>
    %41 = arith.mulf %40, %39 : vector<136x512xf32>
    %42 = arith.mulf %29, %41 : vector<136x512xf32>
    %43 = arith.truncf %42 : vector<136x512xf32> to vector<136x512xbf16>
    %c512_21 = arith.constant 512 : index
    %c0_22 = arith.constant 0 : index
    %44 = vector.load %arg4[%c512_21, %c0_22] : memref<1024x256xbf16, #tpu.memory_space<vmem>>, vector<512x256xbf16>
    %cst_23 = arith.constant dense<0.000000e+00> : vector<136x256xf32>
    %45 = tpu.matmul %43, %44, %cst_23 {dimension_numbers = #tpu.dot_dimension_numbers<[1], [0], [0], [1], [0, 0, 1, 1], [], []>} : vector<136x512xbf16>, vector<512x256xbf16>, vector<136x256xf32> -> vector<136x256xf32>
    %46 = arith.addf %24, %45 : vector<136x256xf32>
    %c0_24 = arith.constant 0 : index
    %c0_25 = arith.constant 0 : index
    %47 = vector.load %arg5[%c0_24, %c0_25] : memref<1x256xf32, #tpu.memory_space<vmem>>, vector<1x256xf32>
    %48 = vector.broadcast %47 : vector<1x256xf32> to vector<136x256xf32>
    %49 = arith.addf %46, %48 : vector<136x256xf32>
    %c0_26 = arith.constant 0 : index
    %c0_27 = arith.constant 0 : index
    %50 = vector.load %arg6[%c0_26, %c0_27] : memref<136x256xf32, #tpu.memory_space<vmem>>, vector<136x256xf32>
    tpu.vector_store %arg6[%c0_26, %c0_27], %49 {strides = array<i32>} : memref<136x256xf32, #tpu.memory_space<vmem>>, vector<136x256xf32>,
    return
  }
  func.func @transform_0(%arg0: i32) -> (i32, i32) {
    %c0_i32 = arith.constant 0 : i32
    %c0_i32_0 = arith.constant 0 : i32
    return %arg0, %c0_i32 : i32, i32
  }
  func.func @transform_1(%arg0: i32) -> (i32, i32) {
    %c0_i32 = arith.constant 0 : i32
    %c0_i32_0 = arith.constant 0 : i32
    %c0_i32_1 = arith.constant 0 : i32
    return %c0_i32, %c0_i32_0 : i32, i32
  }
  func.func @transform_2(%arg0: i32) -> (i32, i32) {
    %c0_i32 = arith.constant 0 : i32
    %c0_i32_0 = arith.constant 0 : i32
    %c0_i32_1 = arith.constant 0 : i32
    return %c0_i32, %c0_i32_0 : i32, i32
  }
  func.func @transform_3(%arg0: i32) -> (i32, i32) {
    %c0_i32 = arith.constant 0 : i32
    %c0_i32_0 = arith.constant 0 : i32
    %c0_i32_1 = arith.constant 0 : i32
    return %c0_i32, %c0_i32_0 : i32, i32
  }
  func.func @transform_4(%arg0: i32) -> (i32, i32) {
    %c0_i32 = arith.constant 0 : i32
    %c0_i32_0 = arith.constant 0 : i32
    %c0_i32_1 = arith.constant 0 : i32
    return %c0_i32, %c0_i32_0 : i32, i32
  }
  func.func @transform_5(%arg0: i32) -> (i32, i32) {
    %c0_i32 = arith.constant 0 : i32
    %c0_i32_0 = arith.constant 0 : i32
    return %arg0, %c0_i32 : i32, i32
  }
}

</mosaic_0001>

<llo_original>
// kernel: tpu_custom_call.1
$region0: #{tpu_custom_call.1}
  #allocation0 [shape = 'u32[]', space=smem, size = 0x4, offset = 0x4, fixed_abs, tag = 'smem constant byte address 0x4 - core index']
  #allocation1 [shape = 'u32[144,128]{1,0:T(1,128)}', space=vmem, size = 0x12000, scoped, tag = 'internal scratch']
  %s0 = inlined_call_operand.hbm [shape: f32[8,128], index: 0, kind: input, shape index: {}]
  %s1 = inlined_call_operand.hbm [shape: f32[8,128], index: 1, kind: output, shape index: {}]
  %s2 = sld [smem:[#allocation0]]
  $region18: #{tpu_custom_call.1} parent=0
    _
  %s4 = ssub.s32 1, %s2
  %s5 = scalar_select 0, %s4, %s2
  $region1: #{tpu_custom_call.1} parent=0
    #allocation2 [shape = 'u8[4096]{0}', space=vmem, size = 0x1000, scoped, tag = 'input window, operand 0, single buffered']
    #allocation3 [shape = 's32[1]{0}', space=sflag, size = 0x4, scoped, tag = 'scoped memory for tpu_custom_call.1']
    #allocation4 [shape = 's32[1]{0}', space=sflag, size = 0x4, scoped, tag = 'scoped memory for tpu_custom_call.1']
    #allocation5 [shape = 'u8[4096]{0}', space=vmem, size = 0x1000, scoped, tag = 'output window, operand 0, single buffered']
    %6 = vsyncpa [#allocation3], 0
    %7 = vsyncpa [#allocation4], 0
    // Predicated region
    $region2: #{tpu_custom_call.1} parent=1 // pred_check
      _
    $region3: #{tpu_custom_call.1} parent=1 // pred_check_branch
      %9 = sbr.rel (0) target = $region5
    $region4: #{tpu_custom_call.1} parent=1 // pred_region
      %s11 = ssub.s32 128, 128
      %12 = vsyncadd [#allocation3], %s11
      %s14 = sshll.u32 [#allocation2], 4
      %s15 = int_to_ptr.vmem [resolvable:$true] %s14
      %17 = dma.hbm_to_vmem [thread:$0]  %s0, 128, %s15, [#allocation3]
    $region5: #{tpu_custom_call.1} parent=1 // pred_fallthru
      _
    // Predicated region
    $region6: #{tpu_custom_call.1} parent=1 // pred_check
      _
    $region7: #{tpu_custom_call.1} parent=1 // pred_check_branch
      %19 = sbr.rel (0) target = $region9
    $region8: #{tpu_custom_call.1} parent=1 // pred_region
      %20 = dma.done [#allocation3], 128
    $region9: #{tpu_custom_call.1} parent=1 // pred_fallthru
      _
    %v21 = vld [vmem:[#allocation2] sm:$0xff]
    %22 = vst [vmem:[#allocation5] sm:$0xff] %v21
    // Predicated region
    $region10: #{tpu_custom_call.1} parent=1 // pred_check
      _
    $region11: #{tpu_custom_call.1} parent=1 // pred_check_branch
      %24 = sbr.rel (0) target = $region13
    $region12: #{tpu_custom_call.1} parent=1 // pred_region
      %s26 = ssub.s32 128, 128
      %27 = vsyncadd [#allocation4], %s26
      %s29 = sshll.u32 [#allocation5], 4
      %s30 = int_to_ptr.vmem [resolvable:$true] %s29
      %32 = dma.vmem_to_hbm [thread:$0]  %s30, 128, %s1, [#allocation4]
    $region13: #{tpu_custom_call.1} parent=1 // pred_fallthru
      _
    // Predicated region
    $region14: #{tpu_custom_call.1} parent=1 // pred_check
      _
    $region15: #{tpu_custom_call.1} parent=1 // pred_check_branch
      %34 = sbr.rel (0) target = $region17
    $region16: #{tpu_custom_call.1} parent=1 // pred_region
      %35 = dma.done [#allocation4], 128
    $region17: #{tpu_custom_call.1} parent=1 // pred_fallthru
      _
    %36 = vsyncpa [#allocation3], 1
    %37 = vsyncpa [#allocation4], 1

// kernel: tpu_custom_call.1
$region0: #{tpu_custom_call.1}
  #allocation0 [shape = 'u32[]', space=smem, size = 0x4, offset = 0x4, fixed_abs, tag = 'smem constant byte address 0x4 - core index']
  #allocation1 [shape = 'u32[144,128]{1,0:T(1,128)}', space=vmem, size = 0x12000, scoped, tag = 'internal scratch']
  %s0 = inlined_call_operand.hbm [shape: f32[272,256], index: 0, kind: input, shape index: {}]
  %s1 = inlined_call_operand.hbm [shape: bf16[256,1024], index: 1, kind: input, shape index: {}]
  %s2 = inlined_call_operand.hbm [shape: f32[1,1024], index: 2, kind: input, shape index: {}]
  %s3 = inlined_call_operand.hbm [shape: bf16[1024,256], index: 3, kind: input, shape index: {}]
  %s4 = inlined_call_operand.vmem [shape: f32[1,256], index: 4, kind: input, shape index: {}]
  %s5 = inlined_call_operand.hbm [shape: f32[272,256], index: 5, kind: output, shape index: {}]
  %s6 = sld [smem:[#allocation0]]
  $region69: #{tpu_custom_call.1} parent=0
    _
  %s8 = ssub.s32 1, %s6
  %s9 = scalar_select 0, %s8, %s6
  $region1: #{tpu_custom_call.1} parent=0
    #allocation2 [shape = 'u8[278528]{0}', space=vmem, size = 0x44000, scoped, tag = 'input window, operand 0']
    #allocation3 [shape = 's32[2]{0}', space=sflag, size = 0x8, scoped, tag = 'scoped memory for tpu_custom_call.1']
    #allocation4 [shape = 's32[2]{0}', space=sflag, size = 0x8, scoped, tag = 'scoped memory for tpu_custom_call.1']
    #allocation5 [shape = 'u8[524288]{0}', space=vmem, size = 0x80000, scoped, tag = 'input window, operand 1, single buffered']
    #allocation6 [shape = 's32[1]{0}', space=sflag, size = 0x4, scoped, tag = 'scoped memory for tpu_custom_call.1']
    #allocation7 [shape = 'u8[4096]{0}', space=vmem, size = 0x1000, scoped, tag = 'input window, operand 2, single buffered']
    #allocation8 [shape = 'u8[524288]{0}', space=vmem, size = 0x80000, scoped, tag = 'input window, operand 3, single buffered']
    #allocation9 [shape = 's32[1]{0}', space=sflag, size = 0x4, scoped, tag = 'scoped memory for tpu_custom_call.1']
    #allocation10 [shape = 'u8[278528]{0}', space=vmem, size = 0x44000, scoped, tag = 'output window, operand 0']
    %10 = vsyncpa [#allocation3], 0
    %s11 = scalar_lea.sflag [#allocation3], 1
    %12 = vsyncpa %s11, 0
    %13 = vsyncpa [#allocation6], 0
    %14 = vsyncpa [#allocation9], 0
    %15 = vsyncpa [#allocation4], 0
    %s16 = scalar_lea.sflag [#allocation4], 1
    %17 = vsyncpa %s16, 0
    loop: start=0, step=1, limit=4
    $region2: #{tpu_custom_call.1} parent=1 // loop_pre_header
      _
    $region3: #{tpu_custom_call.1} parent=1 // loop_header
      %s19 = sphi 0, %s23
      %p20 = scmp.ge.s32.totalorder %s19, 4
      %s29 = sphi 0, %s31
      %s32 = sphi 0, %s29
      %s33 = sphi 0, %s32
      %s49 = sphi 0, %s33
      %s53 = sphi 0, %s53
      %s55 = sphi 0, %s53
      %s56 = sphi 0, %s55
      %s70 = sphi 0, %s56
      %s74 = sphi 0, %s74
      %s76 = sphi 0, %s74
      %s77 = sphi 0, %s76
      %s91 = sphi 0, %s77
      %s95 = sphi 0, %s95
      %s97 = sphi 0, %s95
      %s98 = sphi 0, %s97
      %s112 = sphi 0, %s98
      %s116 = sphi 0, %s116
      %s118 = sphi 0, %s116
      %s119 = sphi 0, %s118
      %s133 = sphi 0, %s119
      %s139 = sphi 0, %s141
      %s142 = sphi 0, %s139
      %s143 = sphi 0, %s142
      %s159 = sphi 0, %s143
    $region4: #{tpu_custom_call.1} parent=1 // loop_header_branch
      %22 = sbr.rel (%p20) target = $region8
    $region5: #{tpu_custom_call.1} parent=1 // loop_body
      %s24 = ssub.s32 %s19, 1
      %s25 = ssub.s32 %s19, 2
      %s26 = sadd.s32 %s19, 1
      %s27 = ssub.s32 %s19, %s26
      %p28 = scmp.eq.s32.totalorder %s27, 0
      %s30 = sadd.s32 %s29, 1
      %s31 = scalar_select %p28, %s29, %s30
      %p34 = pneg %p28
      %p35 = scmp.eq.s32.totalorder %s19, 1
      %p36 = por %p34, %p35
      %p37 = scmp.ne.s32.totalorder %s29, %s32
      %p38 = scmp.eq.s32.totalorder %s19, 0
      %p39 = por %p37, %p38
      %p40 = scmp.ne.s32.totalorder %s29, %s32
      %p41 = scmp.eq.s32.totalorder %s24, 1
      %p42 = por %p40, %p41
      %p43 = scmp.ne.s32.totalorder %s32, %s33
      %p44 = scmp.eq.s32.totalorder %s24, 0
      %p45 = por %p43, %p44
      %p46 = scmp.ne.s32.totalorder %s32, %s33
      %p47 = scmp.eq.s32.totalorder %s25, 1
      %p48 = por %p46, %p47
      %p50 = scmp.ne.s32.totalorder %s33, %s49
      %p51 = scmp.eq.s32.totalorder %s25, 0
      %p52 = por %p50, %p51
      %s54 = sadd.s32 %s53, 1
      %p57 = scmp.eq.s32.totalorder %s19, 1
      %p58 = scmp.ne.s32.totalorder %s53, %s55
      %p59 = scmp.eq.s32.totalorder %s19, 0
      %p60 = por %p58, %p59
      %p61 = scmp.ne.s32.totalorder %s53, %s55
      %p62 = scmp.eq.s32.totalorder %s24, 1
      %p63 = por %p61, %p62
      %p64 = scmp.ne.s32.totalorder %s55, %s56
      %p65 = scmp.eq.s32.totalorder %s24, 0
      %p66 = por %p64, %p65
      %p67 = scmp.ne.s32.totalorder %s55, %s56
      %p68 = scmp.eq.s32.totalorder %s25, 1
      %p69 = por %p67, %p68
      %p71 = scmp.ne.s32.totalorder %s56, %s70
      %p72 = scmp.eq.s32.totalorder %s25, 0
      %p73 = por %p71, %p72
      %s75 = sadd.s32 %s74, 1
      %p78 = scmp.eq.s32.totalorder %s19, 1
      %p79 = scmp.ne.s32.totalorder %s74, %s76
      %p80 = scmp.eq.s32.totalorder %s19, 0
      %p81 = por %p79, %p80
      %p82 = scmp.ne.s32.totalorder %s74, %s76
      %p83 = scmp.eq.s32.totalorder %s24, 1
      %p84 = por %p82, %p83
      %p85 = scmp.ne.s32.totalorder %s76, %s77
      %p86 = scmp.eq.s32.totalorder %s24, 0
      %p87 = por %p85, %p86
      %p88 = scmp.ne.s32.totalorder %s76, %s77
      %p89 = scmp.eq.s32.totalorder %s25, 1
      %p90 = por %p88, %p89
      %p92 = scmp.ne.s32.totalorder %s77, %s91
      %p93 = scmp.eq.s32.totalorder %s25, 0
      %p94 = por %p92, %p93
      %s96 = sadd.s32 %s95, 1
      %p99 = scmp.eq.s32.totalorder %s19, 1
      %p100 = scmp.ne.s32.totalorder %s95, %s97
      %p101 = scmp.eq.s32.totalorder %s19, 0
      %p102 = por %p100, %p101
      %p103 = scmp.ne.s32.totalorder %s95, %s97
      %p104 = scmp.eq.s32.totalorder %s24, 1
      %p105 = por %p103, %p104
      %p106 = scmp.ne.s32.totalorder %s97, %s98
      %p107 = scmp.eq.s32.totalorder %s24, 0
      %p108 = por %p106, %p107
      %p109 = scmp.ne.s32.totalorder %s97, %s98
      %p110 = scmp.eq.s32.totalorder %s25, 1
      %p111 = por %p109, %p110
      %p113 = scmp.ne.s32.totalorder %s98, %s112
      %p114 = scmp.eq.s32.totalorder %s25, 0
      %p115 = por %p113, %p114
      %s117 = sadd.s32 %s116, 1
      %p120 = scmp.eq.s32.totalorder %s19, 1
      %p121 = scmp.ne.s32.totalorder %s116, %s118
      %p122 = scmp.eq.s32.totalorder %s19, 0
      %p123 = por %p121, %p122
      %p124 = scmp.ne.s32.totalorder %s116, %s118
      %p125 = scmp.eq.s32.totalorder %s24, 1
      %p126 = por %p124, %p125
      %p127 = scmp.ne.s32.totalorder %s118, %s119
      %p128 = scmp.eq.s32.totalorder %s24, 0
      %p129 = por %p127, %p128
      %p130 = scmp.ne.s32.totalorder %s118, %s119
      %p131 = scmp.eq.s32.totalorder %s25, 1
      %p132 = por %p130, %p131
      %p134 = scmp.ne.s32.totalorder %s119, %s133
      %p135 = scmp.eq.s32.totalorder %s25, 0
      %p136 = por %p134, %p135
      %s137 = ssub.s32 %s19, %s26
      %p138 = scmp.eq.s32.totalorder %s137, 0
      %s140 = sadd.s32 %s139, 1
      %s141 = scalar_select %p138, %s139, %s140
      %p144 = pneg %p138
      %p145 = scmp.eq.s32.totalorder %s19, 1
      %p146 = por %p144, %p145
      %p147 = scmp.ne.s32.totalorder %s139, %s142
      %p148 = scmp.eq.s32.totalorder %s19, 0
      %p149 = por %p147, %p148
      %p150 = scmp.ne.s32.totalorder %s139, %s142
      %p151 = scmp.eq.s32.totalorder %s24, 1
      %p152 = por %p150, %p151
      %p153 = scmp.ne.s32.totalorder %s142, %s143
      %p154 = scmp.eq.s32.totalorder %s24, 0
      %p155 = por %p153, %p154
      %p156 = scmp.ne.s32.totalorder %s142, %s143
      %p157 = scmp.eq.s32.totalorder %s25, 1
      %p158 = por %p156, %p157
      %p160 = scmp.ne.s32.totalorder %s143, %s159
      %p161 = scmp.eq.s32.totalorder %s25, 0
      %p162 = por %p160, %p161
      %p163 = scmp.le.s32.totalorder 1, %s19
      %p164 = scmp.lt.s32.totalorder %s19, 3
      %p165 = pnand %p163, %p164
      %p166 = pneg %p165
      // Predicated region
      $region9: #{tpu_custom_call.1} parent=5 // pred_check
        _
      $region10: #{tpu_custom_call.1} parent=5 // pred_check_branch
        %168 = sbr.rel (%p165) target = $region12
      $region11: #{tpu_custom_call.1} parent=5 // pred_region
        %s169 = ssub.s32 %s19, 1
        // Predicated region
        $region13: #{tpu_custom_call.1} parent=11 // pred_check
          %p170 = pneg %p66
        $region14: #{tpu_custom_call.1} parent=11 // pred_check_branch
          %172 = sbr.rel (%p170) target = $region16
        $region15: #{tpu_custom_call.1} parent=11 // pred_region
          %s174 = ssub.s32 16384, 16384
          %175 = vsyncadd [#allocation6], %s174
          %s176 = sshll.u32 [#allocation5], 4
          %s177 = int_to_ptr.vmem [resolvable:$true] %s176
          %182 = dma.hbm_to_vmem [thread:$0]  %s1, 16384, %s177, [#allocation6], 512, 512, 32
        $region16: #{tpu_custom_call.1} parent=11 // pred_fallthru
          _
        // Predicated region
        $region17: #{tpu_custom_call.1} parent=11 // pred_check
          %p183 = pneg %p87
        $region18: #{tpu_custom_call.1} parent=11 // pred_check_branch
          %185 = sbr.rel (%p183) target = $region20
        $region19: #{tpu_custom_call.1} parent=11 // pred_region
          %s187 = ssub.s32 128, 128
          %188 = vsyncadd [#allocation6], %s187
          %s190 = sshll.u32 [#allocation7], 4
          %s191 = int_to_ptr.vmem [resolvable:$true] %s190
          %193 = dma.hbm_to_vmem [thread:$0]  %s2, 128, %s191, [#allocation6]
        $region20: #{tpu_custom_call.1} parent=11 // pred_fallthru
          _
        // Predicated region
        $region21: #{tpu_custom_call.1} parent=11 // pred_check
          %p194 = pneg %p108
        $region22: #{tpu_custom_call.1} parent=11 // pred_check_branch
          %196 = sbr.rel (%p194) target = $region24
        $region23: #{tpu_custom_call.1} parent=11 // pred_region
          %s198 = ssub.s32 16384, 16384
          %199 = vsyncadd [#allocation9], %s198
          %s200 = sshll.u32 [#allocation8], 4
          %s201 = int_to_ptr.vmem [resolvable:$true] %s200
          %206 = dma.hbm_to_vmem [thread:$0]  %s3, 16384, %s201, [#allocation9], 128, 128, 8
        $region24: #{tpu_custom_call.1} parent=11 // pred_fallthru
          _
        // Predicated region
        $region25: #{tpu_custom_call.1} parent=11 // pred_check
          %p207 = pneg %p129
        $region26: #{tpu_custom_call.1} parent=11 // pred_check_branch
          %209 = sbr.rel (%p207) target = $region28
        $region27: #{tpu_custom_call.1} parent=11 // pred_region
          _
        $region28: #{tpu_custom_call.1} parent=11 // pred_fallthru
          _
      $region12: #{tpu_custom_call.1} parent=5 // pred_fallthru
        _
      %p210 = scmp.lt.s32.totalorder %s19, 2
      // Predicated region
      $region29: #{tpu_custom_call.1} parent=5 // pred_check
        %p211 = pneg %p210
      $region30: #{tpu_custom_call.1} parent=5 // pred_check_branch
        %213 = sbr.rel (%p211) target = $region32
      $region31: #{tpu_custom_call.1} parent=5 // pred_region
        // Predicated region
        $region33: #{tpu_custom_call.1} parent=31 // pred_check
          %p214 = pneg %p39
        $region34: #{tpu_custom_call.1} parent=31 // pred_check_branch
          %216 = sbr.rel (%p214) target = $region36
        $region35: #{tpu_custom_call.1} parent=31 // pred_region
          %s217 = sand.u32 %s29, 1
          %s218 = scalar_lea.sflag [#allocation3], %s217
          %s219 = sand.u32 %s29, 1
          %s220 = smul.addr %s219, 272
          %s221 = scalar_lea.vmem [#allocation2], %s220
          %s222 = smul.u32 17, %s19
          %s224 = ssub.s32 4352, 4352
          %225 = vsyncadd %s218, %s224
          %s226 = smul.addr %s222, 2
          %s227 = smul.addr %s226, 128
          %s228 = scalar_lea.hbm %s0, %s227
          %s229 = sshll.u32 %s221, 4
          %s230 = int_to_ptr.vmem [resolvable:$true] %s229
          %235 = dma.hbm_to_vmem [thread:$0]  %s228, 4352, %s230, %s218, 256, 256, 16
        $region36: #{tpu_custom_call.1} parent=31 // pred_fallthru
          _
      $region32: #{tpu_custom_call.1} parent=5 // pred_fallthru
        _
      %p236 = scmp.le.s32.totalorder 1, %s19
      %p237 = scmp.lt.s32.totalorder %s19, 3
      %p238 = pnand %p236, %p237
      %p239 = pneg %p238
      // Predicated region
      $region37: #{tpu_custom_call.1} parent=5 // pred_check
        _
      $region38: #{tpu_custom_call.1} parent=5 // pred_check_branch
        %241 = sbr.rel (%p238) target = $region40
      $region39: #{tpu_custom_call.1} parent=5 // pred_region
        %s242 = ssub.s32 %s19, 1
        %s243 = sand.u32 %s32, 1
        %s244 = scalar_lea.sflag [#allocation3], %s243
        %s245 = sand.u32 %s32, 1
        %s246 = smul.addr %s245, 272
        %s247 = scalar_lea.vmem [#allocation2], %s246
        // Predicated region
        $region41: #{tpu_custom_call.1} parent=39 // pred_check
          %p248 = pneg %p45
        $region42: #{tpu_custom_call.1} parent=39 // pred_check_branch
          %250 = sbr.rel (%p248) target = $region44
        $region43: #{tpu_custom_call.1} parent=39 // pred_region
          %251 = dma.done %s244, 4352
        $region44: #{tpu_custom_call.1} parent=39 // pred_fallthru
          _
        // Predicated region
        $region45: #{tpu_custom_call.1} parent=39 // pred_check
          %p252 = pneg %p66
        $region46: #{tpu_custom_call.1} parent=39 // pred_check_branch
          %254 = sbr.rel (%p252) target = $region48
        $region47: #{tpu_custom_call.1} parent=39 // pred_region
          %255 = dma.done [#allocation6], 16384
        $region48: #{tpu_custom_call.1} parent=39 // pred_fallthru
          _
        // Predicated region
        $region49: #{tpu_custom_call.1} parent=39 // pred_check
          %p256 = pneg %p87
        $region50: #{tpu_custom_call.1} parent=39 // pred_check_branch
          %258 = sbr.rel (%p256) target = $region52
        $region51: #{tpu_custom_call.1} parent=39 // pred_region
          %259 = dma.done [#allocation6], 128
        $region52: #{tpu_custom_call.1} parent=39 // pred_fallthru
          _
        // Predicated region
        $region53: #{tpu_custom_call.1} parent=39 // pred_check
          %p260 = pneg %p108
        $region54: #{tpu_custom_call.1} parent=39 // pred_check_branch
          %262 = sbr.rel (%p260) target = $region56
        $region55: #{tpu_custom_call.1} parent=39 // pred_region
          %263 = dma.done [#allocation9], 16384
        $region56: #{tpu_custom_call.1} parent=39 // pred_fallthru
          _
        %s264 = sand.u32 %s32, 1
        %s265 = scalar_lea.sflag [#allocation3], %s264
        %s266 = sand.u32 %s32, 1
        %s267 = smul.addr %s266, 272
        %s268 = scalar_lea.vmem [#allocation2], %s267
        %p269 = pneg %p45
        %p270 = pneg %p42
        %p271 = pneg %p66
        %p272 = pneg %p63
        %p273 = pneg %p87
        %p274 = pneg %p84
        %p275 = pneg %p108
        %p276 = pneg %p105
        %p277 = pneg %p129
        %p278 = pneg %p126
        %p279 = pneg %p155
        %p280 = pneg %p152
        %s281 = sand.u32 %s142, 1
        %s282 = scalar_lea.sflag [#allocation4], %s281
        %s283 = sand.u32 %s142, 1
        %s284 = smul.addr %s283, 272
        %s285 = scalar_lea.vmem [#allocation10], %s284
        %s286 = smul.u32 17, %s24
        %s287 = smul.u32 17, %s24
        %v288 = vld [vmem:[%s247] sm:$0xff]
        %v289 = vld [vmem:[%s247 + $0x8] sm:$0xff]
        %v290 = vld [vmem:[%s247 + $0x10] sm:$0xff]
        %v291 = vld [vmem:[%s247 + $0x18] sm:$0xff]
        %v292 = vld [vmem:[%s247 + $0x20] sm:$0xff]
        %v293 = vld [vmem:[%s247 + $0x28] sm:$0xff]
        %v294 = vld [vmem:[%s247 + $0x30] sm:$0xff]
        %v295 = vld [vmem:[%s247 + $0x38] sm:$0xff]
        %v296 = vld [vmem:[%s247 + $0x40] sm:$0xff]
        %v297 = vld [vmem:[%s247 + $0x48] sm:$0xff]
        %v298 = vld [vmem:[%s247 + $0x50] sm:$0xff]
        %v299 = vld [vmem:[%s247 + $0x58] sm:$0xff]
        %v300 = vld [vmem:[%s247 + $0x60] sm:$0xff]
        %v301 = vld [vmem:[%s247 + $0x68] sm:$0xff]
        %v302 = vld [vmem:[%s247 + $0x70] sm:$0xff]
        %v303 = vld [vmem:[%s247 + $0x78] sm:$0xff]
        %v304 = vld [vmem:[%s247 + $0x80] sm:$0xff]
        %v305 = vld [vmem:[%s247 + $0x88] sm:$0xff]
        %v306 = vld [vmem:[%s247 + $0x90] sm:$0xff]
        %v307 = vld [vmem:[%s247 + $0x98] sm:$0xff]
        %v308 = vld [vmem:[%s247 + $0xa0] sm:$0xff]
        %v309 = vld [vmem:[%s247 + $0xa8] sm:$0xff]
        %v310 = vld [vmem:[%s247 + $0xb0] sm:$0xff]
        %v311 = vld [vmem:[%s247 + $0xb8] sm:$0xff]
        %v312 = vld [vmem:[%s247 + $0xc0] sm:$0xff]
        %v313 = vld [vmem:[%s247 + $0xc8] sm:$0xff]
        %v314 = vld [vmem:[%s247 + $0xd0] sm:$0xff]
        %v315 = vld [vmem:[%s247 + $0xd8] sm:$0xff]
        %v316 = vld [vmem:[%s247 + $0xe0] sm:$0xff]
        %v317 = vld [vmem:[%s247 + $0xe8] sm:$0xff]
        %v318 = vld [vmem:[%s247 + $0xf0] sm:$0xff]
        %v319 = vld [vmem:[%s247 + $0xf8] sm:$0xff]
        %v320 = vld [vmem:[%s247 + $0x100] sm:$0xff]
        %v321 = vld [vmem:[%s247 + $0x108] sm:$0xff]
        %v322 = vpack.c.bf16 %v290, %v288
        %v323 = vpack.c.bf16 %v291, %v289
        %v324 = vpack.c.bf16 %v294, %v292
        %v325 = vpack.c.bf16 %v295, %v293
        %v326 = vpack.c.bf16 %v298, %v296
        %v327 = vpack.c.bf16 %v299, %v297
        %v328 = vpack.c.bf16 %v302, %v300
        %v329 = vpack.c.bf16 %v303, %v301
        %v330 = vpack.c.bf16 %v306, %v304
        %v331 = vpack.c.bf16 %v307, %v305
        %v332 = vpack.c.bf16 %v310, %v308
        %v333 = vpack.c.bf16 %v311, %v309
        %v334 = vpack.c.bf16 %v314, %v312
        %v335 = vpack.c.bf16 %v315, %v313
        %v336 = vpack.c.bf16 %v318, %v316
        %v337 = vpack.c.bf16 %v319, %v317
        %v338 = vpack.c.bf16 %v320, %v320
        %v339 = vpack.c.bf16 %v321, %v321
        %v340 = vld [vmem:[#allocation5] sm:$0xff]
        %v341 = vld [vmem:[#allocation5 + $0x8] sm:$0xff]
        %v342 = vld [vmem:[#allocation5 + $0x20] sm:$0xff]
        %v343 = vld [vmem:[#allocation5 + $0x28] sm:$0xff]
        %v344 = vld [vmem:[#allocation5 + $0x40] sm:$0xff]
        %v345 = vld [vmem:[#allocation5 + $0x48] sm:$0xff]
        %v346 = vld [vmem:[#allocation5 + $0x60] sm:$0xff]
        %v347 = vld [vmem:[#allocation5 + $0x68] sm:$0xff]
        %v348 = vld [vmem:[#allocation5 + $0x80] sm:$0xff]
        %v349 = vld [vmem:[#allocation5 + $0x88] sm:$0xff]
        %v350 = vld [vmem:[#allocation5 + $0xa0] sm:$0xff]
        %v351 = vld [vmem:[#allocation5 + $0xa8] sm:$0xff]
        %v352 = vld [vmem:[#allocation5 + $0xc0] sm:$0xff]
        %v353 = vld [vmem:[#allocation5 + $0xc8] sm:$0xff]
        %v354 = vld [vmem:[#allocation5 + $0xe0] sm:$0xff]
        %v355 = vld [vmem:[#allocation5 + $0xe8] sm:$0xff]
        %v356 = vld [vmem:[#allocation5 + $0x100] sm:$0xff]
        %v357 = vld [vmem:[#allocation5 + $0x108] sm:$0xff]
        %v358 = vld [vmem:[#allocation5 + $0x120] sm:$0xff]
        %v359 = vld [vmem:[#allocation5 + $0x128] sm:$0xff]
        %v360 = vld [vmem:[#allocation5 + $0x140] sm:$0xff]
        %v361 = vld [vmem:[#allocation5 + $0x148] sm:$0xff]
        %v362 = vld [vmem:[#allocation5 + $0x160] sm:$0xff]
        %v363 = vld [vmem:[#allocation5 + $0x168] sm:$0xff]
        %v364 = vld [vmem:[#allocation5 + $0x180] sm:$0xff]
        %v365 = vld [vmem:[#allocation5 + $0x188] sm:$0xff]
        %v366 = vld [vmem:[#allocation5 + $0x1a0] sm:$0xff]
        %v367 = vld [vmem:[#allocation5 + $0x1a8] sm:$0xff]
        %v368 = vld [vmem:[#allocation5 + $0x1c0] sm:$0xff]
        %v369 = vld [vmem:[#allocation5 + $0x1c8] sm:$0xff]
        %v370 = vld [vmem:[#allocation5 + $0x1e0] sm:$0xff]
        %v371 = vld [vmem:[#allocation5 + $0x1e8] sm:$0xff]
        %v372 = vld [vmem:[#allocation5 + $0x200] sm:$0xff]
        %v373 = vld [vmem:[#allocation5 + $0x208] sm:$0xff]
        %v374 = vld [vmem:[#allocation5 + $0x220] sm:$0xff]
        %v375 = vld [vmem:[#allocation5 + $0x228] sm:$0xff]
        %v376 = vld [vmem:[#allocation5 + $0x240] sm:$0xff]
        %v377 = vld [vmem:[#allocation5 + $0x248] sm:$0xff]
        %v378 = vld [vmem:[#allocation5 + $0x260] sm:$0xff]
        %v379 = vld [vmem:[#allocation5 + $0x268] sm:$0xff]
        %v380 = vld [vmem:[#allocation5 + $0x280] sm:$0xff]
        %v381 = vld [vmem:[#allocation5 + $0x288] sm:$0xff]
        %v382 = vld [vmem:[#allocation5 + $0x2a0] sm:$0xff]
        %v383 = vld [vmem:[#allocation5 + $0x2a8] sm:$0xff]
        %v384 = vld [vmem:[#allocation5 + $0x2c0] sm:$0xff]
        %v385 = vld [vmem:[#allocation5 + $0x2c8] sm:$0xff]
        %v386 = vld [vmem:[#allocation5 + $0x2e0] sm:$0xff]
        %v387 = vld [vmem:[#allocation5 + $0x2e8] sm:$0xff]
        %v388 = vld [vmem:[#allocation5 + $0x300] sm:$0xff]
        %v389 = vld [vmem:[#allocation5 + $0x308] sm:$0xff]
        %v390 = vld [vmem:[#allocation5 + $0x320] sm:$0xff]
        %v391 = vld [vmem:[#allocation5 + $0x328] sm:$0xff]
        %v392 = vld [vmem:[#allocation5 + $0x340] sm:$0xff]
        %v393 = vld [vmem:[#allocation5 + $0x348] sm:$0xff]
        %v394 = vld [vmem:[#allocation5 + $0x360] sm:$0xff]
        %v395 = vld [vmem:[#allocation5 + $0x368] sm:$0xff]
        %v396 = vld [vmem:[#allocation5 + $0x380] sm:$0xff]
        %v397 = vld [vmem:[#allocation5 + $0x388] sm:$0xff]
        %v398 = vld [vmem:[#allocation5 + $0x3a0] sm:$0xff]
        %v399 = vld [vmem:[#allocation5 + $0x3a8] sm:$0xff]
        %v400 = vld [vmem:[#allocation5 + $0x3c0] sm:$0xff]
        %v401 = vld [vmem:[#allocation5 + $0x3c8] sm:$0xff]
        %v402 = vld [vmem:[#allocation5 + $0x3e0] sm:$0xff]
        %v403 = vld [vmem:[#allocation5 + $0x3e8] sm:$0xff]
        %v404 = vld [vmem:[#allocation7] sm:$0xf]
        %v406 = vlaneseq
        %v407 = vshrl.u32 %v406, 7
        %v408 = vsub.s32 0, %v407
        %v409 = vrot.slane %v404, %v408
        %v410 = vlaneseq
        %v411 = vshrl.u32 %v410, 7
        %v412 = vsub.s32 1, %v411
        %v413 = vrot.slane %v404, %v412
        %v414 = vlaneseq
        %v415 = vshrl.u32 %v414, 7
        %v416 = vsub.s32 2, %v415
        %v417 = vrot.slane %v404, %v416
        %v418 = vlaneseq
        %v419 = vshrl.u32 %v418, 7
        %v420 = vsub.s32 3, %v419
        %v421 = vrot.slane %v404, %v420
        %v490 = vunpack.c.l.b16 %v340
        %v491 = vunpack.c.h.b16 %v340
        %v492 = vunpack.c.l.b16 %v341
        %v493 = vunpack.c.h.b16 %v341
        %v494 = vunpack.c.l.b16 %v342
        %v495 = vunpack.c.h.b16 %v342
        %v496 = vunpack.c.l.b16 %v343
        %v497 = vunpack.c.h.b16 %v343
        %v498 = vunpack.c.l.b16 %v344
        %v499 = vunpack.c.h.b16 %v344
        %v500 = vunpack.c.l.b16 %v345
        %v501 = vunpack.c.h.b16 %v345
        %v502 = vunpack.c.l.b16 %v346
        %v503 = vunpack.c.h.b16 %v346
        %v504 = vunpack.c.l.b16 %v347
        %v505 = vunpack.c.h.b16 %v347
        %v506 = vunpack.c.l.b16 %v348
        %v507 = vunpack.c.h.b16 %v348
        %v508 = vunpack.c.l.b16 %v349
        %v509 = vunpack.c.h.b16 %v349
        %v510 = vunpack.c.l.b16 %v350
        %v511 = vunpack.c.h.b16 %v350
        %v512 = vunpack.c.l.b16 %v351
        %v513 = vunpack.c.h.b16 %v351
        %v514 = vunpack.c.l.b16 %v352
        %v515 = vunpack.c.h.b16 %v352
        %v516 = vunpack.c.l.b16 %v353
        %v517 = vunpack.c.h.b16 %v353
        %v518 = vunpack.c.l.b16 %v354
        %v519 = vunpack.c.h.b16 %v354
        %v520 = vunpack.c.l.b16 %v355
        %v521 = vunpack.c.h.b16 %v355
        %v522 = vunpack.c.l.b16 %v356
        %v523 = vunpack.c.h.b16 %v356
        %v524 = vunpack.c.l.b16 %v357
        %v525 = vunpack.c.h.b16 %v357
        %v526 = vunpack.c.l.b16 %v358
        %v527 = vunpack.c.h.b16 %v358
        %v528 = vunpack.c.l.b16 %v359
        %v529 = vunpack.c.h.b16 %v359
        %v530 = vunpack.c.l.b16 %v360
        %v531 = vunpack.c.h.b16 %v360
        %v532 = vunpack.c.l.b16 %v361
        %v533 = vunpack.c.h.b16 %v361
        %v534 = vunpack.c.l.b16 %v362
        %v535 = vunpack.c.h.b16 %v362
        %v536 = vunpack.c.l.b16 %v363
        %v537 = vunpack.c.h.b16 %v363
        %v538 = vunpack.c.l.b16 %v364
        %v539 = vunpack.c.h.b16 %v364
        %v540 = vunpack.c.l.b16 %v365
        %v541 = vunpack.c.h.b16 %v365
        %v542 = vunpack.c.l.b16 %v366
        %v543 = vunpack.c.h.b16 %v366
        %v544 = vunpack.c.l.b16 %v367
        %v545 = vunpack.c.h.b16 %v367
        %v546 = vunpack.c.l.b16 %v368
        %v547 = vunpack.c.h.b16 %v368
        %v548 = vunpack.c.l.b16 %v369
        %v549 = vunpack.c.h.b16 %v369
        %v550 = vunpack.c.l.b16 %v370
        %v551 = vunpack.c.h.b16 %v370
        %v552 = vunpack.c.l.b16 %v371
        %v553 = vunpack.c.h.b16 %v371
        %v554 = vunpack.c.l.b16 %v372
        %v555 = vunpack.c.h.b16 %v372
        %v556 = vunpack.c.l.b16 %v373
        %v557 = vunpack.c.h.b16 %v373
        %v558 = vunpack.c.l.b16 %v374
        %v559 = vunpack.c.h.b16 %v374
        %v560 = vunpack.c.l.b16 %v375
        %v561 = vunpack.c.h.b16 %v375
        %v562 = vunpack.c.l.b16 %v376
        %v563 = vunpack.c.h.b16 %v376
        %v564 = vunpack.c.l.b16 %v377
        %v565 = vunpack.c.h.b16 %v377
        %v566 = vunpack.c.l.b16 %v378
        %v567 = vunpack.c.h.b16 %v378
        %v568 = vunpack.c.l.b16 %v379
        %v569 = vunpack.c.h.b16 %v379
        %v570 = vunpack.c.l.b16 %v380
        %v571 = vunpack.c.h.b16 %v380
        %v572 = vunpack.c.l.b16 %v381
        %v573 = vunpack.c.h.b16 %v381
        %v574 = vunpack.c.l.b16 %v382
        %v575 = vunpack.c.h.b16 %v382
        %v576 = vunpack.c.l.b16 %v383
        %v577 = vunpack.c.h.b16 %v383
        %v578 = vunpack.c.l.b16 %v384
        %v579 = vunpack.c.h.b16 %v384
        %v580 = vunpack.c.l.b16 %v385
        %v581 = vunpack.c.h.b16 %v385
        %v582 = vunpack.c.l.b16 %v386
        %v583 = vunpack.c.h.b16 %v386
        %v584 = vunpack.c.l.b16 %v387
        %v585 = vunpack.c.h.b16 %v387
        %v586 = vunpack.c.l.b16 %v388
        %v587 = vunpack.c.h.b16 %v388
        %v588 = vunpack.c.l.b16 %v389
        %v589 = vunpack.c.h.b16 %v389
        %v590 = vunpack.c.l.b16 %v390
        %v591 = vunpack.c.h.b16 %v390
        %v592 = vunpack.c.l.b16 %v391
        %v593 = vunpack.c.h.b16 %v391
        %v594 = vunpack.c.l.b16 %v392
        %v595 = vunpack.c.h.b16 %v392
        %v596 = vunpack.c.l.b16 %v393
        %v597 = vunpack.c.h.b16 %v393
        %v598 = vunpack.c.l.b16 %v394
        %v599 = vunpack.c.h.b16 %v394
        %v600 = vunpack.c.l.b16 %v395
        %v601 = vunpack.c.h.b16 %v395
        %v602 = vunpack.c.l.b16 %v396
        %v603 = vunpack.c.h.b16 %v396
        %v604 = vunpack.c.l.b16 %v397
        %v605 = vunpack.c.h.b16 %v397
        %v606 = vunpack.c.l.b16 %v398
        %v607 = vunpack.c.h.b16 %v398
        %v608 = vunpack.c.l.b16 %v399
        %v609 = vunpack.c.h.b16 %v399
        %v610 = vunpack.c.l.b16 %v400
        %v611 = vunpack.c.h.b16 %v400
        %v612 = vunpack.c.l.b16 %v401
        %v613 = vunpack.c.h.b16 %v401
        %v614 = vunpack.c.l.b16 %v402
        %v615 = vunpack.c.h.b16 %v402
        %v616 = vunpack.c.l.b16 %v403
        %v617 = vunpack.c.h.b16 %v403
        %v618 = vpack.c.b16 %v494, %v490
        %v619 = vpack.c.b16 %v495, %v491
        %v620 = vpack.c.b16 %v496, %v492
        %v621 = vpack.c.b16 %v497, %v493
        %v622 = vpack.c.b16 %v502, %v498
        %v623 = vpack.c.b16 %v503, %v499
        %v624 = vpack.c.b16 %v504, %v500
        %v625 = vpack.c.b16 %v505, %v501
        %v626 = vpack.c.b16 %v510, %v506
        %v627 = vpack.c.b16 %v511, %v507
        %v628 = vpack.c.b16 %v512, %v508
        %v629 = vpack.c.b16 %v513, %v509
        %v630 = vpack.c.b16 %v518, %v514
        %v631 = vpack.c.b16 %v519, %v515
        %v632 = vpack.c.b16 %v520, %v516
        %v633 = vpack.c.b16 %v521, %v517
        %v634 = vpack.c.b16 %v526, %v522
        %v635 = vpack.c.b16 %v527, %v523
        %v636 = vpack.c.b16 %v528, %v524
        %v637 = vpack.c.b16 %v529, %v525
        %v638 = vpack.c.b16 %v534, %v530
        %v639 = vpack.c.b16 %v535, %v531
        %v640 = vpack.c.b16 %v536, %v532
        %v641 = vpack.c.b16 %v537, %v533
        %v642 = vpack.c.b16 %v542, %v538
        %v643 = vpack.c.b16 %v543, %v539
        %v644 = vpack.c.b16 %v544, %v540
        %v645 = vpack.c.b16 %v545, %v541
        %v646 = vpack.c.b16 %v550, %v546
        %v647 = vpack.c.b16 %v551, %v547
        %v648 = vpack.c.b16 %v552, %v548
        %v649 = vpack.c.b16 %v553, %v549
        %v650 = vpack.c.b16 %v558, %v554
        %v651 = vpack.c.b16 %v559, %v555
        %v652 = vpack.c.b16 %v560, %v556
        %v653 = vpack.c.b16 %v561, %v557
        %v654 = vpack.c.b16 %v566, %v562
        %v655 = vpack.c.b16 %v567, %v563
        %v656 = vpack.c.b16 %v568, %v564
        %v657 = vpack.c.b16 %v569, %v565
        %v658 = vpack.c.b16 %v574, %v570
        %v659 = vpack.c.b16 %v575, %v571
        %v660 = vpack.c.b16 %v576, %v572
        %v661 = vpack.c.b16 %v577, %v573
        %v662 = vpack.c.b16 %v582, %v578
        %v663 = vpack.c.b16 %v583, %v579
        %v664 = vpack.c.b16 %v584, %v580
        %v665 = vpack.c.b16 %v585, %v581
        %v666 = vpack.c.b16 %v590, %v586
        %v667 = vpack.c.b16 %v591, %v587
        %v668 = vpack.c.b16 %v592, %v588
        %v669 = vpack.c.b16 %v593, %v589
        %v670 = vpack.c.b16 %v598, %v594
        %v671 = vpack.c.b16 %v599, %v595
        %v672 = vpack.c.b16 %v600, %v596
        %v673 = vpack.c.b16 %v601, %v597
        %v674 = vpack.c.b16 %v606, %v602
        %v675 = vpack.c.b16 %v607, %v603
        %v676 = vpack.c.b16 %v608, %v604
        %v677 = vpack.c.b16 %v609, %v605
        %v678 = vpack.c.b16 %v614, %v610
        %v679 = vpack.c.b16 %v615, %v611
        %v680 = vpack.c.b16 %v616, %v612
        %v681 = vpack.c.b16 %v617, %v613
        %746 = vmatprep.subr.bf16.mxu0 %v619
        %747 = vmatpush1.bf16.msra.mxu0 %v618
        %748 = vmatprep.subr.bf16.mxu0 %v623
        %749 = vmatpush1.bf16.msra.mxu0 %v622
        %750 = vmatprep.subr.bf16.mxu0 %v627
        %751 = vmatpush1.bf16.msra.mxu0 %v626
        %752 = vmatprep.subr.bf16.mxu0 %v631
        %753 = vmatpush1.bf16.msra.mxu0 %v630
        %754 = vmatprep.subr.bf16.mxu0 %v635
        %755 = vmatpush1.bf16.msra.mxu0 %v634
        %756 = vmatprep.subr.bf16.mxu0 %v639
        %757 = vmatpush1.bf16.msra.mxu0 %v638
        %758 = vmatprep.subr.bf16.mxu0 %v643
        %759 = vmatpush1.bf16.msra.mxu0 %v642
        %760 = vmatprep.subr.bf16.mxu0 %v647
        %761 = vmatpush1.bf16.msra.mxu0 %v646
        %762 = vmatprep.subr.bf16.mxu0 %v651
        %763 = vmatpush1.bf16.msra.mxu0 %v650
        %764 = vmatprep.subr.bf16.mxu0 %v655
        %765 = vmatpush1.bf16.msra.mxu0 %v654
        %766 = vmatprep.subr.bf16.mxu0 %v659
        %767 = vmatpush1.bf16.msra.mxu0 %v658
        %768 = vmatprep.subr.bf16.mxu0 %v663
        %769 = vmatpush1.bf16.msra.mxu0 %v662
        %770 = vmatprep.subr.bf16.mxu0 %v667
        %771 = vmatpush1.bf16.msra.mxu0 %v666
        %772 = vmatprep.subr.bf16.mxu0 %v671
        %773 = vmatpush1.bf16.msra.mxu0 %v670
        %774 = vmatprep.subr.bf16.mxu0 %v675
        %775 = vmatpush1.bf16.msra.mxu0 %v674
        %776 = vmatprep.subr.bf16.mxu0 %v679
        %777 = vmatpush1.bf16.msra.mxu0 %v678
        %778 = vmatprep.mubr.bf16.mxu0 %v323
        %779 = vmatmul.mubr.bf16.gmra.mrb[0].mxu0 %v322
        %v780 = vpop.f32.mrb[0].mxu0
        %v781 = vadd.f32 %v409, %v780
        %v782 = vpop.f32.mrb[0].mxu0
        %v783 = vadd.f32 %v413, %v782
        %v784 = vpop.f32.mrb[0].mxu0
        %v785 = vadd.f32 %v409, %v784
        %v786 = vpop.f32.mrb[0].mxu0
        %v787 = vadd.f32 %v413, %v786
        %788 = vmatprep.mubr.bf16.mxu0 %v325
        %789 = vmatmul.mubr.bf16.gmra.mrb[0].mxu0 %v324
        %v790 = vpop.f32.mrb[0].mxu0
        %v791 = vadd.f32 %v409, %v790
        %v792 = vpop.f32.mrb[0].mxu0
        %v793 = vadd.f32 %v413, %v792
        %v794 = vpop.f32.mrb[0].mxu0
        %v795 = vadd.f32 %v409, %v794
        %v796 = vpop.f32.mrb[0].mxu0
        %v797 = vadd.f32 %v413, %v796
        %798 = vmatprep.mubr.bf16.mxu0 %v327
        %799 = vmatmul.mubr.bf16.gmra.mrb[0].mxu0 %v326
        %v800 = vpop.f32.mrb[0].mxu0
        %v801 = vadd.f32 %v409, %v800
        %v802 = vpop.f32.mrb[0].mxu0
        %v803 = vadd.f32 %v413, %v802
        %v804 = vpop.f32.mrb[0].mxu0
        %v805 = vadd.f32 %v409, %v804
        %v806 = vpop.f32.mrb[0].mxu0
        %v807 = vadd.f32 %v413, %v806
        %808 = vmatprep.mubr.bf16.mxu0 %v329
        %809 = vmatmul.mubr.bf16.gmra.mrb[0].mxu0 %v328
        %v810 = vpop.f32.mrb[0].mxu0
        %v811 = vadd.f32 %v409, %v810
        %v812 = vpop.f32.mrb[0].mxu0
        %v813 = vadd.f32 %v413, %v812
        %v814 = vpop.f32.mrb[0].mxu0
        %v815 = vadd.f32 %v409, %v814
        %v816 = vpop.f32.mrb[0].mxu0
        %v817 = vadd.f32 %v413, %v816
        %818 = vmatprep.mubr.bf16.mxu0 %v331
        %819 = vmatmul.mubr.bf16.gmra.mrb[0].mxu0 %v330
        %v820 = vpop.f32.mrb[0].mxu0
        %v821 = vadd.f32 %v409, %v820
        %v822 = vpop.f32.mrb[0].mxu0
        %v823 = vadd.f32 %v413, %v822
        %v824 = vpop.f32.mrb[0].mxu0
        %v825 = vadd.f32 %v409, %v824
        %v826 = vpop.f32.mrb[0].mxu0
        %v827 = vadd.f32 %v413, %v826
        %828 = vmatprep.mubr.bf16.mxu0 %v333
        %829 = vmatmul.mubr.bf16.gmra.mrb[0].mxu0 %v332
        %v830 = vpop.f32.mrb[0].mxu0
        %v831 = vadd.f32 %v409, %v830
        %v832 = vpop.f32.mrb[0].mxu0
        %v833 = vadd.f32 %v413, %v832
        %v834 = vpop.f32.mrb[0].mxu0
        %v835 = vadd.f32 %v409, %v834
        %v836 = vpop.f32.mrb[0].mxu0
        %v837 = vadd.f32 %v413, %v836
        %838 = vmatprep.mubr.bf16.mxu0 %v335
        %839 = vmatmul.mubr.bf16.gmra.mrb[0].mxu0 %v334
        %v840 = vpop.f32.mrb[0].mxu0
        %v841 = vadd.f32 %v409, %v840
        %v842 = vpop.f32.mrb[0].mxu0
        %v843 = vadd.f32 %v413, %v842
        %v844 = vpop.f32.mrb[0].mxu0
        %v845 = vadd.f32 %v409, %v844
        %v846 = vpop.f32.mrb[0].mxu0
        %v847 = vadd.f32 %v413, %v846
        %848 = vmatprep.mubr.bf16.mxu0 %v337
        %849 = vmatmul.mubr.bf16.gmra.mrb[0].mxu0 %v336
        %v850 = vpop.f32.mrb[0].mxu0
        %v851 = vadd.f32 %v409, %v850
        %v852 = vpop.f32.mrb[0].mxu0
        %v853 = vadd.f32 %v413, %v852
        %v854 = vpop.f32.mrb[0].mxu0
        %v855 = vadd.f32 %v409, %v854
        %v856 = vpop.f32.mrb[0].mxu0
        %v857 = vadd.f32 %v413, %v856
        %858 = vmatprep.mubr.bf16.mxu0 %v339
        %859 = vmatmul.mubr.bf16.gmra.mrb[0].mxu0 %v338
        %v860 = vpop.f32.mrb[0].mxu0
        %v861 = vadd.f32 %v409, %v860
        %v862 = vpop.f32.mrb[0].mxu0
        %v863 = vadd.f32 %v413, %v862
        %v864 = vpop.f32.mrb[0].mxu0
        %v865 = vpop.f32.mrb[0].mxu0
        %866 = vdwg.mxu0
        %867 = vmatprep.subr.bf16.mxu0 %v621
        %868 = vmatpush1.bf16.msra.mxu0 %v620
        %869 = vmatprep.subr.bf16.mxu0 %v625
        %870 = vmatpush1.bf16.msra.mxu0 %v624
        %871 = vmatprep.subr.bf16.mxu0 %v629
        %872 = vmatpush1.bf16.msra.mxu0 %v628
        %873 = vmatprep.subr.bf16.mxu0 %v633
        %874 = vmatpush1.bf16.msra.mxu0 %v632
        %875 = vmatprep.subr.bf16.mxu0 %v637
        %876 = vmatpush1.bf16.msra.mxu0 %v636
        %877 = vmatprep.subr.bf16.mxu0 %v641
        %878 = vmatpush1.bf16.msra.mxu0 %v640
        %879 = vmatprep.subr.bf16.mxu0 %v645
        %880 = vmatpush1.bf16.msra.mxu0 %v644
        %881 = vmatprep.subr.bf16.mxu0 %v649
        %882 = vmatpush1.bf16.msra.mxu0 %v648
        %883 = vmatprep.subr.bf16.mxu0 %v653
        %884 = vmatpush1.bf16.msra.mxu0 %v652
        %885 = vmatprep.subr.bf16.mxu0 %v657
        %886 = vmatpush1.bf16.msra.mxu0 %v656
        %887 = vmatprep.subr.bf16.mxu0 %v661
        %888 = vmatpush1.bf16.msra.mxu0 %v660
        %889 = vmatprep.subr.bf16.mxu0 %v665
        %890 = vmatpush1.bf16.msra.mxu0 %v664
        %891 = vmatprep.subr.bf16.mxu0 %v669
        %892 = vmatpush1.bf16.msra.mxu0 %v668
        %893 = vmatprep.subr.bf16.mxu0 %v673
        %894 = vmatpush1.bf16.msra.mxu0 %v672
        %895 = vmatprep.subr.bf16.mxu0 %v677
        %896 = vmatpush1.bf16.msra.mxu0 %v676
        %897 = vmatprep.subr.bf16.mxu0 %v681
        %898 = vmatpush1.bf16.msra.mxu0 %v680
        %899 = vmatprep.mubr.bf16.mxu0 %v323
        %900 = vmatmul.mubr.bf16.gmra.mrb[0].mxu0 %v322
        %v901 = vpop.f32.mrb[0].mxu0
        %v902 = vadd.f32 %v417, %v901
        %v903 = vpop.f32.mrb[0].mxu0
        %v904 = vadd.f32 %v421, %v903
        %v905 = vpop.f32.mrb[0].mxu0
        %v906 = vadd.f32 %v417, %v905
        %v907 = vpop.f32.mrb[0].mxu0
        %v908 = vadd.f32 %v421, %v907
        %909 = vmatprep.mubr.bf16.mxu0 %v325
        %910 = vmatmul.mubr.bf16.gmra.mrb[0].mxu0 %v324
        %v911 = vpop.f32.mrb[0].mxu0
        %v912 = vadd.f32 %v417, %v911
        %v913 = vpop.f32.mrb[0].mxu0
        %v914 = vadd.f32 %v421, %v913
        %v915 = vpop.f32.mrb[0].mxu0
        %v916 = vadd.f32 %v417, %v915
        %v917 = vpop.f32.mrb[0].mxu0
        %v918 = vadd.f32 %v421, %v917
        %919 = vmatprep.mubr.bf16.mxu0 %v327
        %920 = vmatmul.mubr.bf16.gmra.mrb[0].mxu0 %v326
        %v921 = vpop.f32.mrb[0].mxu0
        %v922 = vadd.f32 %v417, %v921
        %v923 = vpop.f32.mrb[0].mxu0
        %v924 = vadd.f32 %v421, %v923
        %v925 = vpop.f32.mrb[0].mxu0
        %v926 = vadd.f32 %v417, %v925
        %v927 = vpop.f32.mrb[0].mxu0
        %v928 = vadd.f32 %v421, %v927
        %929 = vmatprep.mubr.bf16.mxu0 %v329
        %930 = vmatmul.mubr.bf16.gmra.mrb[0].mxu0 %v328
        %v931 = vpop.f32.mrb[0].mxu0
        %v932 = vadd.f32 %v417, %v931
        %v933 = vpop.f32.mrb[0].mxu0
        %v934 = vadd.f32 %v421, %v933
        %v935 = vpop.f32.mrb[0].mxu0
        %v936 = vadd.f32 %v417, %v935
        %v937 = vpop.f32.mrb[0].mxu0
        %v938 = vadd.f32 %v421, %v937
        %939 = vmatprep.mubr.bf16.mxu0 %v331
        %940 = vmatmul.mubr.bf16.gmra.mrb[0].mxu0 %v330
        %v941 = vpop.f32.mrb[0].mxu0
        %v942 = vadd.f32 %v417, %v941
        %v943 = vpop.f32.mrb[0].mxu0
        %v944 = vadd.f32 %v421, %v943
        %v945 = vpop.f32.mrb[0].mxu0
        %v946 = vadd.f32 %v417, %v945
        %v947 = vpop.f32.mrb[0].mxu0
        %v948 = vadd.f32 %v421, %v947
        %949 = vmatprep.mubr.bf16.mxu0 %v333
        %950 = vmatmul.mubr.bf16.gmra.mrb[0].mxu0 %v332
        %v951 = vpop.f32.mrb[0].mxu0
        %v952 = vadd.f32 %v417, %v951
        %v953 = vpop.f32.mrb[0].mxu0
        %v954 = vadd.f32 %v421, %v953
        %v955 = vpop.f32.mrb[0].mxu0
        %v956 = vadd.f32 %v417, %v955
        %v957 = vpop.f32.mrb[0].mxu0
        %v958 = vadd.f32 %v421, %v957
        %959 = vmatprep.mubr.bf16.mxu0 %v335
        %960 = vmatmul.mubr.bf16.gmra.mrb[0].mxu0 %v334
        %v961 = vpop.f32.mrb[0].mxu0
        %v962 = vadd.f32 %v417, %v961
        %v963 = vpop.f32.mrb[0].mxu0
        %v964 = vadd.f32 %v421, %v963
        %v965 = vpop.f32.mrb[0].mxu0
        %v966 = vadd.f32 %v417, %v965
        %v967 = vpop.f32.mrb[0].mxu0
        %v968 = vadd.f32 %v421, %v967
        %969 = vmatprep.mubr.bf16.mxu0 %v337
        %970 = vmatmul.mubr.bf16.gmra.mrb[0].mxu0 %v336
        %v971 = vpop.f32.mrb[0].mxu0
        %v972 = vadd.f32 %v417, %v971
        %v973 = vpop.f32.mrb[0].mxu0
        %v974 = vadd.f32 %v421, %v973
        %v975 = vpop.f32.mrb[0].mxu0
        %v976 = vadd.f32 %v417, %v975
        %v977 = vpop.f32.mrb[0].mxu0
        %v978 = vadd.f32 %v421, %v977
        %979 = vmatprep.mubr.bf16.mxu0 %v339
        %980 = vmatmul.mubr.bf16.gmra.mrb[0].mxu0 %v338
        %v981 = vpop.f32.mrb[0].mxu0
        %v982 = vadd.f32 %v417, %v981
        %v983 = vpop.f32.mrb[0].mxu0
        %v984 = vadd.f32 %v421, %v983
        %v985 = vpop.f32.mrb[0].mxu0
        %v986 = vpop.f32.mrb[0].mxu0
        %987 = vdwg.mxu0
        %v988 = vmul.f32 %v781, %v781
        %v989 = vmul.f32 %v783, %v783
        %v990 = vmul.f32 %v902, %v902
        %v991 = vmul.f32 %v904, %v904
        %v992 = vmul.f32 %v785, %v785
        %v993 = vmul.f32 %v787, %v787
        %v994 = vmul.f32 %v906, %v906
        %v995 = vmul.f32 %v908, %v908
        %v996 = vmul.f32 %v791, %v791
        %v997 = vmul.f32 %v793, %v793
        %v998 = vmul.f32 %v912, %v912
        %v999 = vmul.f32 %v914, %v914
        %v1000 = vmul.f32 %v795, %v795
        %v1001 = vmul.f32 %v797, %v797
        %v1002 = vmul.f32 %v916, %v916
        %v1003 = vmul.f32 %v918, %v918
        %v1004 = vmul.f32 %v801, %v801
        %v1005 = vmul.f32 %v803, %v803
        %v1006 = vmul.f32 %v922, %v922
        %v1007 = vmul.f32 %v924, %v924
        %v1008 = vmul.f32 %v805, %v805
        %v1009 = vmul.f32 %v807, %v807
        %v1010 = vmul.f32 %v926, %v926
        %v1011 = vmul.f32 %v928, %v928
        %v1012 = vmul.f32 %v811, %v811
        %v1013 = vmul.f32 %v813, %v813
        %v1014 = vmul.f32 %v932, %v932
        %v1015 = vmul.f32 %v934, %v934
        %v1016 = vmul.f32 %v815, %v815
        %v1017 = vmul.f32 %v817, %v817
        %v1018 = vmul.f32 %v936, %v936
        %v1019 = vmul.f32 %v938, %v938
        %v1020 = vmul.f32 %v821, %v821
        %v1021 = vmul.f32 %v823, %v823
        %v1022 = vmul.f32 %v942, %v942
        %v1023 = vmul.f32 %v944, %v944
        %v1024 = vmul.f32 %v825, %v825
        %v1025 = vmul.f32 %v827, %v827
        %v1026 = vmul.f32 %v946, %v946
        %v1027 = vmul.f32 %v948, %v948
        %v1028 = vmul.f32 %v831, %v831
        %v1029 = vmul.f32 %v833, %v833
        %v1030 = vmul.f32 %v952, %v952
        %v1031 = vmul.f32 %v954, %v954
        %v1032 = vmul.f32 %v835, %v835
        %v1033 = vmul.f32 %v837, %v837
        %v1034 = vmul.f32 %v956, %v956
        %v1035 = vmul.f32 %v958, %v958
        %v1036 = vmul.f32 %v841, %v841
        %v1037 = vmul.f32 %v843, %v843
        %v1038 = vmul.f32 %v962, %v962
        %v1039 = vmul.f32 %v964, %v964
        %v1040 = vmul.f32 %v845, %v845
        %v1041 = vmul.f32 %v847, %v847
        %v1042 = vmul.f32 %v966, %v966
        %v1043 = vmul.f32 %v968, %v968
        %v1044 = vmul.f32 %v851, %v851
        %v1045 = vmul.f32 %v853, %v853
        %v1046 = vmul.f32 %v972, %v972
        %v1047 = vmul.f32 %v974, %v974
        %v1048 = vmul.f32 %v855, %v855
        %v1049 = vmul.f32 %v857, %v857
        %v1050 = vmul.f32 %v976, %v976
        %v1051 = vmul.f32 %v978, %v978
        %v1052 = vmul.f32 %v861, %v861
        %v1053 = vmul.f32 %v863, %v863
        %v1054 = vmul.f32 %v982, %v982
        %v1055 = vmul.f32 %v984, %v984
        %v1056 = vmul.f32 %v781, %v988
        %v1057 = vmul.f32 %v783, %v989
        %v1058 = vmul.f32 %v902, %v990
        %v1059 = vmul.f32 %v904, %v991
        %v1060 = vmul.f32 %v785, %v992
        %v1061 = vmul.f32 %v787, %v993
        %v1062 = vmul.f32 %v906, %v994
        %v1063 = vmul.f32 %v908, %v995
        %v1064 = vmul.f32 %v791, %v996
        %v1065 = vmul.f32 %v793, %v997
        %v1066 = vmul.f32 %v912, %v998
        %v1067 = vmul.f32 %v914, %v999
        %v1068 = vmul.f32 %v795, %v1000
        %v1069 = vmul.f32 %v797, %v1001
        %v1070 = vmul.f32 %v916, %v1002
        %v1071 = vmul.f32 %v918, %v1003
        %v1072 = vmul.f32 %v801, %v1004
        %v1073 = vmul.f32 %v803, %v1005
        %v1074 = vmul.f32 %v922, %v1006
        %v1075 = vmul.f32 %v924, %v1007
        %v1076 = vmul.f32 %v805, %v1008
        %v1077 = vmul.f32 %v807, %v1009
        %v1078 = vmul.f32 %v926, %v1010
        %v1079 = vmul.f32 %v928, %v1011
        %v1080 = vmul.f32 %v811, %v1012
        %v1081 = vmul.f32 %v813, %v1013
        %v1082 = vmul.f32 %v932, %v1014
        %v1083 = vmul.f32 %v934, %v1015
        %v1084 = vmul.f32 %v815, %v1016
        %v1085 = vmul.f32 %v817, %v1017
        %v1086 = vmul.f32 %v936, %v1018
        %v1087 = vmul.f32 %v938, %v1019
        %v1088 = vmul.f32 %v821, %v1020
        %v1089 = vmul.f32 %v823, %v1021
        %v1090 = vmul.f32 %v942, %v1022
        %v1091 = vmul.f32 %v944, %v1023
        %v1092 = vmul.f32 %v825, %v1024
        %v1093 = vmul.f32 %v827, %v1025
        %v1094 = vmul.f32 %v946, %v1026
        %v1095 = vmul.f32 %v948, %v1027
        %v1096 = vmul.f32 %v831, %v1028
        %v1097 = vmul.f32 %v833, %v1029
        %v1098 = vmul.f32 %v952, %v1030
        %v1099 = vmul.f32 %v954, %v1031
        %v1100 = vmul.f32 %v835, %v1032
        %v1101 = vmul.f32 %v837, %v1033
        %v1102 = vmul.f32 %v956, %v1034
        %v1103 = vmul.f32 %v958, %v1035
        %v1104 = vmul.f32 %v841, %v1036
        %v1105 = vmul.f32 %v843, %v1037
        %v1106 = vmul.f32 %v962, %v1038
        %v1107 = vmul.f32 %v964, %v1039
        %v1108 = vmul.f32 %v845, %v1040
        %v1109 = vmul.f32 %v847, %v1041
        %v1110 = vmul.f32 %v966, %v1042
        %v1111 = vmul.f32 %v968, %v1043
        %v1112 = vmul.f32 %v851, %v1044
        %v1113 = vmul.f32 %v853, %v1045
        %v1114 = vmul.f32 %v972, %v1046
        %v1115 = vmul.f32 %v974, %v1047
        %v1116 = vmul.f32 %v855, %v1048
        %v1117 = vmul.f32 %v857, %v1049
        %v1118 = vmul.f32 %v976, %v1050
        %v1119 = vmul.f32 %v978, %v1051
        %v1120 = vmul.f32 %v861, %v1052
        %v1121 = vmul.f32 %v863, %v1053
        %v1122 = vmul.f32 %v982, %v1054
        %v1123 = vmul.f32 %v984, %v1055
        %v1124 = vmul.f32 %v1056, 0.044715
        %v1125 = vmul.f32 %v1057, 0.044715
        %v1126 = vmul.f32 %v1058, 0.044715
        %v1127 = vmul.f32 %v1059, 0.044715
        %v1128 = vmul.f32 %v1060, 0.044715
        %v1129 = vmul.f32 %v1061, 0.044715
        %v1130 = vmul.f32 %v1062, 0.044715
        %v1131 = vmul.f32 %v1063, 0.044715
        %v1132 = vmul.f32 %v1064, 0.044715
        %v1133 = vmul.f32 %v1065, 0.044715
        %v1134 = vmul.f32 %v1066, 0.044715
        %v1135 = vmul.f32 %v1067, 0.044715
        %v1136 = vmul.f32 %v1068, 0.044715
        %v1137 = vmul.f32 %v1069, 0.044715
        %v1138 = vmul.f32 %v1070, 0.044715
        %v1139 = vmul.f32 %v1071, 0.044715
        %v1140 = vmul.f32 %v1072, 0.044715
        %v1141 = vmul.f32 %v1073, 0.044715
        %v1142 = vmul.f32 %v1074, 0.044715
        %v1143 = vmul.f32 %v1075, 0.044715
        %v1144 = vmul.f32 %v1076, 0.044715
        %v1145 = vmul.f32 %v1077, 0.044715
        %v1146 = vmul.f32 %v1078, 0.044715
        %v1147 = vmul.f32 %v1079, 0.044715
        %v1148 = vmul.f32 %v1080, 0.044715
        %v1149 = vmul.f32 %v1081, 0.044715
        %v1150 = vmul.f32 %v1082, 0.044715
        %v1151 = vmul.f32 %v1083, 0.044715
        %v1152 = vmul.f32 %v1084, 0.044715
        %v1153 = vmul.f32 %v1085, 0.044715
        %v1154 = vmul.f32 %v1086, 0.044715
        %v1155 = vmul.f32 %v1087, 0.044715
        %v1156 = vmul.f32 %v1088, 0.044715
        %v1157 = vmul.f32 %v1089, 0.044715
        %v1158 = vmul.f32 %v1090, 0.044715
        %v1159 = vmul.f32 %v1091, 0.044715
        %v1160 = vmul.f32 %v1092, 0.044715
        %v1161 = vmul.f32 %v1093, 0.044715
        %v1162 = vmul.f32 %v1094, 0.044715
        %v1163 = vmul.f32 %v1095, 0.044715
        %v1164 = vmul.f32 %v1096, 0.044715
        %v1165 = vmul.f32 %v1097, 0.044715
        %v1166 = vmul.f32 %v1098, 0.044715
        %v1167 = vmul.f32 %v1099, 0.044715
        %v1168 = vmul.f32 %v1100, 0.044715
        %v1169 = vmul.f32 %v1101, 0.044715
        %v1170 = vmul.f32 %v1102, 0.044715
        %v1171 = vmul.f32 %v1103, 0.044715
        %v1172 = vmul.f32 %v1104, 0.044715
        %v1173 = vmul.f32 %v1105, 0.044715
        %v1174 = vmul.f32 %v1106, 0.044715
        %v1175 = vmul.f32 %v1107, 0.044715
        %v1176 = vmul.f32 %v1108, 0.044715
        %v1177 = vmul.f32 %v1109, 0.044715
        %v1178 = vmul.f32 %v1110, 0.044715
        %v1179 = vmul.f32 %v1111, 0.044715
        %v1180 = vmul.f32 %v1112, 0.044715
        %v1181 = vmul.f32 %v1113, 0.044715
        %v1182 = vmul.f32 %v1114, 0.044715
        %v1183 = vmul.f32 %v1115, 0.044715
        %v1184 = vmul.f32 %v1116, 0.044715
        %v1185 = vmul.f32 %v1117, 0.044715
        %v1186 = vmul.f32 %v1118, 0.044715
        %v1187 = vmul.f32 %v1119, 0.044715
        %v1188 = vmul.f32 %v1120, 0.044715
        %v1189 = vmul.f32 %v1121, 0.044715
        %v1190 = vmul.f32 %v1122, 0.044715
        %v1191 = vmul.f32 %v1123, 0.044715
        %v1192 = vadd.f32 %v781, %v1124
        %v1193 = vadd.f32 %v783, %v1125
        %v1194 = vadd.f32 %v902, %v1126
        %v1195 = vadd.f32 %v904, %v1127
        %v1196 = vadd.f32 %v785, %v1128
        %v1197 = vadd.f32 %v787, %v1129
        %v1198 = vadd.f32 %v906, %v1130
        %v1199 = vadd.f32 %v908, %v1131
        %v1200 = vadd.f32 %v791, %v1132
        %v1201 = vadd.f32 %v793, %v1133
        %v1202 = vadd.f32 %v912, %v1134
        %v1203 = vadd.f32 %v914, %v1135
        %v1204 = vadd.f32 %v795, %v1136
        %v1205 = vadd.f32 %v797, %v1137
        %v1206 = vadd.f32 %v916, %v1138
        %v1207 = vadd.f32 %v918, %v1139
        %v1208 = vadd.f32 %v801, %v1140
        %v1209 = vadd.f32 %v803, %v1141
        %v1210 = vadd.f32 %v922, %v1142
        %v1211 = vadd.f32 %v924, %v1143
        %v1212 = vadd.f32 %v805, %v1144
        %v1213 = vadd.f32 %v807, %v1145
        %v1214 = vadd.f32 %v926, %v1146
        %v1215 = vadd.f32 %v928, %v1147
        %v1216 = vadd.f32 %v811, %v1148
        %v1217 = vadd.f32 %v813, %v1149
        %v1218 = vadd.f32 %v932, %v1150
        %v1219 = vadd.f32 %v934, %v1151
        %v1220 = vadd.f32 %v815, %v1152
        %v1221 = vadd.f32 %v817, %v1153
        %v1222 = vadd.f32 %v936, %v1154
        %v1223 = vadd.f32 %v938, %v1155
        %v1224 = vadd.f32 %v821, %v1156
        %v1225 = vadd.f32 %v823, %v1157
        %v1226 = vadd.f32 %v942, %v1158
        %v1227 = vadd.f32 %v944, %v1159
        %v1228 = vadd.f32 %v825, %v1160
        %v1229 = vadd.f32 %v827, %v1161
        %v1230 = vadd.f32 %v946, %v1162
        %v1231 = vadd.f32 %v948, %v1163
        %v1232 = vadd.f32 %v831, %v1164
        %v1233 = vadd.f32 %v833, %v1165
        %v1234 = vadd.f32 %v952, %v1166
        %v1235 = vadd.f32 %v954, %v1167
        %v1236 = vadd.f32 %v835, %v1168
        %v1237 = vadd.f32 %v837, %v1169
        %v1238 = vadd.f32 %v956, %v1170
        %v1239 = vadd.f32 %v958, %v1171
        %v1240 = vadd.f32 %v841, %v1172
        %v1241 = vadd.f32 %v843, %v1173
        %v1242 = vadd.f32 %v962, %v1174
        %v1243 = vadd.f32 %v964, %v1175
        %v1244 = vadd.f32 %v845, %v1176
        %v1245 = vadd.f32 %v847, %v1177
        %v1246 = vadd.f32 %v966, %v1178
        %v1247 = vadd.f32 %v968, %v1179
        %v1248 = vadd.f32 %v851, %v1180
        %v1249 = vadd.f32 %v853, %v1181
        %v1250 = vadd.f32 %v972, %v1182
        %v1251 = vadd.f32 %v974, %v1183
        %v1252 = vadd.f32 %v855, %v1184
        %v1253 = vadd.f32 %v857, %v1185
        %v1254 = vadd.f32 %v976, %v1186
        %v1255 = vadd.f32 %v978, %v1187
        %v1256 = vadd.f32 %v861, %v1188
        %v1257 = vadd.f32 %v863, %v1189
        %v1258 = vadd.f32 %v982, %v1190
        %v1259 = vadd.f32 %v984, %v1191
        %v1260 = vmul.f32 %v1192, 0.7978846
        %v1261 = vmul.f32 %v1193, 0.7978846
        %v1262 = vmul.f32 %v1194, 0.7978846
        %v1263 = vmul.f32 %v1195, 0.7978846
        %v1264 = vmul.f32 %v1196, 0.7978846
        %v1265 = vmul.f32 %v1197, 0.7978846
        %v1266 = vmul.f32 %v1198, 0.7978846
        %v1267 = vmul.f32 %v1199, 0.7978846
        %v1268 = vmul.f32 %v1200, 0.7978846
        %v1269 = vmul.f32 %v1201, 0.7978846
        %v1270 = vmul.f32 %v1202, 0.7978846
        %v1271 = vmul.f32 %v1203, 0.7978846
        %v1272 = vmul.f32 %v1204, 0.7978846
        %v1273 = vmul.f32 %v1205, 0.7978846
        %v1274 = vmul.f32 %v1206, 0.7978846
        %v1275 = vmul.f32 %v1207, 0.7978846
        %v1276 = vmul.f32 %v1208, 0.7978846
        %v1277 = vmul.f32 %v1209, 0.7978846
        %v1278 = vmul.f32 %v1210, 0.7978846
        %v1279 = vmul.f32 %v1211, 0.7978846
        %v1280 = vmul.f32 %v1212, 0.7978846
        %v1281 = vmul.f32 %v1213, 0.7978846
        %v1282 = vmul.f32 %v1214, 0.7978846
        %v1283 = vmul.f32 %v1215, 0.7978846
        %v1284 = vmul.f32 %v1216, 0.7978846
        %v1285 = vmul.f32 %v1217, 0.7978846
        %v1286 = vmul.f32 %v1218, 0.7978846
        %v1287 = vmul.f32 %v1219, 0.7978846
        %v1288 = vmul.f32 %v1220, 0.7978846
        %v1289 = vmul.f32 %v1221, 0.7978846
        %v1290 = vmul.f32 %v1222, 0.7978846
        %v1291 = vmul.f32 %v1223, 0.7978846
        %v1292 = vmul.f32 %v1224, 0.7978846
        %v1293 = vmul.f32 %v1225, 0.7978846
        %v1294 = vmul.f32 %v1226, 0.7978846
        %v1295 = vmul.f32 %v1227, 0.7978846
        %v1296 = vmul.f32 %v1228, 0.7978846
        %v1297 = vmul.f32 %v1229, 0.7978846
        %v1298 = vmul.f32 %v1230, 0.7978846
        %v1299 = vmul.f32 %v1231, 0.7978846
        %v1300 = vmul.f32 %v1232, 0.7978846
        %v1301 = vmul.f32 %v1233, 0.7978846
        %v1302 = vmul.f32 %v1234, 0.7978846
        %v1303 = vmul.f32 %v1235, 0.7978846
        %v1304 = vmul.f32 %v1236, 0.7978846
        %v1305 = vmul.f32 %v1237, 0.7978846
        %v1306 = vmul.f32 %v1238, 0.7978846
        %v1307 = vmul.f32 %v1239, 0.7978846
        %v1308 = vmul.f32 %v1240, 0.7978846
        %v1309 = vmul.f32 %v1241, 0.7978846
        %v1310 = vmul.f32 %v1242, 0.7978846
        %v1311 = vmul.f32 %v1243, 0.7978846
        %v1312 = vmul.f32 %v1244, 0.7978846
        %v1313 = vmul.f32 %v1245, 0.7978846
        %v1314 = vmul.f32 %v1246, 0.7978846
        %v1315 = vmul.f32 %v1247, 0.7978846
        %v1316 = vmul.f32 %v1248, 0.7978846
        %v1317 = vmul.f32 %v1249, 0.7978846
        %v1318 = vmul.f32 %v1250, 0.7978846
        %v1319 = vmul.f32 %v1251, 0.7978846
        %v1320 = vmul.f32 %v1252, 0.7978846
        %v1321 = vmul.f32 %v1253, 0.7978846
        %v1322 = vmul.f32 %v1254, 0.7978846
        %v1323 = vmul.f32 %v1255, 0.7978846
        %v1324 = vmul.f32 %v1256, 0.7978846
        %v1325 = vmul.f32 %v1257, 0.7978846
        %v1326 = vmul.f32 %v1258, 0.7978846
        %v1327 = vmul.f32 %v1259, 0.7978846
        %v1328 = vtanh.pop %v1260
        %v1329 = vtanh.pop %v1261
        %v1330 = vtanh.pop %v1262
        %v1331 = vtanh.pop %v1263
        %v1332 = vtanh.pop %v1264
        %v1333 = vtanh.pop %v1265
        %v1334 = vtanh.pop %v1266
        %v1335 = vtanh.pop %v1267
        %v1336 = vtanh.pop %v1268
        %v1337 = vtanh.pop %v1269
        %v1338 = vtanh.pop %v1270
        %v1339 = vtanh.pop %v1271
        %v1340 = vtanh.pop %v1272
        %v1341 = vtanh.pop %v1273
        %v1342 = vtanh.pop %v1274
        %v1343 = vtanh.pop %v1275
        %v1344 = vtanh.pop %v1276
        %v1345 = vtanh.pop %v1277
        %v1346 = vtanh.pop %v1278
        %v1347 = vtanh.pop %v1279
        %v1348 = vtanh.pop %v1280
        %v1349 = vtanh.pop %v1281
        %v1350 = vtanh.pop %v1282
        %v1351 = vtanh.pop %v1283
        %v1352 = vtanh.pop %v1284
        %v1353 = vtanh.pop %v1285
        %v1354 = vtanh.pop %v1286
        %v1355 = vtanh.pop %v1287
        %v1356 = vtanh.pop %v1288
        %v1357 = vtanh.pop %v1289
        %v1358 = vtanh.pop %v1290
        %v1359 = vtanh.pop %v1291
        %v1360 = vtanh.pop %v1292
        %v1361 = vtanh.pop %v1293
        %v1362 = vtanh.pop %v1294
        %v1363 = vtanh.pop %v1295
        %v1364 = vtanh.pop %v1296
        %v1365 = vtanh.pop %v1297
        %v1366 = vtanh.pop %v1298
        %v1367 = vtanh.pop %v1299
        %v1368 = vtanh.pop %v1300
        %v1369 = vtanh.pop %v1301
        %v1370 = vtanh.pop %v1302
        %v1371 = vtanh.pop %v1303
        %v1372 = vtanh.pop %v1304
        %v1373 = vtanh.pop %v1305
        %v1374 = vtanh.pop %v1306
        %v1375 = vtanh.pop %v1307
        %v1376 = vtanh.pop %v1308
        %v1377 = vtanh.pop %v1309
        %v1378 = vtanh.pop %v1310
        %v1379 = vtanh.pop %v1311
        %v1380 = vtanh.pop %v1312
        %v1381 = vtanh.pop %v1313
        %v1382 = vtanh.pop %v1314
        %v1383 = vtanh.pop %v1315
        %v1384 = vtanh.pop %v1316
        %v1385 = vtanh.pop %v1317
        %v1386 = vtanh.pop %v1318
        %v1387 = vtanh.pop %v1319
        %v1388 = vtanh.pop %v1320
        %v1389 = vtanh.pop %v1321
        %v1390 = vtanh.pop %v1322
        %v1391 = vtanh.pop %v1323
        %v1392 = vtanh.pop %v1324
        %v1393 = vtanh.pop %v1325
        %v1394 = vtanh.pop %v1326
        %v1395 = vtanh.pop %v1327
        %v1396 = vadd.f32 %v1328, 1.0
        %v1397 = vadd.f32 %v1329, 1.0
        %v1398 = vadd.f32 %v1330, 1.0
        %v1399 = vadd.f32 %v1331, 1.0
        %v1400 = vadd.f32 %v1332, 1.0
        %v1401 = vadd.f32 %v1333, 1.0
        %v1402 = vadd.f32 %v1334, 1.0
        %v1403 = vadd.f32 %v1335, 1.0
        %v1404 = vadd.f32 %v1336, 1.0
        %v1405 = vadd.f32 %v1337, 1.0
        %v1406 = vadd.f32 %v1338, 1.0
        %v1407 = vadd.f32 %v1339, 1.0
        %v1408 = vadd.f32 %v1340, 1.0
        %v1409 = vadd.f32 %v1341, 1.0
        %v1410 = vadd.f32 %v1342, 1.0
        %v1411 = vadd.f32 %v1343, 1.0
        %v1412 = vadd.f32 %v1344, 1.0
        %v1413 = vadd.f32 %v1345, 1.0
        %v1414 = vadd.f32 %v1346, 1.0
        %v1415 = vadd.f32 %v1347, 1.0
        %v1416 = vadd.f32 %v1348, 1.0
        %v1417 = vadd.f32 %v1349, 1.0
        %v1418 = vadd.f32 %v1350, 1.0
        %v1419 = vadd.f32 %v1351, 1.0
        %v1420 = vadd.f32 %v1352, 1.0
        %v1421 = vadd.f32 %v1353, 1.0
        %v1422 = vadd.f32 %v1354, 1.0
        %v1423 = vadd.f32 %v1355, 1.0
        %v1424 = vadd.f32 %v1356, 1.0
        %v1425 = vadd.f32 %v1357, 1.0
        %v1426 = vadd.f32 %v1358, 1.0
        %v1427 = vadd.f32 %v1359, 1.0
        %v1428 = vadd.f32 %v1360, 1.0
        %v1429 = vadd.f32 %v1361, 1.0
        %v1430 = vadd.f32 %v1362, 1.0
        %v1431 = vadd.f32 %v1363, 1.0
        %v1432 = vadd.f32 %v1364, 1.0
        %v1433 = vadd.f32 %v1365, 1.0
        %v1434 = vadd.f32 %v1366, 1.0
        %v1435 = vadd.f32 %v1367, 1.0
        %v1436 = vadd.f32 %v1368, 1.0
        %v1437 = vadd.f32 %v1369, 1.0
        %v1438 = vadd.f32 %v1370, 1.0
        %v1439 = vadd.f32 %v1371, 1.0
        %v1440 = vadd.f32 %v1372, 1.0
        %v1441 = vadd.f32 %v1373, 1.0
        %v1442 = vadd.f32 %v1374, 1.0
        %v1443 = vadd.f32 %v1375, 1.0
        %v1444 = vadd.f32 %v1376, 1.0
        %v1445 = vadd.f32 %v1377, 1.0
        %v1446 = vadd.f32 %v1378, 1.0
        %v1447 = vadd.f32 %v1379, 1.0
        %v1448 = vadd.f32 %v1380, 1.0
        %v1449 = vadd.f32 %v1381, 1.0
        %v1450 = vadd.f32 %v1382, 1.0
        %v1451 = vadd.f32 %v1383, 1.0
        %v1452 = vadd.f32 %v1384, 1.0
        %v1453 = vadd.f32 %v1385, 1.0
        %v1454 = vadd.f32 %v1386, 1.0
        %v1455 = vadd.f32 %v1387, 1.0
        %v1456 = vadd.f32 %v1388, 1.0
        %v1457 = vadd.f32 %v1389, 1.0
        %v1458 = vadd.f32 %v1390, 1.0
        %v1459 = vadd.f32 %v1391, 1.0
        %v1460 = vadd.f32 %v1392, 1.0
        %v1461 = vadd.f32 %v1393, 1.0
        %v1462 = vadd.f32 %v1394, 1.0
        %v1463 = vadd.f32 %v1395, 1.0
        %v1464 = vmul.f32 %v1396, 0.5
        %v1465 = vmul.f32 %v1397, 0.5
        %v1466 = vmul.f32 %v1398, 0.5
        %v1467 = vmul.f32 %v1399, 0.5
        %v1468 = vmul.f32 %v1400, 0.5
        %v1469 = vmul.f32 %v1401, 0.5
        %v1470 = vmul.f32 %v1402, 0.5
        %v1471 = vmul.f32 %v1403, 0.5
        %v1472 = vmul.f32 %v1404, 0.5
        %v1473 = vmul.f32 %v1405, 0.5
        %v1474 = vmul.f32 %v1406, 0.5
        %v1475 = vmul.f32 %v1407, 0.5
        %v1476 = vmul.f32 %v1408, 0.5
        %v1477 = vmul.f32 %v1409, 0.5
        %v1478 = vmul.f32 %v1410, 0.5
        %v1479 = vmul.f32 %v1411, 0.5
        %v1480 = vmul.f32 %v1412, 0.5
        %v1481 = vmul.f32 %v1413, 0.5
        %v1482 = vmul.f32 %v1414, 0.5
        %v1483 = vmul.f32 %v1415, 0.5
        %v1484 = vmul.f32 %v1416, 0.5
        %v1485 = vmul.f32 %v1417, 0.5
        %v1486 = vmul.f32 %v1418, 0.5
        %v1487 = vmul.f32 %v1419, 0.5
        %v1488 = vmul.f32 %v1420, 0.5
        %v1489 = vmul.f32 %v1421, 0.5
        %v1490 = vmul.f32 %v1422, 0.5
        %v1491 = vmul.f32 %v1423, 0.5
        %v1492 = vmul.f32 %v1424, 0.5
        %v1493 = vmul.f32 %v1425, 0.5
        %v1494 = vmul.f32 %v1426, 0.5
        %v1495 = vmul.f32 %v1427, 0.5
        %v1496 = vmul.f32 %v1428, 0.5
        %v1497 = vmul.f32 %v1429, 0.5
        %v1498 = vmul.f32 %v1430, 0.5
        %v1499 = vmul.f32 %v1431, 0.5
        %v1500 = vmul.f32 %v1432, 0.5
        %v1501 = vmul.f32 %v1433, 0.5
        %v1502 = vmul.f32 %v1434, 0.5
        %v1503 = vmul.f32 %v1435, 0.5
        %v1504 = vmul.f32 %v1436, 0.5
        %v1505 = vmul.f32 %v1437, 0.5
        %v1506 = vmul.f32 %v1438, 0.5
        %v1507 = vmul.f32 %v1439, 0.5
        %v1508 = vmul.f32 %v1440, 0.5
        %v1509 = vmul.f32 %v1441, 0.5
        %v1510 = vmul.f32 %v1442, 0.5
        %v1511 = vmul.f32 %v1443, 0.5
        %v1512 = vmul.f32 %v1444, 0.5
        %v1513 = vmul.f32 %v1445, 0.5
        %v1514 = vmul.f32 %v1446, 0.5
        %v1515 = vmul.f32 %v1447, 0.5
        %v1516 = vmul.f32 %v1448, 0.5
        %v1517 = vmul.f32 %v1449, 0.5
        %v1518 = vmul.f32 %v1450, 0.5
        %v1519 = vmul.f32 %v1451, 0.5
        %v1520 = vmul.f32 %v1452, 0.5
        %v1521 = vmul.f32 %v1453, 0.5
        %v1522 = vmul.f32 %v1454, 0.5
        %v1523 = vmul.f32 %v1455, 0.5
        %v1524 = vmul.f32 %v1456, 0.5
        %v1525 = vmul.f32 %v1457, 0.5
        %v1526 = vmul.f32 %v1458, 0.5
        %v1527 = vmul.f32 %v1459, 0.5
        %v1528 = vmul.f32 %v1460, 0.5
        %v1529 = vmul.f32 %v1461, 0.5
        %v1530 = vmul.f32 %v1462, 0.5
        %v1531 = vmul.f32 %v1463, 0.5
        %v1532 = vmul.f32 %v781, %v1464
        %v1533 = vmul.f32 %v783, %v1465
        %v1534 = vmul.f32 %v902, %v1466
        %v1535 = vmul.f32 %v904, %v1467
        %v1536 = vmul.f32 %v785, %v1468
        %v1537 = vmul.f32 %v787, %v1469
        %v1538 = vmul.f32 %v906, %v1470
        %v1539 = vmul.f32 %v908, %v1471
        %v1540 = vmul.f32 %v791, %v1472
        %v1541 = vmul.f32 %v793, %v1473
        %v1542 = vmul.f32 %v912, %v1474
        %v1543 = vmul.f32 %v914, %v1475
        %v1544 = vmul.f32 %v795, %v1476
        %v1545 = vmul.f32 %v797, %v1477
        %v1546 = vmul.f32 %v916, %v1478
        %v1547 = vmul.f32 %v918, %v1479
        %v1548 = vmul.f32 %v801, %v1480
        %v1549 = vmul.f32 %v803, %v1481
        %v1550 = vmul.f32 %v922, %v1482
        %v1551 = vmul.f32 %v924, %v1483
        %v1552 = vmul.f32 %v805, %v1484
        %v1553 = vmul.f32 %v807, %v1485
        %v1554 = vmul.f32 %v926, %v1486
        %v1555 = vmul.f32 %v928, %v1487
        %v1556 = vmul.f32 %v811, %v1488
        %v1557 = vmul.f32 %v813, %v1489
        %v1558 = vmul.f32 %v932, %v1490
        %v1559 = vmul.f32 %v934, %v1491
        %v1560 = vmul.f32 %v815, %v1492
        %v1561 = vmul.f32 %v817, %v1493
        %v1562 = vmul.f32 %v936, %v1494
        %v1563 = vmul.f32 %v938, %v1495
        %v1564 = vmul.f32 %v821, %v1496
        %v1565 = vmul.f32 %v823, %v1497
        %v1566 = vmul.f32 %v942, %v1498
        %v1567 = vmul.f32 %v944, %v1499
        %v1568 = vmul.f32 %v825, %v1500
        %v1569 = vmul.f32 %v827, %v1501
        %v1570 = vmul.f32 %v946, %v1502
        %v1571 = vmul.f32 %v948, %v1503
        %v1572 = vmul.f32 %v831, %v1504
        %v1573 = vmul.f32 %v833, %v1505
        %v1574 = vmul.f32 %v952, %v1506
        %v1575 = vmul.f32 %v954, %v1507
        %v1576 = vmul.f32 %v835, %v1508
        %v1577 = vmul.f32 %v837, %v1509
        %v1578 = vmul.f32 %v956, %v1510
        %v1579 = vmul.f32 %v958, %v1511
        %v1580 = vmul.f32 %v841, %v1512
        %v1581 = vmul.f32 %v843, %v1513
        %v1582 = vmul.f32 %v962, %v1514
        %v1583 = vmul.f32 %v964, %v1515
        %v1584 = vmul.f32 %v845, %v1516
        %v1585 = vmul.f32 %v847, %v1517
        %v1586 = vmul.f32 %v966, %v1518
        %v1587 = vmul.f32 %v968, %v1519
        %v1588 = vmul.f32 %v851, %v1520
        %v1589 = vmul.f32 %v853, %v1521
        %v1590 = vmul.f32 %v972, %v1522
        %v1591 = vmul.f32 %v974, %v1523
        %v1592 = vmul.f32 %v855, %v1524
        %v1593 = vmul.f32 %v857, %v1525
        %v1594 = vmul.f32 %v976, %v1526
        %v1595 = vmul.f32 %v978, %v1527
        %v1596 = vmul.f32 %v861, %v1528
        %v1597 = vmul.f32 %v863, %v1529
        %v1598 = vmul.f32 %v982, %v1530
        %v1599 = vmul.f32 %v984, %v1531
        %v1600 = vpack.c.bf16 %v1536, %v1532
        %v1601 = vpack.c.bf16 %v1537, %v1533
        %v1602 = vpack.c.bf16 %v1538, %v1534
        %v1603 = vpack.c.bf16 %v1539, %v1535
        %v1604 = vpack.c.bf16 %v1544, %v1540
        %v1605 = vpack.c.bf16 %v1545, %v1541
        %v1606 = vpack.c.bf16 %v1546, %v1542
        %v1607 = vpack.c.bf16 %v1547, %v1543
        %v1608 = vpack.c.bf16 %v1552, %v1548
        %v1609 = vpack.c.bf16 %v1553, %v1549
        %v1610 = vpack.c.bf16 %v1554, %v1550
        %v1611 = vpack.c.bf16 %v1555, %v1551
        %v1612 = vpack.c.bf16 %v1560, %v1556
        %v1613 = vpack.c.bf16 %v1561, %v1557
        %v1614 = vpack.c.bf16 %v1562, %v1558
        %v1615 = vpack.c.bf16 %v1563, %v1559
        %v1616 = vpack.c.bf16 %v1568, %v1564
        %v1617 = vpack.c.bf16 %v1569, %v1565
        %v1618 = vpack.c.bf16 %v1570, %v1566
        %v1619 = vpack.c.bf16 %v1571, %v1567
        %v1620 = vpack.c.bf16 %v1576, %v1572
        %v1621 = vpack.c.bf16 %v1577, %v1573
        %v1622 = vpack.c.bf16 %v1578, %v1574
        %v1623 = vpack.c.bf16 %v1579, %v1575
        %v1624 = vpack.c.bf16 %v1584, %v1580
        %v1625 = vpack.c.bf16 %v1585, %v1581
        %v1626 = vpack.c.bf16 %v1586, %v1582
        %v1627 = vpack.c.bf16 %v1587, %v1583
        %v1628 = vpack.c.bf16 %v1592, %v1588
        %v1629 = vpack.c.bf16 %v1593, %v1589
        %v1630 = vpack.c.bf16 %v1594, %v1590
        %v1631 = vpack.c.bf16 %v1595, %v1591
        %v1632 = vpack.c.bf16 %v1596, %v1596
        %v1633 = vpack.c.bf16 %v1597, %v1597
        %v1634 = vpack.c.bf16 %v1598, %v1598
        %v1635 = vpack.c.bf16 %v1599, %v1599
        %v1636 = vld [vmem:[#allocation8] sm:$0xff]
        %v1637 = vld [vmem:[#allocation8 + $0x8] sm:$0xff]
        %v1638 = vld [vmem:[#allocation8 + $0x10] sm:$0xff]
        %v1639 = vld [vmem:[#allocation8 + $0x18] sm:$0xff]
        %v1640 = vld [vmem:[#allocation8 + $0x20] sm:$0xff]
        %v1641 = vld [vmem:[#allocation8 + $0x28] sm:$0xff]
        %v1642 = vld [vmem:[#allocation8 + $0x30] sm:$0xff]
        %v1643 = vld [vmem:[#allocation8 + $0x38] sm:$0xff]
        %v1644 = vld [vmem:[#allocation8 + $0x40] sm:$0xff]
        %v1645 = vld [vmem:[#allocation8 + $0x48] sm:$0xff]
        %v1646 = vld [vmem:[#allocation8 + $0x50] sm:$0xff]
        %v1647 = vld [vmem:[#allocation8 + $0x58] sm:$0xff]
        %v1648 = vld [vmem:[#allocation8 + $0x60] sm:$0xff]
        %v1649 = vld [vmem:[#allocation8 + $0x68] sm:$0xff]
        %v1650 = vld [vmem:[#allocation8 + $0x70] sm:$0xff]
        %v1651 = vld [vmem:[#allocation8 + $0x78] sm:$0xff]
        %v1652 = vld [vmem:[#allocation8 + $0x80] sm:$0xff]
        %v1653 = vld [vmem:[#allocation8 + $0x88] sm:$0xff]
        %v1654 = vld [vmem:[#allocation8 + $0x90] sm:$0xff]
        %v1655 = vld [vmem:[#allocation8 + $0x98] sm:$0xff]
        %v1656 = vld [vmem:[#allocation8 + $0xa0] sm:$0xff]
        %v1657 = vld [vmem:[#allocation8 + $0xa8] sm:$0xff]
        %v1658 = vld [vmem:[#allocation8 + $0xb0] sm:$0xff]
        %v1659 = vld [vmem:[#allocation8 + $0xb8] sm:$0xff]
        %v1660 = vld [vmem:[#allocation8 + $0xc0] sm:$0xff]
        %v1661 = vld [vmem:[#allocation8 + $0xc8] sm:$0xff]
        %v1662 = vld [vmem:[#allocation8 + $0xd0] sm:$0xff]
        %v1663 = vld [vmem:[#allocation8 + $0xd8] sm:$0xff]
        %v1664 = vld [vmem:[#allocation8 + $0xe0] sm:$0xff]
        %v1665 = vld [vmem:[#allocation8 + $0xe8] sm:$0xff]
        %v1666 = vld [vmem:[#allocation8 + $0xf0] sm:$0xff]
        %v1667 = vld [vmem:[#allocation8 + $0xf8] sm:$0xff]
        %v1668 = vld [vmem:[#allocation8 + $0x100] sm:$0xff]
        %v1669 = vld [vmem:[#allocation8 + $0x108] sm:$0xff]
        %v1670 = vld [vmem:[#allocation8 + $0x110] sm:$0xff]
        %v1671 = vld [vmem:[#allocation8 + $0x118] sm:$0xff]
        %v1672 = vld [vmem:[#allocation8 + $0x120] sm:$0xff]
        %v1673 = vld [vmem:[#allocation8 + $0x128] sm:$0xff]
        %v1674 = vld [vmem:[#allocation8 + $0x130] sm:$0xff]
        %v1675 = vld [vmem:[#allocation8 + $0x138] sm:$0xff]
        %v1676 = vld [vmem:[#allocation8 + $0x140] sm:$0xff]
        %v1677 = vld [vmem:[#allocation8 + $0x148] sm:$0xff]
        %v1678 = vld [vmem:[#allocation8 + $0x150] sm:$0xff]
        %v1679 = vld [vmem:[#allocation8 + $0x158] sm:$0xff]
        %v1680 = vld [vmem:[#allocation8 + $0x160] sm:$0xff]
        %v1681 = vld [vmem:[#allocation8 + $0x168] sm:$0xff]
        %v1682 = vld [vmem:[#allocation8 + $0x170] sm:$0xff]
        %v1683 = vld [vmem:[#allocation8 + $0x178] sm:$0xff]
        %v1684 = vld [vmem:[#allocation8 + $0x180] sm:$0xff]
        %v1685 = vld [vmem:[#allocation8 + $0x188] sm:$0xff]
        %v1686 = vld [vmem:[#allocation8 + $0x190] sm:$0xff]
        %v1687 = vld [vmem:[#allocation8 + $0x198] sm:$0xff]
        %v1688 = vld [vmem:[#allocation8 + $0x1a0] sm:$0xff]
        %v1689 = vld [vmem:[#allocation8 + $0x1a8] sm:$0xff]
        %v1690 = vld [vmem:[#allocation8 + $0x1b0] sm:$0xff]
        %v1691 = vld [vmem:[#allocation8 + $0x1b8] sm:$0xff]
        %v1692 = vld [vmem:[#allocation8 + $0x1c0] sm:$0xff]
        %v1693 = vld [vmem:[#allocation8 + $0x1c8] sm:$0xff]
        %v1694 = vld [vmem:[#allocation8 + $0x1d0] sm:$0xff]
        %v1695 = vld [vmem:[#allocation8 + $0x1d8] sm:$0xff]
        %v1696 = vld [vmem:[#allocation8 + $0x1e0] sm:$0xff]
        %v1697 = vld [vmem:[#allocation8 + $0x1e8] sm:$0xff]
        %v1698 = vld [vmem:[#allocation8 + $0x1f0] sm:$0xff]
        %v1699 = vld [vmem:[#allocation8 + $0x1f8] sm:$0xff]
        %v1700 = vld [vmem:[#allocation5 + $0x10] sm:$0xff]
        %v1701 = vld [vmem:[#allocation5 + $0x18] sm:$0xff]
        %v1702 = vld [vmem:[#allocation5 + $0x30] sm:$0xff]
        %v1703 = vld [vmem:[#allocation5 + $0x38] sm:$0xff]
        %v1704 = vld [vmem:[#allocation5 + $0x50] sm:$0xff]
        %v1705 = vld [vmem:[#allocation5 + $0x58] sm:$0xff]
        %v1706 = vld [vmem:[#allocation5 + $0x70] sm:$0xff]
        %v1707 = vld [vmem:[#allocation5 + $0x78] sm:$0xff]
        %v1708 = vld [vmem:[#allocation5 + $0x90] sm:$0xff]
        %v1709 = vld [vmem:[#allocation5 + $0x98] sm:$0xff]
        %v1710 = vld [vmem:[#allocation5 + $0xb0] sm:$0xff]
        %v1711 = vld [vmem:[#allocation5 + $0xb8] sm:$0xff]
        %v1712 = vld [vmem:[#allocation5 + $0xd0] sm:$0xff]
        %v1713 = vld [vmem:[#allocation5 + $0xd8] sm:$0xff]
        %v1714 = vld [vmem:[#allocation5 + $0xf0] sm:$0xff]
        %v1715 = vld [vmem:[#allocation5 + $0xf8] sm:$0xff]
        %v1716 = vld [vmem:[#allocation5 + $0x110] sm:$0xff]
        %v1717 = vld [vmem:[#allocation5 + $0x118] sm:$0xff]
        %v1718 = vld [vmem:[#allocation5 + $0x130] sm:$0xff]
        %v1719 = vld [vmem:[#allocation5 + $0x138] sm:$0xff]
        %v1720 = vld [vmem:[#allocation5 + $0x150] sm:$0xff]
        %v1721 = vld [vmem:[#allocation5 + $0x158] sm:$0xff]
        %v1722 = vld [vmem:[#allocation5 + $0x170] sm:$0xff]
        %v1723 = vld [vmem:[#allocation5 + $0x178] sm:$0xff]
        %v1724 = vld [vmem:[#allocation5 + $0x190] sm:$0xff]
        %v1725 = vld [vmem:[#allocation5 + $0x198] sm:$0xff]
        %v1726 = vld [vmem:[#allocation5 + $0x1b0] sm:$0xff]
        %v1727 = vld [vmem:[#allocation5 + $0x1b8] sm:$0xff]
        %v1728 = vld [vmem:[#allocation5 + $0x1d0] sm:$0xff]
        %v1729 = vld [vmem:[#allocation5 + $0x1d8] sm:$0xff]
        %v1730 = vld [vmem:[#allocation5 + $0x1f0] sm:$0xff]
        %v1731 = vld [vmem:[#allocation5 + $0x1f8] sm:$0xff]
        %v1732 = vld [vmem:[#allocation5 + $0x210] sm:$0xff]
        %v1733 = vld [vmem:[#allocation5 + $0x218] sm:$0xff]
        %v1734 = vld [vmem:[#allocation5 + $0x230] sm:$0xff]
        %v1735 = vld [vmem:[#allocation5 + $0x238] sm:$0xff]
        %v1736 = vld [vmem:[#allocation5 + $0x250] sm:$0xff]
        %v1737 = vld [vmem:[#allocation5 + $0x258] sm:$0xff]
        %v1738 = vld [vmem:[#allocation5 + $0x270] sm:$0xff]
        %v1739 = vld [vmem:[#allocation5 + $0x278] sm:$0xff]
        %v1740 = vld [vmem:[#allocation5 + $0x290] sm:$0xff]
        %v1741 = vld [vmem:[#allocation5 + $0x298] sm:$0xff]
        %v1742 = vld [vmem:[#allocation5 + $0x2b0] sm:$0xff]
        %v1743 = vld [vmem:[#allocation5 + $0x2b8] sm:$0xff]
        %v1744 = vld [vmem:[#allocation5 + $0x2d0] sm:$0xff]
        %v1745 = vld [vmem:[#allocation5 + $0x2d8] sm:$0xff]
        %v1746 = vld [vmem:[#allocation5 + $0x2f0] sm:$0xff]
        %v1747 = vld [vmem:[#allocation5 + $0x2f8] sm:$0xff]
        %v1748 = vld [vmem:[#allocation5 + $0x310] sm:$0xff]
        %v1749 = vld [vmem:[#allocation5 + $0x318] sm:$0xff]
        %v1750 = vld [vmem:[#allocation5 + $0x330] sm:$0xff]
        %v1751 = vld [vmem:[#allocation5 + $0x338] sm:$0xff]
        %v1752 = vld [vmem:[#allocation5 + $0x350] sm:$0xff]
        %v1753 = vld [vmem:[#allocation5 + $0x358] sm:$0xff]
        %v1754 = vld [vmem:[#allocation5 + $0x370] sm:$0xff]
        %v1755 = vld [vmem:[#allocation5 + $0x378] sm:$0xff]
        %v1756 = vld [vmem:[#allocation5 + $0x390] sm:$0xff]
        %v1757 = vld [vmem:[#allocation5 + $0x398] sm:$0xff]
        %v1758 = vld [vmem:[#allocation5 + $0x3b0] sm:$0xff]
        %v1759 = vld [vmem:[#allocation5 + $0x3b8] sm:$0xff]
        %v1760 = vld [vmem:[#allocation5 + $0x3d0] sm:$0xff]
        %v1761 = vld [vmem:[#allocation5 + $0x3d8] sm:$0xff]
        %v1762 = vld [vmem:[#allocation5 + $0x3f0] sm:$0xff]
        %v1763 = vld [vmem:[#allocation5 + $0x3f8] sm:$0xff]
        %v1764 = vld [vmem:[#allocation7 + $0x4] sm:$0xf]
        %v1766 = vlaneseq
        %v1767 = vshrl.u32 %v1766, 7
        %v1768 = vsub.s32 0, %v1767
        %v1769 = vrot.slane %v1764, %v1768
        %v1770 = vlaneseq
        %v1771 = vshrl.u32 %v1770, 7
        %v1772 = vsub.s32 1, %v1771
        %v1773 = vrot.slane %v1764, %v1772
        %v1774 = vlaneseq
        %v1775 = vshrl.u32 %v1774, 7
        %v1776 = vsub.s32 2, %v1775
        %v1777 = vrot.slane %v1764, %v1776
        %v1778 = vlaneseq
        %v1779 = vshrl.u32 %v1778, 7
        %v1780 = vsub.s32 3, %v1779
        %v1781 = vrot.slane %v1764, %v1780
        %v1850 = vunpack.c.l.b16 %v1700
        %v1851 = vunpack.c.h.b16 %v1700
        %v1852 = vunpack.c.l.b16 %v1701
        %v1853 = vunpack.c.h.b16 %v1701
        %v1854 = vunpack.c.l.b16 %v1702
        %v1855 = vunpack.c.h.b16 %v1702
        %v1856 = vunpack.c.l.b16 %v1703
        %v1857 = vunpack.c.h.b16 %v1703
        %v1858 = vunpack.c.l.b16 %v1704
        %v1859 = vunpack.c.h.b16 %v1704
        %v1860 = vunpack.c.l.b16 %v1705
        %v1861 = vunpack.c.h.b16 %v1705
        %v1862 = vunpack.c.l.b16 %v1706
        %v1863 = vunpack.c.h.b16 %v1706
        %v1864 = vunpack.c.l.b16 %v1707
        %v1865 = vunpack.c.h.b16 %v1707
        %v1866 = vunpack.c.l.b16 %v1708
        %v1867 = vunpack.c.h.b16 %v1708
        %v1868 = vunpack.c.l.b16 %v1709
        %v1869 = vunpack.c.h.b16 %v1709
        %v1870 = vunpack.c.l.b16 %v1710
        %v1871 = vunpack.c.h.b16 %v1710
        %v1872 = vunpack.c.l.b16 %v1711
        %v1873 = vunpack.c.h.b16 %v1711
        %v1874 = vunpack.c.l.b16 %v1712
        %v1875 = vunpack.c.h.b16 %v1712
        %v1876 = vunpack.c.l.b16 %v1713
        %v1877 = vunpack.c.h.b16 %v1713
        %v1878 = vunpack.c.l.b16 %v1714
        %v1879 = vunpack.c.h.b16 %v1714
        %v1880 = vunpack.c.l.b16 %v1715
        %v1881 = vunpack.c.h.b16 %v1715
        %v1882 = vunpack.c.l.b16 %v1716
        %v1883 = vunpack.c.h.b16 %v1716
        %v1884 = vunpack.c.l.b16 %v1717
        %v1885 = vunpack.c.h.b16 %v1717
        %v1886 = vunpack.c.l.b16 %v1718
        %v1887 = vunpack.c.h.b16 %v1718
        %v1888 = vunpack.c.l.b16 %v1719
        %v1889 = vunpack.c.h.b16 %v1719
        %v1890 = vunpack.c.l.b16 %v1720
        %v1891 = vunpack.c.h.b16 %v1720
        %v1892 = vunpack.c.l.b16 %v1721
        %v1893 = vunpack.c.h.b16 %v1721
        %v1894 = vunpack.c.l.b16 %v1722
        %v1895 = vunpack.c.h.b16 %v1722
        %v1896 = vunpack.c.l.b16 %v1723
        %v1897 = vunpack.c.h.b16 %v1723
        %v1898 = vunpack.c.l.b16 %v1724
        %v1899 = vunpack.c.h.b16 %v1724
        %v1900 = vunpack.c.l.b16 %v1725
        %v1901 = vunpack.c.h.b16 %v1725
        %v1902 = vunpack.c.l.b16 %v1726
        %v1903 = vunpack.c.h.b16 %v1726
        %v1904 = vunpack.c.l.b16 %v1727
        %v1905 = vunpack.c.h.b16 %v1727
        %v1906 = vunpack.c.l.b16 %v1728
        %v1907 = vunpack.c.h.b16 %v1728
        %v1908 = vunpack.c.l.b16 %v1729
        %v1909 = vunpack.c.h.b16 %v1729
        %v1910 = vunpack.c.l.b16 %v1730
        %v1911 = vunpack.c.h.b16 %v1730
        %v1912 = vunpack.c.l.b16 %v1731
        %v1913 = vunpack.c.h.b16 %v1731
        %v1914 = vunpack.c.l.b16 %v1732
        %v1915 = vunpack.c.h.b16 %v1732
        %v1916 = vunpack.c.l.b16 %v1733
        %v1917 = vunpack.c.h.b16 %v1733
        %v1918 = vunpack.c.l.b16 %v1734
        %v1919 = vunpack.c.h.b16 %v1734
        %v1920 = vunpack.c.l.b16 %v1735
        %v1921 = vunpack.c.h.b16 %v1735
        %v1922 = vunpack.c.l.b16 %v1736
        %v1923 = vunpack.c.h.b16 %v1736
        %v1924 = vunpack.c.l.b16 %v1737
        %v1925 = vunpack.c.h.b16 %v1737
        %v1926 = vunpack.c.l.b16 %v1738
        %v1927 = vunpack.c.h.b16 %v1738
        %v1928 = vunpack.c.l.b16 %v1739
        %v1929 = vunpack.c.h.b16 %v1739
        %v1930 = vunpack.c.l.b16 %v1740
        %v1931 = vunpack.c.h.b16 %v1740
        %v1932 = vunpack.c.l.b16 %v1741
        %v1933 = vunpack.c.h.b16 %v1741
        %v1934 = vunpack.c.l.b16 %v1742
        %v1935 = vunpack.c.h.b16 %v1742
        %v1936 = vunpack.c.l.b16 %v1743
        %v1937 = vunpack.c.h.b16 %v1743
        %v1938 = vunpack.c.l.b16 %v1744
        %v1939 = vunpack.c.h.b16 %v1744
        %v1940 = vunpack.c.l.b16 %v1745
        %v1941 = vunpack.c.h.b16 %v1745
        %v1942 = vunpack.c.l.b16 %v1746
        %v1943 = vunpack.c.h.b16 %v1746
        %v1944 = vunpack.c.l.b16 %v1747
        %v1945 = vunpack.c.h.b16 %v1747
        %v1946 = vunpack.c.l.b16 %v1748
        %v1947 = vunpack.c.h.b16 %v1748
        %v1948 = vunpack.c.l.b16 %v1749
        %v1949 = vunpack.c.h.b16 %v1749
        %v1950 = vunpack.c.l.b16 %v1750
        %v1951 = vunpack.c.h.b16 %v1750
        %v1952 = vunpack.c.l.b16 %v1751
        %v1953 = vunpack.c.h.b16 %v1751
        %v1954 = vunpack.c.l.b16 %v1752
        %v1955 = vunpack.c.h.b16 %v1752
        %v1956 = vunpack.c.l.b16 %v1753
        %v1957 = vunpack.c.h.b16 %v1753
        %v1958 = vunpack.c.l.b16 %v1754
        %v1959 = vunpack.c.h.b16 %v1754
        %v1960 = vunpack.c.l.b16 %v1755
        %v1961 = vunpack.c.h.b16 %v1755
        %v1962 = vunpack.c.l.b16 %v1756
        %v1963 = vunpack.c.h.b16 %v1756
        %v1964 = vunpack.c.l.b16 %v1757
        %v1965 = vunpack.c.h.b16 %v1757
        %v1966 = vunpack.c.l.b16 %v1758
        %v1967 = vunpack.c.h.b16 %v1758
        %v1968 = vunpack.c.l.b16 %v1759
        %v1969 = vunpack.c.h.b16 %v1759
        %v1970 = vunpack.c.l.b16 %v1760
        %v1971 = vunpack.c.h.b16 %v1760
        %v1972 = vunpack.c.l.b16 %v1761
        %v1973 = vunpack.c.h.b16 %v1761
        %v1974 = vunpack.c.l.b16 %v1762
        %v1975 = vunpack.c.h.b16 %v1762
        %v1976 = vunpack.c.l.b16 %v1763
        %v1977 = vunpack.c.h.b16 %v1763
        %v1978 = vpack.c.b16 %v1854, %v1850
        %v1979 = vpack.c.b16 %v1855, %v1851
        %v1980 = vpack.c.b16 %v1856, %v1852
        %v1981 = vpack.c.b16 %v1857, %v1853
        %v1982 = vpack.c.b16 %v1862, %v1858
        %v1983 = vpack.c.b16 %v1863, %v1859
        %v1984 = vpack.c.b16 %v1864, %v1860
        %v1985 = vpack.c.b16 %v1865, %v1861
        %v1986 = vpack.c.b16 %v1870, %v1866
        %v1987 = vpack.c.b16 %v1871, %v1867
        %v1988 = vpack.c.b16 %v1872, %v1868
        %v1989 = vpack.c.b16 %v1873, %v1869
        %v1990 = vpack.c.b16 %v1878, %v1874
        %v1991 = vpack.c.b16 %v1879, %v1875
        %v1992 = vpack.c.b16 %v1880, %v1876
        %v1993 = vpack.c.b16 %v1881, %v1877
        %v1994 = vpack.c.b16 %v1886, %v1882
        %v1995 = vpack.c.b16 %v1887, %v1883
        %v1996 = vpack.c.b16 %v1888, %v1884
        %v1997 = vpack.c.b16 %v1889, %v1885
        %v1998 = vpack.c.b16 %v1894, %v1890
        %v1999 = vpack.c.b16 %v1895, %v1891
        %v2000 = vpack.c.b16 %v1896, %v1892
        %v2001 = vpack.c.b16 %v1897, %v1893
        %v2002 = vpack.c.b16 %v1902, %v1898
        %v2003 = vpack.c.b16 %v1903, %v1899
        %v2004 = vpack.c.b16 %v1904, %v1900
        %v2005 = vpack.c.b16 %v1905, %v1901
        %v2006 = vpack.c.b16 %v1910, %v1906
        %v2007 = vpack.c.b16 %v1911, %v1907
        %v2008 = vpack.c.b16 %v1912, %v1908
        %v2009 = vpack.c.b16 %v1913, %v1909
        %v2010 = vpack.c.b16 %v1918, %v1914
        %v2011 = vpack.c.b16 %v1919, %v1915
        %v2012 = vpack.c.b16 %v1920, %v1916
        %v2013 = vpack.c.b16 %v1921, %v1917
        %v2014 = vpack.c.b16 %v1926, %v1922
        %v2015 = vpack.c.b16 %v1927, %v1923
        %v2016 = vpack.c.b16 %v1928, %v1924
        %v2017 = vpack.c.b16 %v1929, %v1925
        %v2018 = vpack.c.b16 %v1934, %v1930
        %v2019 = vpack.c.b16 %v1935, %v1931
        %v2020 = vpack.c.b16 %v1936, %v1932
        %v2021 = vpack.c.b16 %v1937, %v1933
        %v2022 = vpack.c.b16 %v1942, %v1938
        %v2023 = vpack.c.b16 %v1943, %v1939
        %v2024 = vpack.c.b16 %v1944, %v1940
        %v2025 = vpack.c.b16 %v1945, %v1941
        %v2026 = vpack.c.b16 %v1950, %v1946
        %v2027 = vpack.c.b16 %v1951, %v1947
        %v2028 = vpack.c.b16 %v1952, %v1948
        %v2029 = vpack.c.b16 %v1953, %v1949
        %v2030 = vpack.c.b16 %v1958, %v1954
        %v2031 = vpack.c.b16 %v1959, %v1955
        %v2032 = vpack.c.b16 %v1960, %v1956
        %v2033 = vpack.c.b16 %v1961, %v1957
        %v2034 = vpack.c.b16 %v1966, %v1962
        %v2035 = vpack.c.b16 %v1967, %v1963
        %v2036 = vpack.c.b16 %v1968, %v1964
        %v2037 = vpack.c.b16 %v1969, %v1965
        %v2038 = vpack.c.b16 %v1974, %v1970
        %v2039 = vpack.c.b16 %v1975, %v1971
        %v2040 = vpack.c.b16 %v1976, %v1972
        %v2041 = vpack.c.b16 %v1977, %v1973
        %2106 = vmatprep.subr.bf16.mxu0 %v1979
        %2107 = vmatpush1.bf16.msra.mxu0 %v1978
        %2108 = vmatprep.subr.bf16.mxu0 %v1983
        %2109 = vmatpush1.bf16.msra.mxu0 %v1982
        %2110 = vmatprep.subr.bf16.mxu0 %v1987
        %2111 = vmatpush1.bf16.msra.mxu0 %v1986
        %2112 = vmatprep.subr.bf16.mxu0 %v1991
        %2113 = vmatpush1.bf16.msra.mxu0 %v1990
        %2114 = vmatprep.subr.bf16.mxu0 %v1995
        %2115 = vmatpush1.bf16.msra.mxu0 %v1994
        %2116 = vmatprep.subr.bf16.mxu0 %v1999
        %2117 = vmatpush1.bf16.msra.mxu0 %v1998
        %2118 = vmatprep.subr.bf16.mxu0 %v2003
        %2119 = vmatpush1.bf16.msra.mxu0 %v2002
        %2120 = vmatprep.subr.bf16.mxu0 %v2007
        %2121 = vmatpush1.bf16.msra.mxu0 %v2006
        %2122 = vmatprep.subr.bf16.mxu0 %v2011
        %2123 = vmatpush1.bf16.msra.mxu0 %v2010
        %2124 = vmatprep.subr.bf16.mxu0 %v2015
        %2125 = vmatpush1.bf16.msra.mxu0 %v2014
        %2126 = vmatprep.subr.bf16.mxu0 %v2019
        %2127 = vmatpush1.bf16.msra.mxu0 %v2018
        %2128 = vmatprep.subr.bf16.mxu0 %v2023
        %2129 = vmatpush1.bf16.msra.mxu0 %v2022
        %2130 = vmatprep.subr.bf16.mxu0 %v2027
        %2131 = vmatpush1.bf16.msra.mxu0 %v2026
        %2132 = vmatprep.subr.bf16.mxu0 %v2031
        %2133 = vmatpush1.bf16.msra.mxu0 %v2030
        %2134 = vmatprep.subr.bf16.mxu0 %v2035
        %2135 = vmatpush1.bf16.msra.mxu0 %v2034
        %2136 = vmatprep.subr.bf16.mxu0 %v2039
        %2137 = vmatpush1.bf16.msra.mxu0 %v2038
        %2138 = vmatprep.mubr.bf16.mxu0 %v323
        %2139 = vmatmul.mubr.bf16.gmra.mrb[0].mxu0 %v322
        %v2140 = vpop.f32.mrb[0].mxu0
        %v2141 = vadd.f32 %v1769, %v2140
        %v2142 = vpop.f32.mrb[0].mxu0
        %v2143 = vadd.f32 %v1773, %v2142
        %v2144 = vpop.f32.mrb[0].mxu0
        %v2145 = vadd.f32 %v1769, %v2144
        %v2146 = vpop.f32.mrb[0].mxu0
        %v2147 = vadd.f32 %v1773, %v2146
        %2148 = vmatprep.mubr.bf16.mxu0 %v325
        %2149 = vmatmul.mubr.bf16.gmra.mrb[0].mxu0 %v324
        %v2150 = vpop.f32.mrb[0].mxu0
        %v2151 = vadd.f32 %v1769, %v2150
        %v2152 = vpop.f32.mrb[0].mxu0
        %v2153 = vadd.f32 %v1773, %v2152
        %v2154 = vpop.f32.mrb[0].mxu0
        %v2155 = vadd.f32 %v1769, %v2154
        %v2156 = vpop.f32.mrb[0].mxu0
        %v2157 = vadd.f32 %v1773, %v2156
        %2158 = vmatprep.mubr.bf16.mxu0 %v327
        %2159 = vmatmul.mubr.bf16.gmra.mrb[0].mxu0 %v326
        %v2160 = vpop.f32.mrb[0].mxu0
        %v2161 = vadd.f32 %v1769, %v2160
        %v2162 = vpop.f32.mrb[0].mxu0
        %v2163 = vadd.f32 %v1773, %v2162
        %v2164 = vpop.f32.mrb[0].mxu0
        %v2165 = vadd.f32 %v1769, %v2164
        %v2166 = vpop.f32.mrb[0].mxu0
        %v2167 = vadd.f32 %v1773, %v2166
        %2168 = vmatprep.mubr.bf16.mxu0 %v329
        %2169 = vmatmul.mubr.bf16.gmra.mrb[0].mxu0 %v328
        %v2170 = vpop.f32.mrb[0].mxu0
        %v2171 = vadd.f32 %v1769, %v2170
        %v2172 = vpop.f32.mrb[0].mxu0
        %v2173 = vadd.f32 %v1773, %v2172
        %v2174 = vpop.f32.mrb[0].mxu0
        %v2175 = vadd.f32 %v1769, %v2174
        %v2176 = vpop.f32.mrb[0].mxu0
        %v2177 = vadd.f32 %v1773, %v2176
        %2178 = vmatprep.mubr.bf16.mxu0 %v331
        %2179 = vmatmul.mubr.bf16.gmra.mrb[0].mxu0 %v330
        %v2180 = vpop.f32.mrb[0].mxu0
        %v2181 = vadd.f32 %v1769, %v2180
        %v2182 = vpop.f32.mrb[0].mxu0
        %v2183 = vadd.f32 %v1773, %v2182
        %v2184 = vpop.f32.mrb[0].mxu0
        %v2185 = vadd.f32 %v1769, %v2184
        %v2186 = vpop.f32.mrb[0].mxu0
        %v2187 = vadd.f32 %v1773, %v2186
        %2188 = vmatprep.mubr.bf16.mxu0 %v333
        %2189 = vmatmul.mubr.bf16.gmra.mrb[0].mxu0 %v332
        %v2190 = vpop.f32.mrb[0].mxu0
        %v2191 = vadd.f32 %v1769, %v2190
        %v2192 = vpop.f32.mrb[0].mxu0
        %v2193 = vadd.f32 %v1773, %v2192
        %v2194 = vpop.f32.mrb[0].mxu0
        %v2195 = vadd.f32 %v1769, %v2194
        %v2196 = vpop.f32.mrb[0].mxu0
        %v2197 = vadd.f32 %v1773, %v2196
        %2198 = vmatprep.mubr.bf16.mxu0 %v335
        %2199 = vmatmul.mubr.bf16.gmra.mrb[0].mxu0 %v334
        %v2200 = vpop.f32.mrb[0].mxu0
        %v2201 = vadd.f32 %v1769, %v2200
        %v2202 = vpop.f32.mrb[0].mxu0
        %v2203 = vadd.f32 %v1773, %v2202
        %v2204 = vpop.f32.mrb[0].mxu0
        %v2205 = vadd.f32 %v1769, %v2204
        %v2206 = vpop.f32.mrb[0].mxu0
        %v2207 = vadd.f32 %v1773, %v2206
        %2208 = vmatprep.mubr.bf16.mxu0 %v337
        %2209 = vmatmul.mubr.bf16.gmra.mrb[0].mxu0 %v336
        %v2210 = vpop.f32.mrb[0].mxu0
        %v2211 = vadd.f32 %v1769, %v2210
        %v2212 = vpop.f32.mrb[0].mxu0
        %v2213 = vadd.f32 %v1773, %v2212
        %v2214 = vpop.f32.mrb[0].mxu0
        %v2215 = vadd.f32 %v1769, %v2214
        %v2216 = vpop.f32.mrb[0].mxu0
        %v2217 = vadd.f32 %v1773, %v2216
        %2218 = vmatprep.mubr.bf16.mxu0 %v339
        %2219 = vmatmul.mubr.bf16.gmra.mrb[0].mxu0 %v338
        %v2220 = vpop.f32.mrb[0].mxu0
        %v2221 = vadd.f32 %v1769, %v2220
        %v2222 = vpop.f32.mrb[0].mxu0
        %v2223 = vadd.f32 %v1773, %v2222
        %v2224 = vpop.f32.mrb[0].mxu0
        %v2225 = vpop.f32.mrb[0].mxu0
        %2226 = vdwg.mxu0
        %2227 = vmatprep.subr.bf16.mxu0 %v1981
        %2228 = vmatpush1.bf16.msra.mxu0 %v1980
        %2229 = vmatprep.subr.bf16.mxu0 %v1985
        %2230 = vmatpush1.bf16.msra.mxu0 %v1984
        %2231 = vmatprep.subr.bf16.mxu0 %v1989
        %2232 = vmatpush1.bf16.msra.mxu0 %v1988
        %2233 = vmatprep.subr.bf16.mxu0 %v1993
        %2234 = vmatpush1.bf16.msra.mxu0 %v1992
        %2235 = vmatprep.subr.bf16.mxu0 %v1997
        %2236 = vmatpush1.bf16.msra.mxu0 %v1996
        %2237 = vmatprep.subr.bf16.mxu0 %v2001
        %2238 = vmatpush1.bf16.msra.mxu0 %v2000
        %2239 = vmatprep.subr.bf16.mxu0 %v2005
        %2240 = vmatpush1.bf16.msra.mxu0 %v2004
        %2241 = vmatprep.subr.bf16.mxu0 %v2009
        %2242 = vmatpush1.bf16.msra.mxu0 %v2008
        %2243 = vmatprep.subr.bf16.mxu0 %v2013
        %2244 = vmatpush1.bf16.msra.mxu0 %v2012
        %2245 = vmatprep.subr.bf16.mxu0 %v2017
        %2246 = vmatpush1.bf16.msra.mxu0 %v2016
        %2247 = vmatprep.subr.bf16.mxu0 %v2021
        %2248 = vmatpush1.bf16.msra.mxu0 %v2020
        %2249 = vmatprep.subr.bf16.mxu0 %v2025
        %2250 = vmatpush1.bf16.msra.mxu0 %v2024
        %2251 = vmatprep.subr.bf16.mxu0 %v2029
        %2252 = vmatpush1.bf16.msra.mxu0 %v2028
        %2253 = vmatprep.subr.bf16.mxu0 %v2033
        %2254 = vmatpush1.bf16.msra.mxu0 %v2032
        %2255 = vmatprep.subr.bf16.mxu0 %v2037
        %2256 = vmatpush1.bf16.msra.mxu0 %v2036
        %2257 = vmatprep.subr.bf16.mxu0 %v2041
        %2258 = vmatpush1.bf16.msra.mxu0 %v2040
        %2259 = vmatprep.mubr.bf16.mxu0 %v323
        %2260 = vmatmul.mubr.bf16.gmra.mrb[0].mxu0 %v322
        %v2261 = vpop.f32.mrb[0].mxu0
        %v2262 = vadd.f32 %v1777, %v2261
        %v2263 = vpop.f32.mrb[0].mxu0
        %v2264 = vadd.f32 %v1781, %v2263
        %v2265 = vpop.f32.mrb[0].mxu0
        %v2266 = vadd.f32 %v1777, %v2265
        %v2267 = vpop.f32.mrb[0].mxu0
        %v2268 = vadd.f32 %v1781, %v2267
        %2269 = vmatprep.mubr.bf16.mxu0 %v325
        %2270 = vmatmul.mubr.bf16.gmra.mrb[0].mxu0 %v324
        %v2271 = vpop.f32.mrb[0].mxu0
        %v2272 = vadd.f32 %v1777, %v2271
        %v2273 = vpop.f32.mrb[0].mxu0
        %v2274 = vadd.f32 %v1781, %v2273
        %v2275 = vpop.f32.mrb[0].mxu0
        %v2276 = vadd.f32 %v1777, %v2275
        %v2277 = vpop.f32.mrb[0].mxu0
        %v2278 = vadd.f32 %v1781, %v2277
        %2279 = vmatprep.mubr.bf16.mxu0 %v327
        %2280 = vmatmul.mubr.bf16.gmra.mrb[0].mxu0 %v326
        %v2281 = vpop.f32.mrb[0].mxu0
        %v2282 = vadd.f32 %v1777, %v2281
        %v2283 = vpop.f32.mrb[0].mxu0
        %v2284 = vadd.f32 %v1781, %v2283
        %v2285 = vpop.f32.mrb[0].mxu0
        %v2286 = vadd.f32 %v1777, %v2285
        %v2287 = vpop.f32.mrb[0].mxu0
        %v2288 = vadd.f32 %v1781, %v2287
        %2289 = vmatprep.mubr.bf16.mxu0 %v329
        %2290 = vmatmul.mubr.bf16.gmra.mrb[0].mxu0 %v328
        %v2291 = vpop.f32.mrb[0].mxu0
        %v2292 = vadd.f32 %v1777, %v2291
        %v2293 = vpop.f32.mrb[0].mxu0
        %v2294 = vadd.f32 %v1781, %v2293
        %v2295 = vpop.f32.mrb[0].mxu0
        %v2296 = vadd.f32 %v1777, %v2295
        %v2297 = vpop.f32.mrb[0].mxu0
        %v2298 = vadd.f32 %v1781, %v2297
        %2299 = vmatprep.mubr.bf16.mxu0 %v331
        %2300 = vmatmul.mubr.bf16.gmra.mrb[0].mxu0 %v330
        %v2301 = vpop.f32.mrb[0].mxu0
        %v2302 = vadd.f32 %v1777, %v2301
        %v2303 = vpop.f32.mrb[0].mxu0
        %v2304 = vadd.f32 %v1781, %v2303
        %v2305 = vpop.f32.mrb[0].mxu0
        %v2306 = vadd.f32 %v1777, %v2305
        %v2307 = vpop.f32.mrb[0].mxu0
        %v2308 = vadd.f32 %v1781, %v2307
        %2309 = vmatprep.mubr.bf16.mxu0 %v333
        %2310 = vmatmul.mubr.bf16.gmra.mrb[0].mxu0 %v332
        %v2311 = vpop.f32.mrb[0].mxu0
        %v2312 = vadd.f32 %v1777, %v2311
        %v2313 = vpop.f32.mrb[0].mxu0
        %v2314 = vadd.f32 %v1781, %v2313
        %v2315 = vpop.f32.mrb[0].mxu0
        %v2316 = vadd.f32 %v1777, %v2315
        %v2317 = vpop.f32.mrb[0].mxu0
        %v2318 = vadd.f32 %v1781, %v2317
        %2319 = vmatprep.mubr.bf16.mxu0 %v335
        %2320 = vmatmul.mubr.bf16.gmra.mrb[0].mxu0 %v334
        %v2321 = vpop.f32.mrb[0].mxu0
        %v2322 = vadd.f32 %v1777, %v2321
        %v2323 = vpop.f32.mrb[0].mxu0
        %v2324 = vadd.f32 %v1781, %v2323
        %v2325 = vpop.f32.mrb[0].mxu0
        %v2326 = vadd.f32 %v1777, %v2325
        %v2327 = vpop.f32.mrb[0].mxu0
        %v2328 = vadd.f32 %v1781, %v2327
        %2329 = vmatprep.mubr.bf16.mxu0 %v337
        %2330 = vmatmul.mubr.bf16.gmra.mrb[0].mxu0 %v336
        %v2331 = vpop.f32.mrb[0].mxu0
        %v2332 = vadd.f32 %v1777, %v2331
        %v2333 = vpop.f32.mrb[0].mxu0
        %v2334 = vadd.f32 %v1781, %v2333
        %v2335 = vpop.f32.mrb[0].mxu0
        %v2336 = vadd.f32 %v1777, %v2335
        %v2337 = vpop.f32.mrb[0].mxu0
        %v2338 = vadd.f32 %v1781, %v2337
        %2339 = vmatprep.mubr.bf16.mxu0 %v339
        %2340 = vmatmul.mubr.bf16.gmra.mrb[0].mxu0 %v338
        %v2341 = vpop.f32.mrb[0].mxu0
        %v2342 = vadd.f32 %v1777, %v2341
        %v2343 = vpop.f32.mrb[0].mxu0
        %v2344 = vadd.f32 %v1781, %v2343
        %v2345 = vpop.f32.mrb[0].mxu0
        %v2346 = vpop.f32.mrb[0].mxu0
        %2347 = vdwg.mxu0
        %v2348 = vmul.f32 %v2141, %v2141
        %v2349 = vmul.f32 %v2143, %v2143
        %v2350 = vmul.f32 %v2262, %v2262
        %v2351 = vmul.f32 %v2264, %v2264
        %v2352 = vmul.f32 %v2145, %v2145
        %v2353 = vmul.f32 %v2147, %v2147
        %v2354 = vmul.f32 %v2266, %v2266
        %v2355 = vmul.f32 %v2268, %v2268
        %v2356 = vmul.f32 %v2151, %v2151
        %v2357 = vmul.f32 %v2153, %v2153
        %v2358 = vmul.f32 %v2272, %v2272
        %v2359 = vmul.f32 %v2274, %v2274
        %v2360 = vmul.f32 %v2155, %v2155
        %v2361 = vmul.f32 %v2157, %v2157
        %v2362 = vmul.f32 %v2276, %v2276
        %v2363 = vmul.f32 %v2278, %v2278
        %v2364 = vmul.f32 %v2161, %v2161
        %v2365 = vmul.f32 %v2163, %v2163
        %v2366 = vmul.f32 %v2282, %v2282
        %v2367 = vmul.f32 %v2284, %v2284
        %v2368 = vmul.f32 %v2165, %v2165
        %v2369 = vmul.f32 %v2167, %v2167
        %v2370 = vmul.f32 %v2286, %v2286
        %v2371 = vmul.f32 %v2288, %v2288
        %v2372 = vmul.f32 %v2171, %v2171
        %v2373 = vmul.f32 %v2173, %v2173
        %v2374 = vmul.f32 %v2292, %v2292
        %v2375 = vmul.f32 %v2294, %v2294
        %v2376 = vmul.f32 %v2175, %v2175
        %v2377 = vmul.f32 %v2177, %v2177
        %v2378 = vmul.f32 %v2296, %v2296
        %v2379 = vmul.f32 %v2298, %v2298
        %v2380 = vmul.f32 %v2181, %v2181
        %v2381 = vmul.f32 %v2183, %v2183
        %v2382 = vmul.f32 %v2302, %v2302
        %v2383 = vmul.f32 %v2304, %v2304
        %v2384 = vmul.f32 %v2185, %v2185
        %v2385 = vmul.f32 %v2187, %v2187
        %v2386 = vmul.f32 %v2306, %v2306
        %v2387 = vmul.f32 %v2308, %v2308
        %v2388 = vmul.f32 %v2191, %v2191
        %v2389 = vmul.f32 %v2193, %v2193
        %v2390 = vmul.f32 %v2312, %v2312
        %v2391 = vmul.f32 %v2314, %v2314
        %v2392 = vmul.f32 %v2195, %v2195
        %v2393 = vmul.f32 %v2197, %v2197
        %v2394 = vmul.f32 %v2316, %v2316
        %v2395 = vmul.f32 %v2318, %v2318
        %v2396 = vmul.f32 %v2201, %v2201
        %v2397 = vmul.f32 %v2203, %v2203
        %v2398 = vmul.f32 %v2322, %v2322
        %v2399 = vmul.f32 %v2324, %v2324
        %v2400 = vmul.f32 %v2205, %v2205
        %v2401 = vmul.f32 %v2207, %v2207
        %v2402 = vmul.f32 %v2326, %v2326
        %v2403 = vmul.f32 %v2328, %v2328
        %v2404 = vmul.f32 %v2211, %v2211
        %v2405 = vmul.f32 %v2213, %v2213
        %v2406 = vmul.f32 %v2332, %v2332
        %v2407 = vmul.f32 %v2334, %v2334
        %v2408 = vmul.f32 %v2215, %v2215
        %v2409 = vmul.f32 %v2217, %v2217
        %v2410 = vmul.f32 %v2336, %v2336
        %v2411 = vmul.f32 %v2338, %v2338
        %v2412 = vmul.f32 %v2221, %v2221
        %v2413 = vmul.f32 %v2223, %v2223
        %v2414 = vmul.f32 %v2342, %v2342
        %v2415 = vmul.f32 %v2344, %v2344
        %v2416 = vmul.f32 %v2141, %v2348
        %v2417 = vmul.f32 %v2143, %v2349
        %v2418 = vmul.f32 %v2262, %v2350
        %v2419 = vmul.f32 %v2264, %v2351
        %v2420 = vmul.f32 %v2145, %v2352
        %v2421 = vmul.f32 %v2147, %v2353
        %v2422 = vmul.f32 %v2266, %v2354
        %v2423 = vmul.f32 %v2268, %v2355
        %v2424 = vmul.f32 %v2151, %v2356
        %v2425 = vmul.f32 %v2153, %v2357
        %v2426 = vmul.f32 %v2272, %v2358
        %v2427 = vmul.f32 %v2274, %v2359
        %v2428 = vmul.f32 %v2155, %v2360
        %v2429 = vmul.f32 %v2157, %v2361
        %v2430 = vmul.f32 %v2276, %v2362
        %v2431 = vmul.f32 %v2278, %v2363
        %v2432 = vmul.f32 %v2161, %v2364
        %v2433 = vmul.f32 %v2163, %v2365
        %v2434 = vmul.f32 %v2282, %v2366
        %v2435 = vmul.f32 %v2284, %v2367
        %v2436 = vmul.f32 %v2165, %v2368
        %v2437 = vmul.f32 %v2167, %v2369
        %v2438 = vmul.f32 %v2286, %v2370
        %v2439 = vmul.f32 %v2288, %v2371
        %v2440 = vmul.f32 %v2171, %v2372
        %v2441 = vmul.f32 %v2173, %v2373
        %v2442 = vmul.f32 %v2292, %v2374
        %v2443 = vmul.f32 %v2294, %v2375
        %v2444 = vmul.f32 %v2175, %v2376
        %v2445 = vmul.f32 %v2177, %v2377
        %v2446 = vmul.f32 %v2296, %v2378
        %v2447 = vmul.f32 %v2298, %v2379
        %v2448 = vmul.f32 %v2181, %v2380
        %v2449 = vmul.f32 %v2183, %v2381
        %v2450 = vmul.f32 %v2302, %v2382
        %v2451 = vmul.f32 %v2304, %v2383
        %v2452 = vmul.f32 %v2185, %v2384
        %v2453 = vmul.f32 %v2187, %v2385
        %v2454 = vmul.f32 %v2306, %v2386
        %v2455 = vmul.f32 %v2308, %v2387
        %v2456 = vmul.f32 %v2191, %v2388
        %v2457 = vmul.f32 %v2193, %v2389
        %v2458 = vmul.f32 %v2312, %v2390
        %v2459 = vmul.f32 %v2314, %v2391
        %v2460 = vmul.f32 %v2195, %v2392
        %v2461 = vmul.f32 %v2197, %v2393
        %v2462 = vmul.f32 %v2316, %v2394
        %v2463 = vmul.f32 %v2318, %v2395
        %v2464 = vmul.f32 %v2201, %v2396
        %v2465 = vmul.f32 %v2203, %v2397
        %v2466 = vmul.f32 %v2322, %v2398
        %v2467 = vmul.f32 %v2324, %v2399
        %v2468 = vmul.f32 %v2205, %v2400
        %v2469 = vmul.f32 %v2207, %v2401
        %v2470 = vmul.f32 %v2326, %v2402
        %v2471 = vmul.f32 %v2328, %v2403
        %v2472 = vmul.f32 %v2211, %v2404
        %v2473 = vmul.f32 %v2213, %v2405
        %v2474 = vmul.f32 %v2332, %v2406
        %v2475 = vmul.f32 %v2334, %v2407
        %v2476 = vmul.f32 %v2215, %v2408
        %v2477 = vmul.f32 %v2217, %v2409
        %v2478 = vmul.f32 %v2336, %v2410
        %v2479 = vmul.f32 %v2338, %v2411
        %v2480 = vmul.f32 %v2221, %v2412
        %v2481 = vmul.f32 %v2223, %v2413
        %v2482 = vmul.f32 %v2342, %v2414
        %v2483 = vmul.f32 %v2344, %v2415
        %v2484 = vmul.f32 %v2416, 0.044715
        %v2485 = vmul.f32 %v2417, 0.044715
        %v2486 = vmul.f32 %v2418, 0.044715
        %v2487 = vmul.f32 %v2419, 0.044715
        %v2488 = vmul.f32 %v2420, 0.044715
        %v2489 = vmul.f32 %v2421, 0.044715
        %v2490 = vmul.f32 %v2422, 0.044715
        %v2491 = vmul.f32 %v2423, 0.044715
        %v2492 = vmul.f32 %v2424, 0.044715
        %v2493 = vmul.f32 %v2425, 0.044715
        %v2494 = vmul.f32 %v2426, 0.044715
        %v2495 = vmul.f32 %v2427, 0.044715
        %v2496 = vmul.f32 %v2428, 0.044715
        %v2497 = vmul.f32 %v2429, 0.044715
        %v2498 = vmul.f32 %v2430, 0.044715
        %v2499 = vmul.f32 %v2431, 0.044715
        %v2500 = vmul.f32 %v2432, 0.044715
        %v2501 = vmul.f32 %v2433, 0.044715
        %v2502 = vmul.f32 %v2434, 0.044715
        %v2503 = vmul.f32 %v2435, 0.044715
        %v2504 = vmul.f32 %v2436, 0.044715
        %v2505 = vmul.f32 %v2437, 0.044715
        %v2506 = vmul.f32 %v2438, 0.044715
        %v2507 = vmul.f32 %v2439, 0.044715
        %v2508 = vmul.f32 %v2440, 0.044715
        %v2509 = vmul.f32 %v2441, 0.044715
        %v2510 = vmul.f32 %v2442, 0.044715
        %v2511 = vmul.f32 %v2443, 0.044715
        %v2512 = vmul.f32 %v2444, 0.044715
        %v2513 = vmul.f32 %v2445, 0.044715
        %v2514 = vmul.f32 %v2446, 0.044715
        %v2515 = vmul.f32 %v2447, 0.044715
        %v2516 = vmul.f32 %v2448, 0.044715
        %v2517 = vmul.f32 %v2449, 0.044715
        %v2518 = vmul.f32 %v2450, 0.044715
        %v2519 = vmul.f32 %v2451, 0.044715
        %v2520 = vmul.f32 %v2452, 0.044715
        %v2521 = vmul.f32 %v2453, 0.044715
        %v2522 = vmul.f32 %v2454, 0.044715
        %v2523 = vmul.f32 %v2455, 0.044715
        %v2524 = vmul.f32 %v2456, 0.044715
        %v2525 = vmul.f32 %v2457, 0.044715
        %v2526 = vmul.f32 %v2458, 0.044715
        %v2527 = vmul.f32 %v2459, 0.044715
        %v2528 = vmul.f32 %v2460, 0.044715
        %v2529 = vmul.f32 %v2461, 0.044715
        %v2530 = vmul.f32 %v2462, 0.044715
        %v2531 = vmul.f32 %v2463, 0.044715
        %v2532 = vmul.f32 %v2464, 0.044715
        %v2533 = vmul.f32 %v2465, 0.044715
        %v2534 = vmul.f32 %v2466, 0.044715
        %v2535 = vmul.f32 %v2467, 0.044715
        %v2536 = vmul.f32 %v2468, 0.044715
        %v2537 = vmul.f32 %v2469, 0.044715
        %v2538 = vmul.f32 %v2470, 0.044715
        %v2539 = vmul.f32 %v2471, 0.044715
        %v2540 = vmul.f32 %v2472, 0.044715
        %v2541 = vmul.f32 %v2473, 0.044715
        %v2542 = vmul.f32 %v2474, 0.044715
        %v2543 = vmul.f32 %v2475, 0.044715
        %v2544 = vmul.f32 %v2476, 0.044715
        %v2545 = vmul.f32 %v2477, 0.044715
        %v2546 = vmul.f32 %v2478, 0.044715
        %v2547 = vmul.f32 %v2479, 0.044715
        %v2548 = vmul.f32 %v2480, 0.044715
        %v2549 = vmul.f32 %v2481, 0.044715
        %v2550 = vmul.f32 %v2482, 0.044715
        %v2551 = vmul.f32 %v2483, 0.044715
        %v2552 = vadd.f32 %v2141, %v2484
        %v2553 = vadd.f32 %v2143, %v2485
        %v2554 = vadd.f32 %v2262, %v2486
        %v2555 = vadd.f32 %v2264, %v2487
        %v2556 = vadd.f32 %v2145, %v2488
        %v2557 = vadd.f32 %v2147, %v2489
        %v2558 = vadd.f32 %v2266, %v2490
        %v2559 = vadd.f32 %v2268, %v2491
        %v2560 = vadd.f32 %v2151, %v2492
        %v2561 = vadd.f32 %v2153, %v2493
        %v2562 = vadd.f32 %v2272, %v2494
        %v2563 = vadd.f32 %v2274, %v2495
        %v2564 = vadd.f32 %v2155, %v2496
        %v2565 = vadd.f32 %v2157, %v2497
        %v2566 = vadd.f32 %v2276, %v2498
        %v2567 = vadd.f32 %v2278, %v2499
        %v2568 = vadd.f32 %v2161, %v2500
        %v2569 = vadd.f32 %v2163, %v2501
        %v2570 = vadd.f32 %v2282, %v2502
        %v2571 = vadd.f32 %v2284, %v2503
        %v2572 = vadd.f32 %v2165, %v2504
        %v2573 = vadd.f32 %v2167, %v2505
        %v2574 = vadd.f32 %v2286, %v2506
        %v2575 = vadd.f32 %v2288, %v2507
        %v2576 = vadd.f32 %v2171, %v2508
        %v2577 = vadd.f32 %v2173, %v2509
        %v2578 = vadd.f32 %v2292, %v2510
        %v2579 = vadd.f32 %v2294, %v2511
        %v2580 = vadd.f32 %v2175, %v2512
        %v2581 = vadd.f32 %v2177, %v2513
        %v2582 = vadd.f32 %v2296, %v2514
        %v2583 = vadd.f32 %v2298, %v2515
        %v2584 = vadd.f32 %v2181, %v2516
        %v2585 = vadd.f32 %v2183, %v2517
        %v2586 = vadd.f32 %v2302, %v2518
        %v2587 = vadd.f32 %v2304, %v2519
        %v2588 = vadd.f32 %v2185, %v2520
        %v2589 = vadd.f32 %v2187, %v2521
        %v2590 = vadd.f32 %v2306, %v2522
        %v2591 = vadd.f32 %v2308, %v2523
        %v2592 = vadd.f32 %v2191, %v2524
        %v2593 = vadd.f32 %v2193, %v2525
        %v2594 = vadd.f32 %v2312, %v2526
        %v2595 = vadd.f32 %v2314, %v2527
        %v2596 = vadd.f32 %v2195, %v2528
        %v2597 = vadd.f32 %v2197, %v2529
        %v2598 = vadd.f32 %v2316, %v2530
        %v2599 = vadd.f32 %v2318, %v2531
        %v2600 = vadd.f32 %v2201, %v2532
        %v2601 = vadd.f32 %v2203, %v2533
        %v2602 = vadd.f32 %v2322, %v2534
        %v2603 = vadd.f32 %v2324, %v2535
        %v2604 = vadd.f32 %v2205, %v2536
        %v2605 = vadd.f32 %v2207, %v2537
        %v2606 = vadd.f32 %v2326, %v2538
        %v2607 = vadd.f32 %v2328, %v2539
        %v2608 = vadd.f32 %v2211, %v2540
        %v2609 = vadd.f32 %v2213, %v2541
        %v2610 = vadd.f32 %v2332, %v2542
        %v2611 = vadd.f32 %v2334, %v2543
        %v2612 = vadd.f32 %v2215, %v2544
        %v2613 = vadd.f32 %v2217, %v2545
        %v2614 = vadd.f32 %v2336, %v2546
        %v2615 = vadd.f32 %v2338, %v2547
        %v2616 = vadd.f32 %v2221, %v2548
        %v2617 = vadd.f32 %v2223, %v2549
        %v2618 = vadd.f32 %v2342, %v2550
        %v2619 = vadd.f32 %v2344, %v2551
        %v2620 = vmul.f32 %v2552, 0.7978846
        %v2621 = vmul.f32 %v2553, 0.7978846
        %v2622 = vmul.f32 %v2554, 0.7978846
        %v2623 = vmul.f32 %v2555, 0.7978846
        %v2624 = vmul.f32 %v2556, 0.7978846
        %v2625 = vmul.f32 %v2557, 0.7978846
        %v2626 = vmul.f32 %v2558, 0.7978846
        %v2627 = vmul.f32 %v2559, 0.7978846
        %v2628 = vmul.f32 %v2560, 0.7978846
        %v2629 = vmul.f32 %v2561, 0.7978846
        %v2630 = vmul.f32 %v2562, 0.7978846
        %v2631 = vmul.f32 %v2563, 0.7978846
        %v2632 = vmul.f32 %v2564, 0.7978846
        %v2633 = vmul.f32 %v2565, 0.7978846
        %v2634 = vmul.f32 %v2566, 0.7978846
        %v2635 = vmul.f32 %v2567, 0.7978846
        %v2636 = vmul.f32 %v2568, 0.7978846
        %v2637 = vmul.f32 %v2569, 0.7978846
        %v2638 = vmul.f32 %v2570, 0.7978846
        %v2639 = vmul.f32 %v2571, 0.7978846
        %v2640 = vmul.f32 %v2572, 0.7978846
        %v2641 = vmul.f32 %v2573, 0.7978846
        %v2642 = vmul.f32 %v2574, 0.7978846
        %v2643 = vmul.f32 %v2575, 0.7978846
        %v2644 = vmul.f32 %v2576, 0.7978846
        %v2645 = vmul.f32 %v2577, 0.7978846
        %v2646 = vmul.f32 %v2578, 0.7978846
        %v2647 = vmul.f32 %v2579, 0.7978846
        %v2648 = vmul.f32 %v2580, 0.7978846
        %v2649 = vmul.f32 %v2581, 0.7978846
        %v2650 = vmul.f32 %v2582, 0.7978846
        %v2651 = vmul.f32 %v2583, 0.7978846
        %v2652 = vmul.f32 %v2584, 0.7978846
        %v2653 = vmul.f32 %v2585, 0.7978846
        %v2654 = vmul.f32 %v2586, 0.7978846
        %v2655 = vmul.f32 %v2587, 0.7978846
        %v2656 = vmul.f32 %v2588, 0.7978846
        %v2657 = vmul.f32 %v2589, 0.7978846
        %v2658 = vmul.f32 %v2590, 0.7978846
        %v2659 = vmul.f32 %v2591, 0.7978846
        %v2660 = vmul.f32 %v2592, 0.7978846
        %v2661 = vmul.f32 %v2593, 0.7978846
        %v2662 = vmul.f32 %v2594, 0.7978846
        %v2663 = vmul.f32 %v2595, 0.7978846
        %v2664 = vmul.f32 %v2596, 0.7978846
        %v2665 = vmul.f32 %v2597, 0.7978846
        %v2666 = vmul.f32 %v2598, 0.7978846
        %v2667 = vmul.f32 %v2599, 0.7978846
        %v2668 = vmul.f32 %v2600, 0.7978846
        %v2669 = vmul.f32 %v2601, 0.7978846
        %v2670 = vmul.f32 %v2602, 0.7978846
        %v2671 = vmul.f32 %v2603, 0.7978846
        %v2672 = vmul.f32 %v2604, 0.7978846
        %v2673 = vmul.f32 %v2605, 0.7978846
        %v2674 = vmul.f32 %v2606, 0.7978846
        %v2675 = vmul.f32 %v2607, 0.7978846
        %v2676 = vmul.f32 %v2608, 0.7978846
        %v2677 = vmul.f32 %v2609, 0.7978846
        %v2678 = vmul.f32 %v2610, 0.7978846
        %v2679 = vmul.f32 %v2611, 0.7978846
        %v2680 = vmul.f32 %v2612, 0.7978846
        %v2681 = vmul.f32 %v2613, 0.7978846
        %v2682 = vmul.f32 %v2614, 0.7978846
        %v2683 = vmul.f32 %v2615, 0.7978846
        %v2684 = vmul.f32 %v2616, 0.7978846
        %v2685 = vmul.f32 %v2617, 0.7978846
        %v2686 = vmul.f32 %v2618, 0.7978846
        %v2687 = vmul.f32 %v2619, 0.7978846
        %v2688 = vtanh.pop %v2620
        %v2689 = vtanh.pop %v2621
        %v2690 = vtanh.pop %v2622
        %v2691 = vtanh.pop %v2623
        %v2692 = vtanh.pop %v2624
        %v2693 = vtanh.pop %v2625
        %v2694 = vtanh.pop %v2626
        %v2695 = vtanh.pop %v2627
        %v2696 = vtanh.pop %v2628
        %v2697 = vtanh.pop %v2629
        %v2698 = vtanh.pop %v2630
        %v2699 = vtanh.pop %v2631
        %v2700 = vtanh.pop %v2632
        %v2701 = vtanh.pop %v2633
        %v2702 = vtanh.pop %v2634
        %v2703 = vtanh.pop %v2635
        %v2704 = vtanh.pop %v2636
        %v2705 = vtanh.pop %v2637
        %v2706 = vtanh.pop %v2638
        %v2707 = vtanh.pop %v2639
        %v2708 = vtanh.pop %v2640
        %v2709 = vtanh.pop %v2641
        %v2710 = vtanh.pop %v2642
        %v2711 = vtanh.pop %v2643
        %v2712 = vtanh.pop %v2644
        %v2713 = vtanh.pop %v2645
        %v2714 = vtanh.pop %v2646
        %v2715 = vtanh.pop %v2647
        %v2716 = vtanh.pop %v2648
        %v2717 = vtanh.pop %v2649
        %v2718 = vtanh.pop %v2650
        %v2719 = vtanh.pop %v2651
        %v2720 = vtanh.pop %v2652
        %v2721 = vtanh.pop %v2653
        %v2722 = vtanh.pop %v2654
        %v2723 = vtanh.pop %v2655
        %v2724 = vtanh.pop %v2656
        %v2725 = vtanh.pop %v2657
        %v2726 = vtanh.pop %v2658
        %v2727 = vtanh.pop %v2659
        %v2728 = vtanh.pop %v2660
        %v2729 = vtanh.pop %v2661
        %v2730 = vtanh.pop %v2662
        %v2731 = vtanh.pop %v2663
        %v2732 = vtanh.pop %v2664
        %v2733 = vtanh.pop %v2665
        %v2734 = vtanh.pop %v2666
        %v2735 = vtanh.pop %v2667
        %v2736 = vtanh.pop %v2668
        %v2737 = vtanh.pop %v2669
        %v2738 = vtanh.pop %v2670
        %v2739 = vtanh.pop %v2671
        %v2740 = vtanh.pop %v2672
        %v2741 = vtanh.pop %v2673
        %v2742 = vtanh.pop %v2674
        %v2743 = vtanh.pop %v2675
        %v2744 = vtanh.pop %v2676
        %v2745 = vtanh.pop %v2677
        %v2746 = vtanh.pop %v2678
        %v2747 = vtanh.pop %v2679
        %v2748 = vtanh.pop %v2680
        %v2749 = vtanh.pop %v2681
        %v2750 = vtanh.pop %v2682
        %v2751 = vtanh.pop %v2683
        %v2752 = vtanh.pop %v2684
        %v2753 = vtanh.pop %v2685
        %v2754 = vtanh.pop %v2686
        %v2755 = vtanh.pop %v2687
        %v2756 = vadd.f32 %v2688, 1.0
        %v2757 = vadd.f32 %v2689, 1.0
        %v2758 = vadd.f32 %v2690, 1.0
        %v2759 = vadd.f32 %v2691, 1.0
        %v2760 = vadd.f32 %v2692, 1.0
        %v2761 = vadd.f32 %v2693, 1.0
        %v2762 = vadd.f32 %v2694, 1.0
        %v2763 = vadd.f32 %v2695, 1.0
        %v2764 = vadd.f32 %v2696, 1.0
        %v2765 = vadd.f32 %v2697, 1.0
        %v2766 = vadd.f32 %v2698, 1.0
        %v2767 = vadd.f32 %v2699, 1.0
        %v2768 = vadd.f32 %v2700, 1.0
        %v2769 = vadd.f32 %v2701, 1.0
        %v2770 = vadd.f32 %v2702, 1.0
        %v2771 = vadd.f32 %v2703, 1.0
        %v2772 = vadd.f32 %v2704, 1.0
        %v2773 = vadd.f32 %v2705, 1.0
        %v2774 = vadd.f32 %v2706, 1.0
        %v2775 = vadd.f32 %v2707, 1.0
        %v2776 = vadd.f32 %v2708, 1.0
        %v2777 = vadd.f32 %v2709, 1.0
        %v2778 = vadd.f32 %v2710, 1.0
        %v2779 = vadd.f32 %v2711, 1.0
        %v2780 = vadd.f32 %v2712, 1.0
        %v2781 = vadd.f32 %v2713, 1.0
        %v2782 = vadd.f32 %v2714, 1.0
        %v2783 = vadd.f32 %v2715, 1.0
        %v2784 = vadd.f32 %v2716, 1.0
        %v2785 = vadd.f32 %v2717, 1.0
        %v2786 = vadd.f32 %v2718, 1.0
        %v2787 = vadd.f32 %v2719, 1.0
        %v2788 = vadd.f32 %v2720, 1.0
        %v2789 = vadd.f32 %v2721, 1.0
        %v2790 = vadd.f32 %v2722, 1.0
        %v2791 = vadd.f32 %v2723, 1.0
        %v2792 = vadd.f32 %v2724, 1.0
        %v2793 = vadd.f32 %v2725, 1.0
        %v2794 = vadd.f32 %v2726, 1.0
        %v2795 = vadd.f32 %v2727, 1.0
        %v2796 = vadd.f32 %v2728, 1.0
        %v2797 = vadd.f32 %v2729, 1.0
        %v2798 = vadd.f32 %v2730, 1.0
        %v2799 = vadd.f32 %v2731, 1.0
        %v2800 = vadd.f32 %v2732, 1.0
        %v2801 = vadd.f32 %v2733, 1.0
        %v2802 = vadd.f32 %v2734, 1.0
        %v2803 = vadd.f32 %v2735, 1.0
        %v2804 = vadd.f32 %v2736, 1.0
        %v2805 = vadd.f32 %v2737, 1.0
        %v2806 = vadd.f32 %v2738, 1.0
        %v2807 = vadd.f32 %v2739, 1.0
        %v2808 = vadd.f32 %v2740, 1.0
        %v2809 = vadd.f32 %v2741, 1.0
        %v2810 = vadd.f32 %v2742, 1.0
        %v2811 = vadd.f32 %v2743, 1.0
        %v2812 = vadd.f32 %v2744, 1.0
        %v2813 = vadd.f32 %v2745, 1.0
        %v2814 = vadd.f32 %v2746, 1.0
        %v2815 = vadd.f32 %v2747, 1.0
        %v2816 = vadd.f32 %v2748, 1.0
        %v2817 = vadd.f32 %v2749, 1.0
        %v2818 = vadd.f32 %v2750, 1.0
        %v2819 = vadd.f32 %v2751, 1.0
        %v2820 = vadd.f32 %v2752, 1.0
        %v2821 = vadd.f32 %v2753, 1.0
        %v2822 = vadd.f32 %v2754, 1.0
        %v2823 = vadd.f32 %v2755, 1.0
        %v2824 = vmul.f32 %v2756, 0.5
        %v2825 = vmul.f32 %v2757, 0.5
        %v2826 = vmul.f32 %v2758, 0.5
        %v2827 = vmul.f32 %v2759, 0.5
        %v2828 = vmul.f32 %v2760, 0.5
        %v2829 = vmul.f32 %v2761, 0.5
        %v2830 = vmul.f32 %v2762, 0.5
        %v2831 = vmul.f32 %v2763, 0.5
        %v2832 = vmul.f32 %v2764, 0.5
        %v2833 = vmul.f32 %v2765, 0.5
        %v2834 = vmul.f32 %v2766, 0.5
        %v2835 = vmul.f32 %v2767, 0.5
        %v2836 = vmul.f32 %v2768, 0.5
        %v2837 = vmul.f32 %v2769, 0.5
        %v2838 = vmul.f32 %v2770, 0.5
        %v2839 = vmul.f32 %v2771, 0.5
        %v2840 = vmul.f32 %v2772, 0.5
        %v2841 = vmul.f32 %v2773, 0.5
        %v2842 = vmul.f32 %v2774, 0.5
        %v2843 = vmul.f32 %v2775, 0.5
        %v2844 = vmul.f32 %v2776, 0.5
        %v2845 = vmul.f32 %v2777, 0.5
        %v2846 = vmul.f32 %v2778, 0.5
        %v2847 = vmul.f32 %v2779, 0.5
        %v2848 = vmul.f32 %v2780, 0.5
        %v2849 = vmul.f32 %v2781, 0.5
        %v2850 = vmul.f32 %v2782, 0.5
        %v2851 = vmul.f32 %v2783, 0.5
        %v2852 = vmul.f32 %v2784, 0.5
        %v2853 = vmul.f32 %v2785, 0.5
        %v2854 = vmul.f32 %v2786, 0.5
        %v2855 = vmul.f32 %v2787, 0.5
        %v2856 = vmul.f32 %v2788, 0.5
        %v2857 = vmul.f32 %v2789, 0.5
        %v2858 = vmul.f32 %v2790, 0.5
        %v2859 = vmul.f32 %v2791, 0.5
        %v2860 = vmul.f32 %v2792, 0.5
        %v2861 = vmul.f32 %v2793, 0.5
        %v2862 = vmul.f32 %v2794, 0.5
        %v2863 = vmul.f32 %v2795, 0.5
        %v2864 = vmul.f32 %v2796, 0.5
        %v2865 = vmul.f32 %v2797, 0.5
        %v2866 = vmul.f32 %v2798, 0.5
        %v2867 = vmul.f32 %v2799, 0.5
        %v2868 = vmul.f32 %v2800, 0.5
        %v2869 = vmul.f32 %v2801, 0.5
        %v2870 = vmul.f32 %v2802, 0.5
        %v2871 = vmul.f32 %v2803, 0.5
        %v2872 = vmul.f32 %v2804, 0.5
        %v2873 = vmul.f32 %v2805, 0.5
        %v2874 = vmul.f32 %v2806, 0.5
        %v2875 = vmul.f32 %v2807, 0.5
        %v2876 = vmul.f32 %v2808, 0.5
        %v2877 = vmul.f32 %v2809, 0.5
        %v2878 = vmul.f32 %v2810, 0.5
        %v2879 = vmul.f32 %v2811, 0.5
        %v2880 = vmul.f32 %v2812, 0.5
        %v2881 = vmul.f32 %v2813, 0.5
        %v2882 = vmul.f32 %v2814, 0.5
        %v2883 = vmul.f32 %v2815, 0.5
        %v2884 = vmul.f32 %v2816, 0.5
        %v2885 = vmul.f32 %v2817, 0.5
        %v2886 = vmul.f32 %v2818, 0.5
        %v2887 = vmul.f32 %v2819, 0.5
        %v2888 = vmul.f32 %v2820, 0.5
        %v2889 = vmul.f32 %v2821, 0.5
        %v2890 = vmul.f32 %v2822, 0.5
        %v2891 = vmul.f32 %v2823, 0.5
        %v2892 = vmul.f32 %v2141, %v2824
        %v2893 = vmul.f32 %v2143, %v2825
        %v2894 = vmul.f32 %v2262, %v2826
        %v2895 = vmul.f32 %v2264, %v2827
        %v2896 = vmul.f32 %v2145, %v2828
        %v2897 = vmul.f32 %v2147, %v2829
        %v2898 = vmul.f32 %v2266, %v2830
        %v2899 = vmul.f32 %v2268, %v2831
        %v2900 = vmul.f32 %v2151, %v2832
        %v2901 = vmul.f32 %v2153, %v2833
        %v2902 = vmul.f32 %v2272, %v2834
        %v2903 = vmul.f32 %v2274, %v2835
        %v2904 = vmul.f32 %v2155, %v2836
        %v2905 = vmul.f32 %v2157, %v2837
        %v2906 = vmul.f32 %v2276, %v2838
        %v2907 = vmul.f32 %v2278, %v2839
        %v2908 = vmul.f32 %v2161, %v2840
        %v2909 = vmul.f32 %v2163, %v2841
        %v2910 = vmul.f32 %v2282, %v2842
        %v2911 = vmul.f32 %v2284, %v2843
        %v2912 = vmul.f32 %v2165, %v2844
        %v2913 = vmul.f32 %v2167, %v2845
        %v2914 = vmul.f32 %v2286, %v2846
        %v2915 = vmul.f32 %v2288, %v2847
        %v2916 = vmul.f32 %v2171, %v2848
        %v2917 = vmul.f32 %v2173, %v2849
        %v2918 = vmul.f32 %v2292, %v2850
        %v2919 = vmul.f32 %v2294, %v2851
        %v2920 = vmul.f32 %v2175, %v2852
        %v2921 = vmul.f32 %v2177, %v2853
        %v2922 = vmul.f32 %v2296, %v2854
        %v2923 = vmul.f32 %v2298, %v2855
        %v2924 = vmul.f32 %v2181, %v2856
        %v2925 = vmul.f32 %v2183, %v2857
        %v2926 = vmul.f32 %v2302, %v2858
        %v2927 = vmul.f32 %v2304, %v2859
        %v2928 = vmul.f32 %v2185, %v2860
        %v2929 = vmul.f32 %v2187, %v2861
        %v2930 = vmul.f32 %v2306, %v2862
        %v2931 = vmul.f32 %v2308, %v2863
        %v2932 = vmul.f32 %v2191, %v2864
        %v2933 = vmul.f32 %v2193, %v2865
        %v2934 = vmul.f32 %v2312, %v2866
        %v2935 = vmul.f32 %v2314, %v2867
        %v2936 = vmul.f32 %v2195, %v2868
        %v2937 = vmul.f32 %v2197, %v2869
        %v2938 = vmul.f32 %v2316, %v2870
        %v2939 = vmul.f32 %v2318, %v2871
        %v2940 = vmul.f32 %v2201, %v2872
        %v2941 = vmul.f32 %v2203, %v2873
        %v2942 = vmul.f32 %v2322, %v2874
        %v2943 = vmul.f32 %v2324, %v2875
        %v2944 = vmul.f32 %v2205, %v2876
        %v2945 = vmul.f32 %v2207, %v2877
        %v2946 = vmul.f32 %v2326, %v2878
        %v2947 = vmul.f32 %v2328, %v2879
        %v2948 = vmul.f32 %v2211, %v2880
        %v2949 = vmul.f32 %v2213, %v2881
        %v2950 = vmul.f32 %v2332, %v2882
        %v2951 = vmul.f32 %v2334, %v2883
        %v2952 = vmul.f32 %v2215, %v2884
        %v2953 = vmul.f32 %v2217, %v2885
        %v2954 = vmul.f32 %v2336, %v2886
        %v2955 = vmul.f32 %v2338, %v2887
        %v2956 = vmul.f32 %v2221, %v2888
        %v2957 = vmul.f32 %v2223, %v2889
        %v2958 = vmul.f32 %v2342, %v2890
        %v2959 = vmul.f32 %v2344, %v2891
        %v2960 = vpack.c.bf16 %v2896, %v2892
        %v2961 = vpack.c.bf16 %v2897, %v2893
        %v2962 = vpack.c.bf16 %v2898, %v2894
        %v2963 = vpack.c.bf16 %v2899, %v2895
        %v2964 = vpack.c.bf16 %v2904, %v2900
        %v2965 = vpack.c.bf16 %v2905, %v2901
        %v2966 = vpack.c.bf16 %v2906, %v2902
        %v2967 = vpack.c.bf16 %v2907, %v2903
        %v2968 = vpack.c.bf16 %v2912, %v2908
        %v2969 = vpack.c.bf16 %v2913, %v2909
        %v2970 = vpack.c.bf16 %v2914, %v2910
        %v2971 = vpack.c.bf16 %v2915, %v2911
        %v2972 = vpack.c.bf16 %v2920, %v2916
        %v2973 = vpack.c.bf16 %v2921, %v2917
        %v2974 = vpack.c.bf16 %v2922, %v2918
        %v2975 = vpack.c.bf16 %v2923, %v2919
        %v2976 = vpack.c.bf16 %v2928, %v2924
        %v2977 = vpack.c.bf16 %v2929, %v2925
        %v2978 = vpack.c.bf16 %v2930, %v2926
        %v2979 = vpack.c.bf16 %v2931, %v2927
        %v2980 = vpack.c.bf16 %v2936, %v2932
        %v2981 = vpack.c.bf16 %v2937, %v2933
        %v2982 = vpack.c.bf16 %v2938, %v2934
        %v2983 = vpack.c.bf16 %v2939, %v2935
        %v2984 = vpack.c.bf16 %v2944, %v2940
        %v2985 = vpack.c.bf16 %v2945, %v2941
        %v2986 = vpack.c.bf16 %v2946, %v2942
        %v2987 = vpack.c.bf16 %v2947, %v2943
        %v2988 = vpack.c.bf16 %v2952, %v2948
        %v2989 = vpack.c.bf16 %v2953, %v2949
        %v2990 = vpack.c.bf16 %v2954, %v2950
        %v2991 = vpack.c.bf16 %v2955, %v2951
        %v2992 = vpack.c.bf16 %v2956, %v2956
        %v2993 = vpack.c.bf16 %v2957, %v2957
        %v2994 = vpack.c.bf16 %v2958, %v2958
        %v2995 = vpack.c.bf16 %v2959, %v2959
        %v2996 = vld [vmem:[#allocation8 + $0x200] sm:$0xff]
        %v2997 = vld [vmem:[#allocation8 + $0x208] sm:$0xff]
        %v2998 = vld [vmem:[#allocation8 + $0x210] sm:$0xff]
        %v2999 = vld [vmem:[#allocation8 + $0x218] sm:$0xff]
        %v3000 = vld [vmem:[#allocation8 + $0x220] sm:$0xff]
        %v3001 = vld [vmem:[#allocation8 + $0x228] sm:$0xff]
        %v3002 = vld [vmem:[#allocation8 + $0x230] sm:$0xff]
        %v3003 = vld [vmem:[#allocation8 + $0x238] sm:$0xff]
        %v3004 = vld [vmem:[#allocation8 + $0x240] sm:$0xff]
        %v3005 = vld [vmem:[#allocation8 + $0x248] sm:$0xff]
        %v3006 = vld [vmem:[#allocation8 + $0x250] sm:$0xff]
        %v3007 = vld [vmem:[#allocation8 + $0x258] sm:$0xff]
        %v3008 = vld [vmem:[#allocation8 + $0x260] sm:$0xff]
        %v3009 = vld [vmem:[#allocation8 + $0x268] sm:$0xff]
        %v3010 = vld [vmem:[#allocation8 + $0x270] sm:$0xff]
        %v3011 = vld [vmem:[#allocation8 + $0x278] sm:$0xff]
        %v3012 = vld [vmem:[#allocation8 + $0x280] sm:$0xff]
        %v3013 = vld [vmem:[#allocation8 + $0x288] sm:$0xff]
        %v3014 = vld [vmem:[#allocation8 + $0x290] sm:$0xff]
        %v3015 = vld [vmem:[#allocation8 + $0x298] sm:$0xff]
        %v3016 = vld [vmem:[#allocation8 + $0x2a0] sm:$0xff]
        %v3017 = vld [vmem:[#allocation8 + $0x2a8] sm:$0xff]
        %v3018 = vld [vmem:[#allocation8 + $0x2b0] sm:$0xff]
        %v3019 = vld [vmem:[#allocation8 + $0x2b8] sm:$0xff]
        %v3020 = vld [vmem:[#allocation8 + $0x2c0] sm:$0xff]
        %v3021 = vld [vmem:[#allocation8 + $0x2c8] sm:$0xff]
        %v3022 = vld [vmem:[#allocation8 + $0x2d0] sm:$0xff]
        %v3023 = vld [vmem:[#allocation8 + $0x2d8] sm:$0xff]
        %v3024 = vld [vmem:[#allocation8 + $0x2e0] sm:$0xff]
        %v3025 = vld [vmem:[#allocation8 + $0x2e8] sm:$0xff]
        %v3026 = vld [vmem:[#allocation8 + $0x2f0] sm:$0xff]
        %v3027 = vld [vmem:[#allocation8 + $0x2f8] sm:$0xff]
        %v3028 = vld [vmem:[#allocation8 + $0x300] sm:$0xff]
        %v3029 = vld [vmem:[#allocation8 + $0x308] sm:$0xff]
        %v3030 = vld [vmem:[#allocation8 + $0x310] sm:$0xff]
        %v3031 = vld [vmem:[#allocation8 + $0x318] sm:$0xff]
        %v3032 = vld [vmem:[#allocation8 + $0x320] sm:$0xff]
        %v3033 = vld [vmem:[#allocation8 + $0x328] sm:$0xff]
        %v3034 = vld [vmem:[#allocation8 + $0x330] sm:$0xff]
        %v3035 = vld [vmem:[#allocation8 + $0x338] sm:$0xff]
        %v3036 = vld [vmem:[#allocation8 + $0x340] sm:$0xff]
        %v3037 = vld [vmem:[#allocation8 + $0x348] sm:$0xff]
        %v3038 = vld [vmem:[#allocation8 + $0x350] sm:$0xff]
        %v3039 = vld [vmem:[#allocation8 + $0x358] sm:$0xff]
        %v3040 = vld [vmem:[#allocation8 + $0x360] sm:$0xff]
        %v3041 = vld [vmem:[#allocation8 + $0x368] sm:$0xff]
        %v3042 = vld [vmem:[#allocation8 + $0x370] sm:$0xff]
        %v3043 = vld [vmem:[#allocation8 + $0x378] sm:$0xff]
        %v3044 = vld [vmem:[#allocation8 + $0x380] sm:$0xff]
        %v3045 = vld [vmem:[#allocation8 + $0x388] sm:$0xff]
        %v3046 = vld [vmem:[#allocation8 + $0x390] sm:$0xff]
        %v3047 = vld [vmem:[#allocation8 + $0x398] sm:$0xff]
        %v3048 = vld [vmem:[#allocation8 + $0x3a0] sm:$0xff]
        %v3049 = vld [vmem:[#allocation8 + $0x3a8] sm:$0xff]
        %v3050 = vld [vmem:[#allocation8 + $0x3b0] sm:$0xff]
        %v3051 = vld [vmem:[#allocation8 + $0x3b8] sm:$0xff]
        %v3052 = vld [vmem:[#allocation8 + $0x3c0] sm:$0xff]
        %v3053 = vld [vmem:[#allocation8 + $0x3c8] sm:$0xff]
        %v3054 = vld [vmem:[#allocation8 + $0x3d0] sm:$0xff]
        %v3055 = vld [vmem:[#allocation8 + $0x3d8] sm:$0xff]
        %v3056 = vld [vmem:[#allocation8 + $0x3e0] sm:$0xff]
        %v3057 = vld [vmem:[#allocation8 + $0x3e8] sm:$0xff]
        %v3058 = vld [vmem:[#allocation8 + $0x3f0] sm:$0xff]
        %v3059 = vld [vmem:[#allocation8 + $0x3f8] sm:$0xff]
        %v3124 = vunpack.c.l.b16 %v2996
        %v3125 = vunpack.c.h.b16 %v2996
        %v3126 = vunpack.c.l.b16 %v2997
        %v3127 = vunpack.c.h.b16 %v2997
        %v3128 = vunpack.c.l.b16 %v2998
        %v3129 = vunpack.c.h.b16 %v2998
        %v3130 = vunpack.c.l.b16 %v2999
        %v3131 = vunpack.c.h.b16 %v2999
        %v3132 = vunpack.c.l.b16 %v3000
        %v3133 = vunpack.c.h.b16 %v3000
        %v3134 = vunpack.c.l.b16 %v3001
        %v3135 = vunpack.c.h.b16 %v3001
        %v3136 = vunpack.c.l.b16 %v3002
        %v3137 = vunpack.c.h.b16 %v3002
        %v3138 = vunpack.c.l.b16 %v3003
        %v3139 = vunpack.c.h.b16 %v3003
        %v3140 = vunpack.c.l.b16 %v3004
        %v3141 = vunpack.c.h.b16 %v3004
        %v3142 = vunpack.c.l.b16 %v3005
        %v3143 = vunpack.c.h.b16 %v3005
        %v3144 = vunpack.c.l.b16 %v3006
        %v3145 = vunpack.c.h.b16 %v3006
        %v3146 = vunpack.c.l.b16 %v3007
        %v3147 = vunpack.c.h.b16 %v3007
        %v3148 = vunpack.c.l.b16 %v3008
        %v3149 = vunpack.c.h.b16 %v3008
        %v3150 = vunpack.c.l.b16 %v3009
        %v3151 = vunpack.c.h.b16 %v3009
        %v3152 = vunpack.c.l.b16 %v3010
        %v3153 = vunpack.c.h.b16 %v3010
        %v3154 = vunpack.c.l.b16 %v3011
        %v3155 = vunpack.c.h.b16 %v3011
        %v3156 = vunpack.c.l.b16 %v3012
        %v3157 = vunpack.c.h.b16 %v3012
        %v3158 = vunpack.c.l.b16 %v3013
        %v3159 = vunpack.c.h.b16 %v3013
        %v3160 = vunpack.c.l.b16 %v3014
        %v3161 = vunpack.c.h.b16 %v3014
        %v3162 = vunpack.c.l.b16 %v3015
        %v3163 = vunpack.c.h.b16 %v3015
        %v3164 = vunpack.c.l.b16 %v3016
        %v3165 = vunpack.c.h.b16 %v3016
        %v3166 = vunpack.c.l.b16 %v3017
        %v3167 = vunpack.c.h.b16 %v3017
        %v3168 = vunpack.c.l.b16 %v3018
        %v3169 = vunpack.c.h.b16 %v3018
        %v3170 = vunpack.c.l.b16 %v3019
        %v3171 = vunpack.c.h.b16 %v3019
        %v3172 = vunpack.c.l.b16 %v3020
        %v3173 = vunpack.c.h.b16 %v3020
        %v3174 = vunpack.c.l.b16 %v3021
        %v3175 = vunpack.c.h.b16 %v3021
        %v3176 = vunpack.c.l.b16 %v3022
        %v3177 = vunpack.c.h.b16 %v3022
        %v3178 = vunpack.c.l.b16 %v3023
        %v3179 = vunpack.c.h.b16 %v3023
        %v3180 = vunpack.c.l.b16 %v3024
        %v3181 = vunpack.c.h.b16 %v3024
        %v3182 = vunpack.c.l.b16 %v3025
        %v3183 = vunpack.c.h.b16 %v3025
        %v3184 = vunpack.c.l.b16 %v3026
        %v3185 = vunpack.c.h.b16 %v3026
        %v3186 = vunpack.c.l.b16 %v3027
        %v3187 = vunpack.c.h.b16 %v3027
        %v3188 = vunpack.c.l.b16 %v3028
        %v3189 = vunpack.c.h.b16 %v3028
        %v3190 = vunpack.c.l.b16 %v3029
        %v3191 = vunpack.c.h.b16 %v3029
        %v3192 = vunpack.c.l.b16 %v3030
        %v3193 = vunpack.c.h.b16 %v3030
        %v3194 = vunpack.c.l.b16 %v3031
        %v3195 = vunpack.c.h.b16 %v3031
        %v3196 = vunpack.c.l.b16 %v3032
        %v3197 = vunpack.c.h.b16 %v3032
        %v3198 = vunpack.c.l.b16 %v3033
        %v3199 = vunpack.c.h.b16 %v3033
        %v3200 = vunpack.c.l.b16 %v3034
        %v3201 = vunpack.c.h.b16 %v3034
        %v3202 = vunpack.c.l.b16 %v3035
        %v3203 = vunpack.c.h.b16 %v3035
        %v3204 = vunpack.c.l.b16 %v3036
        %v3205 = vunpack.c.h.b16 %v3036
        %v3206 = vunpack.c.l.b16 %v3037
        %v3207 = vunpack.c.h.b16 %v3037
        %v3208 = vunpack.c.l.b16 %v3038
        %v3209 = vunpack.c.h.b16 %v3038
        %v3210 = vunpack.c.l.b16 %v3039
        %v3211 = vunpack.c.h.b16 %v3039
        %v3212 = vunpack.c.l.b16 %v3040
        %v3213 = vunpack.c.h.b16 %v3040
        %v3214 = vunpack.c.l.b16 %v3041
        %v3215 = vunpack.c.h.b16 %v3041
        %v3216 = vunpack.c.l.b16 %v3042
        %v3217 = vunpack.c.h.b16 %v3042
        %v3218 = vunpack.c.l.b16 %v3043
        %v3219 = vunpack.c.h.b16 %v3043
        %v3220 = vunpack.c.l.b16 %v3044
        %v3221 = vunpack.c.h.b16 %v3044
        %v3222 = vunpack.c.l.b16 %v3045
        %v3223 = vunpack.c.h.b16 %v3045
        %v3224 = vunpack.c.l.b16 %v3046
        %v3225 = vunpack.c.h.b16 %v3046
        %v3226 = vunpack.c.l.b16 %v3047
        %v3227 = vunpack.c.h.b16 %v3047
        %v3228 = vunpack.c.l.b16 %v3048
        %v3229 = vunpack.c.h.b16 %v3048
        %v3230 = vunpack.c.l.b16 %v3049
        %v3231 = vunpack.c.h.b16 %v3049
        %v3232 = vunpack.c.l.b16 %v3050
        %v3233 = vunpack.c.h.b16 %v3050
        %v3234 = vunpack.c.l.b16 %v3051
        %v3235 = vunpack.c.h.b16 %v3051
        %v3236 = vunpack.c.l.b16 %v3052
        %v3237 = vunpack.c.h.b16 %v3052
        %v3238 = vunpack.c.l.b16 %v3053
        %v3239 = vunpack.c.h.b16 %v3053
        %v3240 = vunpack.c.l.b16 %v3054
        %v3241 = vunpack.c.h.b16 %v3054
        %v3242 = vunpack.c.l.b16 %v3055
        %v3243 = vunpack.c.h.b16 %v3055
        %v3244 = vunpack.c.l.b16 %v3056
        %v3245 = vunpack.c.h.b16 %v3056
        %v3246 = vunpack.c.l.b16 %v3057
        %v3247 = vunpack.c.h.b16 %v3057
        %v3248 = vunpack.c.l.b16 %v3058
        %v3249 = vunpack.c.h.b16 %v3058
        %v3250 = vunpack.c.l.b16 %v3059
        %v3251 = vunpack.c.h.b16 %v3059
        %v3252 = vpack.c.b16 %v3126, %v3124
        %v3253 = vpack.c.b16 %v3127, %v3125
        %v3254 = vpack.c.b16 %v3130, %v3128
        %v3255 = vpack.c.b16 %v3131, %v3129
        %v3256 = vpack.c.b16 %v3134, %v3132
        %v3257 = vpack.c.b16 %v3135, %v3133
        %v3258 = vpack.c.b16 %v3138, %v3136
        %v3259 = vpack.c.b16 %v3139, %v3137
        %v3260 = vpack.c.b16 %v3142, %v3140
        %v3261 = vpack.c.b16 %v3143, %v3141
        %v3262 = vpack.c.b16 %v3146, %v3144
        %v3263 = vpack.c.b16 %v3147, %v3145
        %v3264 = vpack.c.b16 %v3150, %v3148
        %v3265 = vpack.c.b16 %v3151, %v3149
        %v3266 = vpack.c.b16 %v3154, %v3152
        %v3267 = vpack.c.b16 %v3155, %v3153
        %v3268 = vpack.c.b16 %v3158, %v3156
        %v3269 = vpack.c.b16 %v3159, %v3157
        %v3270 = vpack.c.b16 %v3162, %v3160
        %v3271 = vpack.c.b16 %v3163, %v3161
        %v3272 = vpack.c.b16 %v3166, %v3164
        %v3273 = vpack.c.b16 %v3167, %v3165
        %v3274 = vpack.c.b16 %v3170, %v3168
        %v3275 = vpack.c.b16 %v3171, %v3169
        %v3276 = vpack.c.b16 %v3174, %v3172
        %v3277 = vpack.c.b16 %v3175, %v3173
        %v3278 = vpack.c.b16 %v3178, %v3176
        %v3279 = vpack.c.b16 %v3179, %v3177
        %v3280 = vpack.c.b16 %v3182, %v3180
        %v3281 = vpack.c.b16 %v3183, %v3181
        %v3282 = vpack.c.b16 %v3186, %v3184
        %v3283 = vpack.c.b16 %v3187, %v3185
        %v3284 = vpack.c.b16 %v3190, %v3188
        %v3285 = vpack.c.b16 %v3191, %v3189
        %v3286 = vpack.c.b16 %v3194, %v3192
        %v3287 = vpack.c.b16 %v3195, %v3193
        %v3288 = vpack.c.b16 %v3198, %v3196
        %v3289 = vpack.c.b16 %v3199, %v3197
        %v3290 = vpack.c.b16 %v3202, %v3200
        %v3291 = vpack.c.b16 %v3203, %v3201
        %v3292 = vpack.c.b16 %v3206, %v3204
        %v3293 = vpack.c.b16 %v3207, %v3205
        %v3294 = vpack.c.b16 %v3210, %v3208
        %v3295 = vpack.c.b16 %v3211, %v3209
        %v3296 = vpack.c.b16 %v3214, %v3212
        %v3297 = vpack.c.b16 %v3215, %v3213
        %v3298 = vpack.c.b16 %v3218, %v3216
        %v3299 = vpack.c.b16 %v3219, %v3217
        %v3300 = vpack.c.b16 %v3222, %v3220
        %v3301 = vpack.c.b16 %v3223, %v3221
        %v3302 = vpack.c.b16 %v3226, %v3224
        %v3303 = vpack.c.b16 %v3227, %v3225
        %v3304 = vpack.c.b16 %v3230, %v3228
        %v3305 = vpack.c.b16 %v3231, %v3229
        %v3306 = vpack.c.b16 %v3234, %v3232
        %v3307 = vpack.c.b16 %v3235, %v3233
        %v3308 = vpack.c.b16 %v3238, %v3236
        %v3309 = vpack.c.b16 %v3239, %v3237
        %v3310 = vpack.c.b16 %v3242, %v3240
        %v3311 = vpack.c.b16 %v3243, %v3241
        %v3312 = vpack.c.b16 %v3246, %v3244
        %v3313 = vpack.c.b16 %v3247, %v3245
        %v3314 = vpack.c.b16 %v3250, %v3248
        %v3315 = vpack.c.b16 %v3251, %v3249
        %3380 = vmatprep.subr.bf16.mxu0 %v3253
        %3381 = vmatpush1.bf16.msra.mxu0 %v3252
        %3382 = vmatprep.subr.bf16.mxu0 %v3255
        %3383 = vmatpush1.bf16.msra.mxu0 %v3254
        %3384 = vmatprep.subr.bf16.mxu0 %v3257
        %3385 = vmatpush1.bf16.msra.mxu0 %v3256
        %3386 = vmatprep.subr.bf16.mxu0 %v3259
        %3387 = vmatpush1.bf16.msra.mxu0 %v3258
        %3388 = vmatprep.subr.bf16.mxu0 %v3261
        %3389 = vmatpush1.bf16.msra.mxu0 %v3260
        %3390 = vmatprep.subr.bf16.mxu0 %v3263
        %3391 = vmatpush1.bf16.msra.mxu0 %v3262
        %3392 = vmatprep.subr.bf16.mxu0 %v3265
        %3393 = vmatpush1.bf16.msra.mxu0 %v3264
        %3394 = vmatprep.subr.bf16.mxu0 %v3267
        %3395 = vmatpush1.bf16.msra.mxu0 %v3266
        %3396 = vmatprep.subr.bf16.mxu0 %v3269
        %3397 = vmatpush1.bf16.msra.mxu0 %v3268
        %3398 = vmatprep.subr.bf16.mxu0 %v3271
        %3399 = vmatpush1.bf16.msra.mxu0 %v3270
        %3400 = vmatprep.subr.bf16.mxu0 %v3273
        %3401 = vmatpush1.bf16.msra.mxu0 %v3272
        %3402 = vmatprep.subr.bf16.mxu0 %v3275
        %3403 = vmatpush1.bf16.msra.mxu0 %v3274
        %3404 = vmatprep.subr.bf16.mxu0 %v3277
        %3405 = vmatpush1.bf16.msra.mxu0 %v3276
        %3406 = vmatprep.subr.bf16.mxu0 %v3279
        %3407 = vmatpush1.bf16.msra.mxu0 %v3278
        %3408 = vmatprep.subr.bf16.mxu0 %v3281
        %3409 = vmatpush1.bf16.msra.mxu0 %v3280
        %3410 = vmatprep.subr.bf16.mxu0 %v3283
        %3411 = vmatpush1.bf16.msra.mxu0 %v3282
        %3412 = vmatprep.mubr.bf16.mxu0 %v2961
        %3413 = vmatmul.mubr.bf16.gmra.mrb[0].mxu0 %v2960
        %v3414 = vpop.f32.mrb[0].mxu0
        %v3415 = vadd.f32 0.0, %v3414
        %v3416 = vpop.f32.mrb[0].mxu0
        %v3417 = vadd.f32 0.0, %v3416
        %v3418 = vpop.f32.mrb[0].mxu0
        %v3419 = vadd.f32 0.0, %v3418
        %v3420 = vpop.f32.mrb[0].mxu0
        %v3421 = vadd.f32 0.0, %v3420
        %3422 = vmatprep.mubr.bf16.mxu0 %v2965
        %3423 = vmatmul.mubr.bf16.gmra.mrb[0].mxu0 %v2964
        %v3424 = vpop.f32.mrb[0].mxu0
        %v3425 = vadd.f32 0.0, %v3424
        %v3426 = vpop.f32.mrb[0].mxu0
        %v3427 = vadd.f32 0.0, %v3426
        %v3428 = vpop.f32.mrb[0].mxu0
        %v3429 = vadd.f32 0.0, %v3428
        %v3430 = vpop.f32.mrb[0].mxu0
        %v3431 = vadd.f32 0.0, %v3430
        %3432 = vmatprep.mubr.bf16.mxu0 %v2969
        %3433 = vmatmul.mubr.bf16.gmra.mrb[0].mxu0 %v2968
        %v3434 = vpop.f32.mrb[0].mxu0
        %v3435 = vadd.f32 0.0, %v3434
        %v3436 = vpop.f32.mrb[0].mxu0
        %v3437 = vadd.f32 0.0, %v3436
        %v3438 = vpop.f32.mrb[0].mxu0
        %v3439 = vadd.f32 0.0, %v3438
        %v3440 = vpop.f32.mrb[0].mxu0
        %v3441 = vadd.f32 0.0, %v3440
        %3442 = vmatprep.mubr.bf16.mxu0 %v2973
        %3443 = vmatmul.mubr.bf16.gmra.mrb[0].mxu0 %v2972
        %v3444 = vpop.f32.mrb[0].mxu0
        %v3445 = vadd.f32 0.0, %v3444
        %v3446 = vpop.f32.mrb[0].mxu0
        %v3447 = vadd.f32 0.0, %v3446
        %v3448 = vpop.f32.mrb[0].mxu0
        %v3449 = vadd.f32 0.0, %v3448
        %v3450 = vpop.f32.mrb[0].mxu0
        %v3451 = vadd.f32 0.0, %v3450
        %3452 = vmatprep.mubr.bf16.mxu0 %v2977
        %3453 = vmatmul.mubr.bf16.gmra.mrb[0].mxu0 %v2976
        %v3454 = vpop.f32.mrb[0].mxu0
        %v3455 = vadd.f32 0.0, %v3454
        %v3456 = vpop.f32.mrb[0].mxu0
        %v3457 = vadd.f32 0.0, %v3456
        %v3458 = vpop.f32.mrb[0].mxu0
        %v3459 = vadd.f32 0.0, %v3458
        %v3460 = vpop.f32.mrb[0].mxu0
        %v3461 = vadd.f32 0.0, %v3460
        %3462 = vmatprep.mubr.bf16.mxu0 %v2981
        %3463 = vmatmul.mubr.bf16.gmra.mrb[0].mxu0 %v2980
        %v3464 = vpop.f32.mrb[0].mxu0
        %v3465 = vadd.f32 0.0, %v3464
        %v3466 = vpop.f32.mrb[0].mxu0
        %v3467 = vadd.f32 0.0, %v3466
        %v3468 = vpop.f32.mrb[0].mxu0
        %v3469 = vadd.f32 0.0, %v3468
        %v3470 = vpop.f32.mrb[0].mxu0
        %v3471 = vadd.f32 0.0, %v3470
        %3472 = vmatprep.mubr.bf16.mxu0 %v2985
        %3473 = vmatmul.mubr.bf16.gmra.mrb[0].mxu0 %v2984
        %v3474 = vpop.f32.mrb[0].mxu0
        %v3475 = vadd.f32 0.0, %v3474
        %v3476 = vpop.f32.mrb[0].mxu0
        %v3477 = vadd.f32 0.0, %v3476
        %v3478 = vpop.f32.mrb[0].mxu0
        %v3479 = vadd.f32 0.0, %v3478
        %v3480 = vpop.f32.mrb[0].mxu0
        %v3481 = vadd.f32 0.0, %v3480
        %3482 = vmatprep.mubr.bf16.mxu0 %v2989
        %3483 = vmatmul.mubr.bf16.gmra.mrb[0].mxu0 %v2988
        %v3484 = vpop.f32.mrb[0].mxu0
        %v3485 = vadd.f32 0.0, %v3484
        %v3486 = vpop.f32.mrb[0].mxu0
        %v3487 = vadd.f32 0.0, %v3486
        %v3488 = vpop.f32.mrb[0].mxu0
        %v3489 = vadd.f32 0.0, %v3488
        %v3490 = vpop.f32.mrb[0].mxu0
        %v3491 = vadd.f32 0.0, %v3490
        %3492 = vmatprep.mubr.bf16.mxu0 %v2993
        %3493 = vmatmul.mubr.bf16.gmra.mrb[0].mxu0 %v2992
        %v3494 = vpop.f32.mrb[0].mxu0
        %v3495 = vadd.f32 0.0, %v3494
        %v3496 = vpop.f32.mrb[0].mxu0
        %v3497 = vadd.f32 0.0, %v3496
        %v3498 = vpop.f32.mrb[0].mxu0
        %v3499 = vpop.f32.mrb[0].mxu0
        %3500 = vdwg.mxu0
        %3501 = vmatprep.subr.bf16.mxu0 %v3285
        %3502 = vmatpush1.bf16.msra.mxu0 %v3284
        %3503 = vmatprep.subr.bf16.mxu0 %v3287
        %3504 = vmatpush1.bf16.msra.mxu0 %v3286
        %3505 = vmatprep.subr.bf16.mxu0 %v3289
        %3506 = vmatpush1.bf16.msra.mxu0 %v3288
        %3507 = vmatprep.subr.bf16.mxu0 %v3291
        %3508 = vmatpush1.bf16.msra.mxu0 %v3290
        %3509 = vmatprep.subr.bf16.mxu0 %v3293
        %3510 = vmatpush1.bf16.msra.mxu0 %v3292
        %3511 = vmatprep.subr.bf16.mxu0 %v3295
        %3512 = vmatpush1.bf16.msra.mxu0 %v3294
        %3513 = vmatprep.subr.bf16.mxu0 %v3297
        %3514 = vmatpush1.bf16.msra.mxu0 %v3296
        %3515 = vmatprep.subr.bf16.mxu0 %v3299
        %3516 = vmatpush1.bf16.msra.mxu0 %v3298
        %3517 = vmatprep.subr.bf16.mxu0 %v3301
        %3518 = vmatpush1.bf16.msra.mxu0 %v3300
        %3519 = vmatprep.subr.bf16.mxu0 %v3303
        %3520 = vmatpush1.bf16.msra.mxu0 %v3302
        %3521 = vmatprep.subr.bf16.mxu0 %v3305
        %3522 = vmatpush1.bf16.msra.mxu0 %v3304
        %3523 = vmatprep.subr.bf16.mxu0 %v3307
        %3524 = vmatpush1.bf16.msra.mxu0 %v3306
        %3525 = vmatprep.subr.bf16.mxu0 %v3309
        %3526 = vmatpush1.bf16.msra.mxu0 %v3308
        %3527 = vmatprep.subr.bf16.mxu0 %v3311
        %3528 = vmatpush1.bf16.msra.mxu0 %v3310
        %3529 = vmatprep.subr.bf16.mxu0 %v3313
        %3530 = vmatpush1.bf16.msra.mxu0 %v3312
        %3531 = vmatprep.subr.bf16.mxu0 %v3315
        %3532 = vmatpush1.bf16.msra.mxu0 %v3314
        %3533 = vmatprep.mubr.bf16.mxu0 %v2963
        %3534 = vmatmul.mubr.bf16.gmra.mrb[0].mxu0 %v2962
        %v3535 = vpop.f32.mrb[0].mxu0
        %v3536 = vadd.f32 %v3415, %v3535
        %v3537 = vpop.f32.mrb[0].mxu0
        %v3538 = vadd.f32 %v3417, %v3537
        %v3539 = vpop.f32.mrb[0].mxu0
        %v3540 = vadd.f32 %v3419, %v3539
        %v3541 = vpop.f32.mrb[0].mxu0
        %v3542 = vadd.f32 %v3421, %v3541
        %3543 = vmatprep.mubr.bf16.mxu0 %v2967
        %3544 = vmatmul.mubr.bf16.gmra.mrb[0].mxu0 %v2966
        %v3545 = vpop.f32.mrb[0].mxu0
        %v3546 = vadd.f32 %v3425, %v3545
        %v3547 = vpop.f32.mrb[0].mxu0
        %v3548 = vadd.f32 %v3427, %v3547
        %v3549 = vpop.f32.mrb[0].mxu0
        %v3550 = vadd.f32 %v3429, %v3549
        %v3551 = vpop.f32.mrb[0].mxu0
        %v3552 = vadd.f32 %v3431, %v3551
        %3553 = vmatprep.mubr.bf16.mxu0 %v2971
        %3554 = vmatmul.mubr.bf16.gmra.mrb[0].mxu0 %v2970
        %v3555 = vpop.f32.mrb[0].mxu0
        %v3556 = vadd.f32 %v3435, %v3555
        %v3557 = vpop.f32.mrb[0].mxu0
        %v3558 = vadd.f32 %v3437, %v3557
        %v3559 = vpop.f32.mrb[0].mxu0
        %v3560 = vadd.f32 %v3439, %v3559
        %v3561 = vpop.f32.mrb[0].mxu0
        %v3562 = vadd.f32 %v3441, %v3561
        %3563 = vmatprep.mubr.bf16.mxu0 %v2975
        %3564 = vmatmul.mubr.bf16.gmra.mrb[0].mxu0 %v2974
        %v3565 = vpop.f32.mrb[0].mxu0
        %v3566 = vadd.f32 %v3445, %v3565
        %v3567 = vpop.f32.mrb[0].mxu0
        %v3568 = vadd.f32 %v3447, %v3567
        %v3569 = vpop.f32.mrb[0].mxu0
        %v3570 = vadd.f32 %v3449, %v3569
        %v3571 = vpop.f32.mrb[0].mxu0
        %v3572 = vadd.f32 %v3451, %v3571
        %3573 = vmatprep.mubr.bf16.mxu0 %v2979
        %3574 = vmatmul.mubr.bf16.gmra.mrb[0].mxu0 %v2978
        %v3575 = vpop.f32.mrb[0].mxu0
        %v3576 = vadd.f32 %v3455, %v3575
        %v3577 = vpop.f32.mrb[0].mxu0
        %v3578 = vadd.f32 %v3457, %v3577
        %v3579 = vpop.f32.mrb[0].mxu0
        %v3580 = vadd.f32 %v3459, %v3579
        %v3581 = vpop.f32.mrb[0].mxu0
        %v3582 = vadd.f32 %v3461, %v3581
        %3583 = vmatprep.mubr.bf16.mxu0 %v2983
        %3584 = vmatmul.mubr.bf16.gmra.mrb[0].mxu0 %v2982
        %v3585 = vpop.f32.mrb[0].mxu0
        %v3586 = vadd.f32 %v3465, %v3585
        %v3587 = vpop.f32.mrb[0].mxu0
        %v3588 = vadd.f32 %v3467, %v3587
        %v3589 = vpop.f32.mrb[0].mxu0
        %v3590 = vadd.f32 %v3469, %v3589
        %v3591 = vpop.f32.mrb[0].mxu0
        %v3592 = vadd.f32 %v3471, %v3591
        %3593 = vmatprep.mubr.bf16.mxu0 %v2987
        %3594 = vmatmul.mubr.bf16.gmra.mrb[0].mxu0 %v2986
        %v3595 = vpop.f32.mrb[0].mxu0
        %v3596 = vadd.f32 %v3475, %v3595
        %v3597 = vpop.f32.mrb[0].mxu0
        %v3598 = vadd.f32 %v3477, %v3597
        %v3599 = vpop.f32.mrb[0].mxu0
        %v3600 = vadd.f32 %v3479, %v3599
        %v3601 = vpop.f32.mrb[0].mxu0
        %v3602 = vadd.f32 %v3481, %v3601
        %3603 = vmatprep.mubr.bf16.mxu0 %v2991
        %3604 = vmatmul.mubr.bf16.gmra.mrb[0].mxu0 %v2990
        %v3605 = vpop.f32.mrb[0].mxu0
        %v3606 = vadd.f32 %v3485, %v3605
        %v3607 = vpop.f32.mrb[0].mxu0
        %v3608 = vadd.f32 %v3487, %v3607
        %v3609 = vpop.f32.mrb[0].mxu0
        %v3610 = vadd.f32 %v3489, %v3609
        %v3611 = vpop.f32.mrb[0].mxu0
        %v3612 = vadd.f32 %v3491, %v3611
        %3613 = vmatprep.mubr.bf16.mxu0 %v2995
        %3614 = vmatmul.mubr.bf16.gmra.mrb[0].mxu0 %v2994
        %v3615 = vpop.f32.mrb[0].mxu0
        %v3616 = vadd.f32 %v3495, %v3615
        %v3617 = vpop.f32.mrb[0].mxu0
        %v3618 = vadd.f32 %v3497, %v3617
        %v3619 = vpop.f32.mrb[0].mxu0
        %v3620 = vpop.f32.mrb[0].mxu0
        %3621 = vdwg.mxu0
        %v3686 = vunpack.c.l.b16 %v1636
        %v3687 = vunpack.c.h.b16 %v1636
        %v3688 = vunpack.c.l.b16 %v1637
        %v3689 = vunpack.c.h.b16 %v1637
        %v3690 = vunpack.c.l.b16 %v1638
        %v3691 = vunpack.c.h.b16 %v1638
        %v3692 = vunpack.c.l.b16 %v1639
        %v3693 = vunpack.c.h.b16 %v1639
        %v3694 = vunpack.c.l.b16 %v1640
        %v3695 = vunpack.c.h.b16 %v1640
        %v3696 = vunpack.c.l.b16 %v1641
        %v3697 = vunpack.c.h.b16 %v1641
        %v3698 = vunpack.c.l.b16 %v1642
        %v3699 = vunpack.c.h.b16 %v1642
        %v3700 = vunpack.c.l.b16 %v1643
        %v3701 = vunpack.c.h.b16 %v1643
        %v3702 = vunpack.c.l.b16 %v1644
        %v3703 = vunpack.c.h.b16 %v1644
        %v3704 = vunpack.c.l.b16 %v1645
        %v3705 = vunpack.c.h.b16 %v1645
        %v3706 = vunpack.c.l.b16 %v1646
        %v3707 = vunpack.c.h.b16 %v1646
        %v3708 = vunpack.c.l.b16 %v1647
        %v3709 = vunpack.c.h.b16 %v1647
        %v3710 = vunpack.c.l.b16 %v1648
        %v3711 = vunpack.c.h.b16 %v1648
        %v3712 = vunpack.c.l.b16 %v1649
        %v3713 = vunpack.c.h.b16 %v1649
        %v3714 = vunpack.c.l.b16 %v1650
        %v3715 = vunpack.c.h.b16 %v1650
        %v3716 = vunpack.c.l.b16 %v1651
        %v3717 = vunpack.c.h.b16 %v1651
        %v3718 = vunpack.c.l.b16 %v1652
        %v3719 = vunpack.c.h.b16 %v1652
        %v3720 = vunpack.c.l.b16 %v1653
        %v3721 = vunpack.c.h.b16 %v1653
        %v3722 = vunpack.c.l.b16 %v1654
        %v3723 = vunpack.c.h.b16 %v1654
        %v3724 = vunpack.c.l.b16 %v1655
        %v3725 = vunpack.c.h.b16 %v1655
        %v3726 = vunpack.c.l.b16 %v1656
        %v3727 = vunpack.c.h.b16 %v1656
        %v3728 = vunpack.c.l.b16 %v1657
        %v3729 = vunpack.c.h.b16 %v1657
        %v3730 = vunpack.c.l.b16 %v1658
        %v3731 = vunpack.c.h.b16 %v1658
        %v3732 = vunpack.c.l.b16 %v1659
        %v3733 = vunpack.c.h.b16 %v1659
        %v3734 = vunpack.c.l.b16 %v1660
        %v3735 = vunpack.c.h.b16 %v1660
        %v3736 = vunpack.c.l.b16 %v1661
        %v3737 = vunpack.c.h.b16 %v1661
        %v3738 = vunpack.c.l.b16 %v1662
        %v3739 = vunpack.c.h.b16 %v1662
        %v3740 = vunpack.c.l.b16 %v1663
        %v3741 = vunpack.c.h.b16 %v1663
        %v3742 = vunpack.c.l.b16 %v1664
        %v3743 = vunpack.c.h.b16 %v1664
        %v3744 = vunpack.c.l.b16 %v1665
        %v3745 = vunpack.c.h.b16 %v1665
        %v3746 = vunpack.c.l.b16 %v1666
        %v3747 = vunpack.c.h.b16 %v1666
        %v3748 = vunpack.c.l.b16 %v1667
        %v3749 = vunpack.c.h.b16 %v1667
        %v3750 = vunpack.c.l.b16 %v1668
        %v3751 = vunpack.c.h.b16 %v1668
        %v3752 = vunpack.c.l.b16 %v1669
        %v3753 = vunpack.c.h.b16 %v1669
        %v3754 = vunpack.c.l.b16 %v1670
        %v3755 = vunpack.c.h.b16 %v1670
        %v3756 = vunpack.c.l.b16 %v1671
        %v3757 = vunpack.c.h.b16 %v1671
        %v3758 = vunpack.c.l.b16 %v1672
        %v3759 = vunpack.c.h.b16 %v1672
        %v3760 = vunpack.c.l.b16 %v1673
        %v3761 = vunpack.c.h.b16 %v1673
        %v3762 = vunpack.c.l.b16 %v1674
        %v3763 = vunpack.c.h.b16 %v1674
        %v3764 = vunpack.c.l.b16 %v1675
        %v3765 = vunpack.c.h.b16 %v1675
        %v3766 = vunpack.c.l.b16 %v1676
        %v3767 = vunpack.c.h.b16 %v1676
        %v3768 = vunpack.c.l.b16 %v1677
        %v3769 = vunpack.c.h.b16 %v1677
        %v3770 = vunpack.c.l.b16 %v1678
        %v3771 = vunpack.c.h.b16 %v1678
        %v3772 = vunpack.c.l.b16 %v1679
        %v3773 = vunpack.c.h.b16 %v1679
        %v3774 = vunpack.c.l.b16 %v1680
        %v3775 = vunpack.c.h.b16 %v1680
        %v3776 = vunpack.c.l.b16 %v1681
        %v3777 = vunpack.c.h.b16 %v1681
        %v3778 = vunpack.c.l.b16 %v1682
        %v3779 = vunpack.c.h.b16 %v1682
        %v3780 = vunpack.c.l.b16 %v1683
        %v3781 = vunpack.c.h.b16 %v1683
        %v3782 = vunpack.c.l.b16 %v1684
        %v3783 = vunpack.c.h.b16 %v1684
        %v3784 = vunpack.c.l.b16 %v1685
        %v3785 = vunpack.c.h.b16 %v1685
        %v3786 = vunpack.c.l.b16 %v1686
        %v3787 = vunpack.c.h.b16 %v1686
        %v3788 = vunpack.c.l.b16 %v1687
        %v3789 = vunpack.c.h.b16 %v1687
        %v3790 = vunpack.c.l.b16 %v1688
        %v3791 = vunpack.c.h.b16 %v1688
        %v3792 = vunpack.c.l.b16 %v1689
        %v3793 = vunpack.c.h.b16 %v1689
        %v3794 = vunpack.c.l.b16 %v1690
        %v3795 = vunpack.c.h.b16 %v1690
        %v3796 = vunpack.c.l.b16 %v1691
        %v3797 = vunpack.c.h.b16 %v1691
        %v3798 = vunpack.c.l.b16 %v1692
        %v3799 = vunpack.c.h.b16 %v1692
        %v3800 = vunpack.c.l.b16 %v1693
        %v3801 = vunpack.c.h.b16 %v1693
        %v3802 = vunpack.c.l.b16 %v1694
        %v3803 = vunpack.c.h.b16 %v1694
        %v3804 = vunpack.c.l.b16 %v1695
        %v3805 = vunpack.c.h.b16 %v1695
        %v3806 = vunpack.c.l.b16 %v1696
        %v3807 = vunpack.c.h.b16 %v1696
        %v3808 = vunpack.c.l.b16 %v1697
        %v3809 = vunpack.c.h.b16 %v1697
        %v3810 = vunpack.c.l.b16 %v1698
        %v3811 = vunpack.c.h.b16 %v1698
        %v3812 = vunpack.c.l.b16 %v1699
        %v3813 = vunpack.c.h.b16 %v1699
        %v3814 = vpack.c.b16 %v3688, %v3686
        %v3815 = vpack.c.b16 %v3689, %v3687
        %v3816 = vpack.c.b16 %v3692, %v3690
        %v3817 = vpack.c.b16 %v3693, %v3691
        %v3818 = vpack.c.b16 %v3696, %v3694
        %v3819 = vpack.c.b16 %v3697, %v3695
        %v3820 = vpack.c.b16 %v3700, %v3698
        %v3821 = vpack.c.b16 %v3701, %v3699
        %v3822 = vpack.c.b16 %v3704, %v3702
        %v3823 = vpack.c.b16 %v3705, %v3703
        %v3824 = vpack.c.b16 %v3708, %v3706
        %v3825 = vpack.c.b16 %v3709, %v3707
        %v3826 = vpack.c.b16 %v3712, %v3710
        %v3827 = vpack.c.b16 %v3713, %v3711
        %v3828 = vpack.c.b16 %v3716, %v3714
        %v3829 = vpack.c.b16 %v3717, %v3715
        %v3830 = vpack.c.b16 %v3720, %v3718
        %v3831 = vpack.c.b16 %v3721, %v3719
        %v3832 = vpack.c.b16 %v3724, %v3722
        %v3833 = vpack.c.b16 %v3725, %v3723
        %v3834 = vpack.c.b16 %v3728, %v3726
        %v3835 = vpack.c.b16 %v3729, %v3727
        %v3836 = vpack.c.b16 %v3732, %v3730
        %v3837 = vpack.c.b16 %v3733, %v3731
        %v3838 = vpack.c.b16 %v3736, %v3734
        %v3839 = vpack.c.b16 %v3737, %v3735
        %v3840 = vpack.c.b16 %v3740, %v3738
        %v3841 = vpack.c.b16 %v3741, %v3739
        %v3842 = vpack.c.b16 %v3744, %v3742
        %v3843 = vpack.c.b16 %v3745, %v3743
        %v3844 = vpack.c.b16 %v3748, %v3746
        %v3845 = vpack.c.b16 %v3749, %v3747
        %v3846 = vpack.c.b16 %v3752, %v3750
        %v3847 = vpack.c.b16 %v3753, %v3751
        %v3848 = vpack.c.b16 %v3756, %v3754
        %v3849 = vpack.c.b16 %v3757, %v3755
        %v3850 = vpack.c.b16 %v3760, %v3758
        %v3851 = vpack.c.b16 %v3761, %v3759
        %v3852 = vpack.c.b16 %v3764, %v3762
        %v3853 = vpack.c.b16 %v3765, %v3763
        %v3854 = vpack.c.b16 %v3768, %v3766
        %v3855 = vpack.c.b16 %v3769, %v3767
        %v3856 = vpack.c.b16 %v3772, %v3770
        %v3857 = vpack.c.b16 %v3773, %v3771
        %v3858 = vpack.c.b16 %v3776, %v3774
        %v3859 = vpack.c.b16 %v3777, %v3775
        %v3860 = vpack.c.b16 %v3780, %v3778
        %v3861 = vpack.c.b16 %v3781, %v3779
        %v3862 = vpack.c.b16 %v3784, %v3782
        %v3863 = vpack.c.b16 %v3785, %v3783
        %v3864 = vpack.c.b16 %v3788, %v3786
        %v3865 = vpack.c.b16 %v3789, %v3787
        %v3866 = vpack.c.b16 %v3792, %v3790
        %v3867 = vpack.c.b16 %v3793, %v3791
        %v3868 = vpack.c.b16 %v3796, %v3794
        %v3869 = vpack.c.b16 %v3797, %v3795
        %v3870 = vpack.c.b16 %v3800, %v3798
        %v3871 = vpack.c.b16 %v3801, %v3799
        %v3872 = vpack.c.b16 %v3804, %v3802
        %v3873 = vpack.c.b16 %v3805, %v3803
        %v3874 = vpack.c.b16 %v3808, %v3806
        %v3875 = vpack.c.b16 %v3809, %v3807
        %v3876 = vpack.c.b16 %v3812, %v3810
        %v3877 = vpack.c.b16 %v3813, %v3811
        %3942 = vmatprep.subr.bf16.mxu0 %v3815
        %3943 = vmatpush1.bf16.msra.mxu0 %v3814
        %3944 = vmatprep.subr.bf16.mxu0 %v3817
        %3945 = vmatpush1.bf16.msra.mxu0 %v3816
        %3946 = vmatprep.subr.bf16.mxu0 %v3819
        %3947 = vmatpush1.bf16.msra.mxu0 %v3818
        %3948 = vmatprep.subr.bf16.mxu0 %v3821
        %3949 = vmatpush1.bf16.msra.mxu0 %v3820
        %3950 = vmatprep.subr.bf16.mxu0 %v3823
        %3951 = vmatpush1.bf16.msra.mxu0 %v3822
        %3952 = vmatprep.subr.bf16.mxu0 %v3825
        %3953 = vmatpush1.bf16.msra.mxu0 %v3824
        %3954 = vmatprep.subr.bf16.mxu0 %v3827
        %3955 = vmatpush1.bf16.msra.mxu0 %v3826
        %3956 = vmatprep.subr.bf16.mxu0 %v3829
        %3957 = vmatpush1.bf16.msra.mxu0 %v3828
        %3958 = vmatprep.subr.bf16.mxu0 %v3831
        %3959 = vmatpush1.bf16.msra.mxu0 %v3830
        %3960 = vmatprep.subr.bf16.mxu0 %v3833
        %3961 = vmatpush1.bf16.msra.mxu0 %v3832
        %3962 = vmatprep.subr.bf16.mxu0 %v3835
        %3963 = vmatpush1.bf16.msra.mxu0 %v3834
        %3964 = vmatprep.subr.bf16.mxu0 %v3837
        %3965 = vmatpush1.bf16.msra.mxu0 %v3836
        %3966 = vmatprep.subr.bf16.mxu0 %v3839
        %3967 = vmatpush1.bf16.msra.mxu0 %v3838
        %3968 = vmatprep.subr.bf16.mxu0 %v3841
        %3969 = vmatpush1.bf16.msra.mxu0 %v3840
        %3970 = vmatprep.subr.bf16.mxu0 %v3843
        %3971 = vmatpush1.bf16.msra.mxu0 %v3842
        %3972 = vmatprep.subr.bf16.mxu0 %v3845
        %3973 = vmatpush1.bf16.msra.mxu0 %v3844
        %3974 = vmatprep.mubr.bf16.mxu0 %v1601
        %3975 = vmatmul.mubr.bf16.gmra.mrb[0].mxu0 %v1600
        %v3976 = vpop.f32.mrb[0].mxu0
        %v3977 = vadd.f32 %v3536, %v3976
        %v3978 = vpop.f32.mrb[0].mxu0
        %v3979 = vadd.f32 %v3538, %v3978
        %v3980 = vpop.f32.mrb[0].mxu0
        %v3981 = vadd.f32 %v3540, %v3980
        %v3982 = vpop.f32.mrb[0].mxu0
        %v3983 = vadd.f32 %v3542, %v3982
        %3984 = vmatprep.mubr.bf16.mxu0 %v1605
        %3985 = vmatmul.mubr.bf16.gmra.mrb[0].mxu0 %v1604
        %v3986 = vpop.f32.mrb[0].mxu0
        %v3987 = vadd.f32 %v3546, %v3986
        %v3988 = vpop.f32.mrb[0].mxu0
        %v3989 = vadd.f32 %v3548, %v3988
        %v3990 = vpop.f32.mrb[0].mxu0
        %v3991 = vadd.f32 %v3550, %v3990
        %v3992 = vpop.f32.mrb[0].mxu0
        %v3993 = vadd.f32 %v3552, %v3992
        %3994 = vmatprep.mubr.bf16.mxu0 %v1609
        %3995 = vmatmul.mubr.bf16.gmra.mrb[0].mxu0 %v1608
        %v3996 = vpop.f32.mrb[0].mxu0
        %v3997 = vadd.f32 %v3556, %v3996
        %v3998 = vpop.f32.mrb[0].mxu0
        %v3999 = vadd.f32 %v3558, %v3998
        %v4000 = vpop.f32.mrb[0].mxu0
        %v4001 = vadd.f32 %v3560, %v4000
        %v4002 = vpop.f32.mrb[0].mxu0
        %v4003 = vadd.f32 %v3562, %v4002
        %4004 = vmatprep.mubr.bf16.mxu0 %v1613
        %4005 = vmatmul.mubr.bf16.gmra.mrb[0].mxu0 %v1612
        %v4006 = vpop.f32.mrb[0].mxu0
        %v4007 = vadd.f32 %v3566, %v4006
        %v4008 = vpop.f32.mrb[0].mxu0
        %v4009 = vadd.f32 %v3568, %v4008
        %v4010 = vpop.f32.mrb[0].mxu0
        %v4011 = vadd.f32 %v3570, %v4010
        %v4012 = vpop.f32.mrb[0].mxu0
        %v4013 = vadd.f32 %v3572, %v4012
        %4014 = vmatprep.mubr.bf16.mxu0 %v1617
        %4015 = vmatmul.mubr.bf16.gmra.mrb[0].mxu0 %v1616
        %v4016 = vpop.f32.mrb[0].mxu0
        %v4017 = vadd.f32 %v3576, %v4016
        %v4018 = vpop.f32.mrb[0].mxu0
        %v4019 = vadd.f32 %v3578, %v4018
        %v4020 = vpop.f32.mrb[0].mxu0
        %v4021 = vadd.f32 %v3580, %v4020
        %v4022 = vpop.f32.mrb[0].mxu0
        %v4023 = vadd.f32 %v3582, %v4022
        %4024 = vmatprep.mubr.bf16.mxu0 %v1621
        %4025 = vmatmul.mubr.bf16.gmra.mrb[0].mxu0 %v1620
        %v4026 = vpop.f32.mrb[0].mxu0
        %v4027 = vadd.f32 %v3586, %v4026
        %v4028 = vpop.f32.mrb[0].mxu0
        %v4029 = vadd.f32 %v3588, %v4028
        %v4030 = vpop.f32.mrb[0].mxu0
        %v4031 = vadd.f32 %v3590, %v4030
        %v4032 = vpop.f32.mrb[0].mxu0
        %v4033 = vadd.f32 %v3592, %v4032
        %4034 = vmatprep.mubr.bf16.mxu0 %v1625
        %4035 = vmatmul.mubr.bf16.gmra.mrb[0].mxu0 %v1624
        %v4036 = vpop.f32.mrb[0].mxu0
        %v4037 = vadd.f32 %v3596, %v4036
        %v4038 = vpop.f32.mrb[0].mxu0
        %v4039 = vadd.f32 %v3598, %v4038
        %v4040 = vpop.f32.mrb[0].mxu0
        %v4041 = vadd.f32 %v3600, %v4040
        %v4042 = vpop.f32.mrb[0].mxu0
        %v4043 = vadd.f32 %v3602, %v4042
        %4044 = vmatprep.mubr.bf16.mxu0 %v1629
        %4045 = vmatmul.mubr.bf16.gmra.mrb[0].mxu0 %v1628
        %v4046 = vpop.f32.mrb[0].mxu0
        %v4047 = vadd.f32 %v3606, %v4046
        %v4048 = vpop.f32.mrb[0].mxu0
        %v4049 = vadd.f32 %v3608, %v4048
        %v4050 = vpop.f32.mrb[0].mxu0
        %v4051 = vadd.f32 %v3610, %v4050
        %v4052 = vpop.f32.mrb[0].mxu0
        %v4053 = vadd.f32 %v3612, %v4052
        %4054 = vmatprep.mubr.bf16.mxu0 %v1633
        %4055 = vmatmul.mubr.bf16.gmra.mrb[0].mxu0 %v1632
        %v4056 = vpop.f32.mrb[0].mxu0
        %v4057 = vadd.f32 %v3616, %v4056
        %v4058 = vpop.f32.mrb[0].mxu0
        %v4059 = vadd.f32 %v3618, %v4058
        %v4060 = vpop.f32.mrb[0].mxu0
        %v4061 = vpop.f32.mrb[0].mxu0
        %4062 = vdwg.mxu0
        %4063 = vmatprep.subr.bf16.mxu0 %v3847
        %4064 = vmatpush1.bf16.msra.mxu0 %v3846
        %4065 = vmatprep.subr.bf16.mxu0 %v3849
        %4066 = vmatpush1.bf16.msra.mxu0 %v3848
        %4067 = vmatprep.subr.bf16.mxu0 %v3851
        %4068 = vmatpush1.bf16.msra.mxu0 %v3850
        %4069 = vmatprep.subr.bf16.mxu0 %v3853
        %4070 = vmatpush1.bf16.msra.mxu0 %v3852
        %4071 = vmatprep.subr.bf16.mxu0 %v3855
        %4072 = vmatpush1.bf16.msra.mxu0 %v3854
        %4073 = vmatprep.subr.bf16.mxu0 %v3857
        %4074 = vmatpush1.bf16.msra.mxu0 %v3856
        %4075 = vmatprep.subr.bf16.mxu0 %v3859
        %4076 = vmatpush1.bf16.msra.mxu0 %v3858
        %4077 = vmatprep.subr.bf16.mxu0 %v3861
        %4078 = vmatpush1.bf16.msra.mxu0 %v3860
        %4079 = vmatprep.subr.bf16.mxu0 %v3863
        %4080 = vmatpush1.bf16.msra.mxu0 %v3862
        %4081 = vmatprep.subr.bf16.mxu0 %v3865
        %4082 = vmatpush1.bf16.msra.mxu0 %v3864
        %4083 = vmatprep.subr.bf16.mxu0 %v3867
        %4084 = vmatpush1.bf16.msra.mxu0 %v3866
        %4085 = vmatprep.subr.bf16.mxu0 %v3869
        %4086 = vmatpush1.bf16.msra.mxu0 %v3868
        %4087 = vmatprep.subr.bf16.mxu0 %v3871
        %4088 = vmatpush1.bf16.msra.mxu0 %v3870
        %4089 = vmatprep.subr.bf16.mxu0 %v3873
        %4090 = vmatpush1.bf16.msra.mxu0 %v3872
        %4091 = vmatprep.subr.bf16.mxu0 %v3875
        %4092 = vmatpush1.bf16.msra.mxu0 %v3874
        %4093 = vmatprep.subr.bf16.mxu0 %v3877
        %4094 = vmatpush1.bf16.msra.mxu0 %v3876
        %4095 = vmatprep.mubr.bf16.mxu0 %v1603
        %4096 = vmatmul.mubr.bf16.gmra.mrb[0].mxu0 %v1602
        %v4097 = vpop.f32.mrb[0].mxu0
        %v4098 = vadd.f32 %v3977, %v4097
        %v4099 = vpop.f32.mrb[0].mxu0
        %v4100 = vadd.f32 %v3979, %v4099
        %v4101 = vpop.f32.mrb[0].mxu0
        %v4102 = vadd.f32 %v3981, %v4101
        %v4103 = vpop.f32.mrb[0].mxu0
        %v4104 = vadd.f32 %v3983, %v4103
        %4105 = vmatprep.mubr.bf16.mxu0 %v1607
        %4106 = vmatmul.mubr.bf16.gmra.mrb[0].mxu0 %v1606
        %v4107 = vpop.f32.mrb[0].mxu0
        %v4108 = vadd.f32 %v3987, %v4107
        %v4109 = vpop.f32.mrb[0].mxu0
        %v4110 = vadd.f32 %v3989, %v4109
        %v4111 = vpop.f32.mrb[0].mxu0
        %v4112 = vadd.f32 %v3991, %v4111
        %v4113 = vpop.f32.mrb[0].mxu0
        %v4114 = vadd.f32 %v3993, %v4113
        %4115 = vmatprep.mubr.bf16.mxu0 %v1611
        %4116 = vmatmul.mubr.bf16.gmra.mrb[0].mxu0 %v1610
        %v4117 = vpop.f32.mrb[0].mxu0
        %v4118 = vadd.f32 %v3997, %v4117
        %v4119 = vpop.f32.mrb[0].mxu0
        %v4120 = vadd.f32 %v3999, %v4119
        %v4121 = vpop.f32.mrb[0].mxu0
        %v4122 = vadd.f32 %v4001, %v4121
        %v4123 = vpop.f32.mrb[0].mxu0
        %v4124 = vadd.f32 %v4003, %v4123
        %4125 = vmatprep.mubr.bf16.mxu0 %v1615
        %4126 = vmatmul.mubr.bf16.gmra.mrb[0].mxu0 %v1614
        %v4127 = vpop.f32.mrb[0].mxu0
        %v4128 = vadd.f32 %v4007, %v4127
        %v4129 = vpop.f32.mrb[0].mxu0
        %v4130 = vadd.f32 %v4009, %v4129
        %v4131 = vpop.f32.mrb[0].mxu0
        %v4132 = vadd.f32 %v4011, %v4131
        %v4133 = vpop.f32.mrb[0].mxu0
        %v4134 = vadd.f32 %v4013, %v4133
        %4135 = vmatprep.mubr.bf16.mxu0 %v1619
        %4136 = vmatmul.mubr.bf16.gmra.mrb[0].mxu0 %v1618
        %v4137 = vpop.f32.mrb[0].mxu0
        %v4138 = vadd.f32 %v4017, %v4137
        %v4139 = vpop.f32.mrb[0].mxu0
        %v4140 = vadd.f32 %v4019, %v4139
        %v4141 = vpop.f32.mrb[0].mxu0
        %v4142 = vadd.f32 %v4021, %v4141
        %v4143 = vpop.f32.mrb[0].mxu0
        %v4144 = vadd.f32 %v4023, %v4143
        %4145 = vmatprep.mubr.bf16.mxu0 %v1623
        %4146 = vmatmul.mubr.bf16.gmra.mrb[0].mxu0 %v1622
        %v4147 = vpop.f32.mrb[0].mxu0
        %v4148 = vadd.f32 %v4027, %v4147
        %v4149 = vpop.f32.mrb[0].mxu0
        %v4150 = vadd.f32 %v4029, %v4149
        %v4151 = vpop.f32.mrb[0].mxu0
        %v4152 = vadd.f32 %v4031, %v4151
        %v4153 = vpop.f32.mrb[0].mxu0
        %v4154 = vadd.f32 %v4033, %v4153
        %4155 = vmatprep.mubr.bf16.mxu0 %v1627
        %4156 = vmatmul.mubr.bf16.gmra.mrb[0].mxu0 %v1626
        %v4157 = vpop.f32.mrb[0].mxu0
        %v4158 = vadd.f32 %v4037, %v4157
        %v4159 = vpop.f32.mrb[0].mxu0
        %v4160 = vadd.f32 %v4039, %v4159
        %v4161 = vpop.f32.mrb[0].mxu0
        %v4162 = vadd.f32 %v4041, %v4161
        %v4163 = vpop.f32.mrb[0].mxu0
        %v4164 = vadd.f32 %v4043, %v4163
        %4165 = vmatprep.mubr.bf16.mxu0 %v1631
        %4166 = vmatmul.mubr.bf16.gmra.mrb[0].mxu0 %v1630
        %v4167 = vpop.f32.mrb[0].mxu0
        %v4168 = vadd.f32 %v4047, %v4167
        %v4169 = vpop.f32.mrb[0].mxu0
        %v4170 = vadd.f32 %v4049, %v4169
        %v4171 = vpop.f32.mrb[0].mxu0
        %v4172 = vadd.f32 %v4051, %v4171
        %v4173 = vpop.f32.mrb[0].mxu0
        %v4174 = vadd.f32 %v4053, %v4173
        %4175 = vmatprep.mubr.bf16.mxu0 %v1635
        %4176 = vmatmul.mubr.bf16.gmra.mrb[0].mxu0 %v1634
        %v4177 = vpop.f32.mrb[0].mxu0
        %v4178 = vadd.f32 %v4057, %v4177
        %v4179 = vpop.f32.mrb[0].mxu0
        %v4180 = vadd.f32 %v4059, %v4179
        %v4181 = vpop.f32.mrb[0].mxu0
        %v4182 = vpop.f32.mrb[0].mxu0
        %4183 = vdwg.mxu0
        %v4184 = vld [vmem:[%s4] sm:$0x3]
        %v4186 = vlaneseq
        %v4187 = vshrl.u32 %v4186, 7
        %v4188 = vsub.s32 0, %v4187
        %v4189 = vrot.slane %v4184, %v4188
        %v4190 = vlaneseq
        %v4191 = vshrl.u32 %v4190, 7
        %v4192 = vsub.s32 1, %v4191
        %v4193 = vrot.slane %v4184, %v4192
        %v4196 = vadd.f32 %v4098, %v4189
        %v4197 = vadd.f32 %v4100, %v4193
        %v4198 = vadd.f32 %v4102, %v4189
        %v4199 = vadd.f32 %v4104, %v4193
        %v4200 = vadd.f32 %v4108, %v4189
        %v4201 = vadd.f32 %v4110, %v4193
        %v4202 = vadd.f32 %v4112, %v4189
        %v4203 = vadd.f32 %v4114, %v4193
        %v4204 = vadd.f32 %v4118, %v4189
        %v4205 = vadd.f32 %v4120, %v4193
        %v4206 = vadd.f32 %v4122, %v4189
        %v4207 = vadd.f32 %v4124, %v4193
        %v4208 = vadd.f32 %v4128, %v4189
        %v4209 = vadd.f32 %v4130, %v4193
        %v4210 = vadd.f32 %v4132, %v4189
        %v4211 = vadd.f32 %v4134, %v4193
        %v4212 = vadd.f32 %v4138, %v4189
        %v4213 = vadd.f32 %v4140, %v4193
        %v4214 = vadd.f32 %v4142, %v4189
        %v4215 = vadd.f32 %v4144, %v4193
        %v4216 = vadd.f32 %v4148, %v4189
        %v4217 = vadd.f32 %v4150, %v4193
        %v4218 = vadd.f32 %v4152, %v4189
        %v4219 = vadd.f32 %v4154, %v4193
        %v4220 = vadd.f32 %v4158, %v4189
        %v4221 = vadd.f32 %v4160, %v4193
        %v4222 = vadd.f32 %v4162, %v4189
        %v4223 = vadd.f32 %v4164, %v4193
        %v4224 = vadd.f32 %v4168, %v4189
        %v4225 = vadd.f32 %v4170, %v4193
        %v4226 = vadd.f32 %v4172, %v4189
        %v4227 = vadd.f32 %v4174, %v4193
        %v4228 = vadd.f32 %v4178, %v4189
        %v4229 = vadd.f32 %v4180, %v4193
        %4230 = vst [vmem:[%s285] sm:$0xff] %v4196
        %4231 = vst [vmem:[%s285 + $0x8] sm:$0xff] %v4197
        %4232 = vst [vmem:[%s285 + $0x10] sm:$0xff] %v4198
        %4233 = vst [vmem:[%s285 + $0x18] sm:$0xff] %v4199
        %4234 = vst [vmem:[%s285 + $0x20] sm:$0xff] %v4200
        %4235 = vst [vmem:[%s285 + $0x28] sm:$0xff] %v4201
        %4236 = vst [vmem:[%s285 + $0x30] sm:$0xff] %v4202
        %4237 = vst [vmem:[%s285 + $0x38] sm:$0xff] %v4203
        %4238 = vst [vmem:[%s285 + $0x40] sm:$0xff] %v4204
        %4239 = vst [vmem:[%s285 + $0x48] sm:$0xff] %v4205
        %4240 = vst [vmem:[%s285 + $0x50] sm:$0xff] %v4206
        %4241 = vst [vmem:[%s285 + $0x58] sm:$0xff] %v4207
        %4242 = vst [vmem:[%s285 + $0x60] sm:$0xff] %v4208
        %4243 = vst [vmem:[%s285 + $0x68] sm:$0xff] %v4209
        %4244 = vst [vmem:[%s285 + $0x70] sm:$0xff] %v4210
        %4245 = vst [vmem:[%s285 + $0x78] sm:$0xff] %v4211
        %4246 = vst [vmem:[%s285 + $0x80] sm:$0xff] %v4212
        %4247 = vst [vmem:[%s285 + $0x88] sm:$0xff] %v4213
        %4248 = vst [vmem:[%s285 + $0x90] sm:$0xff] %v4214
        %4249 = vst [vmem:[%s285 + $0x98] sm:$0xff] %v4215
        %4250 = vst [vmem:[%s285 + $0xa0] sm:$0xff] %v4216
        %4251 = vst [vmem:[%s285 + $0xa8] sm:$0xff] %v4217
        %4252 = vst [vmem:[%s285 + $0xb0] sm:$0xff] %v4218
        %4253 = vst [vmem:[%s285 + $0xb8] sm:$0xff] %v4219
        %4254 = vst [vmem:[%s285 + $0xc0] sm:$0xff] %v4220
        %4255 = vst [vmem:[%s285 + $0xc8] sm:$0xff] %v4221
        %4256 = vst [vmem:[%s285 + $0xd0] sm:$0xff] %v4222
        %4257 = vst [vmem:[%s285 + $0xd8] sm:$0xff] %v4223
        %4258 = vst [vmem:[%s285 + $0xe0] sm:$0xff] %v4224
        %4259 = vst [vmem:[%s285 + $0xe8] sm:$0xff] %v4225
        %4260 = vst [vmem:[%s285 + $0xf0] sm:$0xff] %v4226
        %4261 = vst [vmem:[%s285 + $0xf8] sm:$0xff] %v4227
        %4262 = vst [vmem:[%s285 + $0x100] sm:$0xff] %v4228
        %4263 = vst [vmem:[%s285 + $0x108] sm:$0xff] %v4229
        %s4264 = sand.u32 %s142, 1
        %s4265 = scalar_lea.sflag [#allocation4], %s4264
        %s4266 = sand.u32 %s142, 1
        %s4267 = smul.addr %s4266, 272
        %s4268 = scalar_lea.vmem [#allocation10], %s4267
        // Predicated region
        $region57: #{tpu_custom_call.1} parent=39 // pred_check
          %p4269 = pneg %p152
        $region58: #{tpu_custom_call.1} parent=39 // pred_check_branch
          %4271 = sbr.rel (%p4269) target = $region60
        $region59: #{tpu_custom_call.1} parent=39 // pred_region
          %s4272 = smul.u32 17, %s24
          %s4274 = ssub.s32 4352, 4352
          %4275 = vsyncadd %s4265, %s4274
          %s4276 = smul.addr %s4272, 2
          %s4277 = smul.addr %s4276, 128
          %s4278 = scalar_lea.hbm %s5, %s4277
          %s4279 = sshll.u32 %s4268, 4
          %s4280 = int_to_ptr.vmem [resolvable:$true] %s4279
          %4285 = dma.vmem_to_hbm [thread:$0]  %s4280, 4352, %s4278, %s4265, 256, 256, 16
        $region60: #{tpu_custom_call.1} parent=39 // pred_fallthru
          _
      $region40: #{tpu_custom_call.1} parent=5 // pred_fallthru
        _
      %p4286 = scmp.le.s32.totalorder 2, %s19
      // Predicated region
      $region61: #{tpu_custom_call.1} parent=5 // pred_check
        %p4287 = pneg %p4286
      $region62: #{tpu_custom_call.1} parent=5 // pred_check_branch
        %4289 = sbr.rel (%p4287) target = $region64
      $region63: #{tpu_custom_call.1} parent=5 // pred_region
        %s4290 = ssub.s32 %s19, 2
        // Predicated region
        $region65: #{tpu_custom_call.1} parent=63 // pred_check
          %p4291 = pneg %p158
        $region66: #{tpu_custom_call.1} parent=63 // pred_check_branch
          %4293 = sbr.rel (%p4291) target = $region68
        $region67: #{tpu_custom_call.1} parent=63 // pred_region
          %s4294 = sand.u32 %s143, 1
          %s4295 = scalar_lea.sflag [#allocation4], %s4294
          %s4296 = sand.u32 %s143, 1
          %s4297 = smul.addr %s4296, 272
          %s4298 = scalar_lea.vmem [#allocation10], %s4297
          %4299 = dma.done %s4295, 4352
        $region68: #{tpu_custom_call.1} parent=63 // pred_fallthru
          _
      $region64: #{tpu_custom_call.1} parent=5 // pred_fallthru
        _
    $region6: #{tpu_custom_call.1} parent=1 // loop_footer
      %s23 = sadd.s32 1, %s19
    $region7: #{tpu_custom_call.1} parent=1 // loop_footer_branch
      %18 = sbr.rel target = $region3
    $region8: #{tpu_custom_call.1} parent=1 // loop_exit
      _
    %4300 = vsyncpa [#allocation3], 1
    %s4301 = scalar_lea.sflag [#allocation3], 1
    %4302 = vsyncpa %s4301, 1
    %4303 = vsyncpa [#allocation6], 1
    %4304 = vsyncpa [#allocation9], 1
    %4305 = vsyncpa [#allocation4], 1
    %s4306 = scalar_lea.sflag [#allocation4], 1
    %4307 = vsyncpa %s4306, 1

</llo_original>
